<compile_context>
chip_gen: v7x
topology: tpu7x:2x2x1
jax: 0.10.0
libtpu: 0.0.40
codegen_flags: <defaults>
</compile_context>

<pallas_src>
import functools
import math

import jax
import jax.numpy as jnp
from jax.experimental import pallas as pl
from jax.experimental.pallas import tpu as pltpu

EPS = 1e-5


# ----------------------------------------------------------------------------
# Small helpers
# ----------------------------------------------------------------------------
def _act_apply(y, act):
    if act == "relu":
        return jnp.maximum(y, 0.0)
    if act == "sigmoid":
        return jax.nn.sigmoid(y)
    return y


# ----------------------------------------------------------------------------
# Kernel 1: direct 3x3 stride-1 conv + folded BN + activation
#   * single K=9*Cin MXU contraction from a VMEM staging block
#   * row-tiled grid, fused global-average-pool partial sums
# ----------------------------------------------------------------------------
def _conv3x3_s1_kernel(act, TH, W, x_ref, w_ref, s_ref, b_ref, o_ref, p_ref,
                       stage_ref):
    # x_ref:   (1, H+2, W+2, Cin) bf16  -- full padded image (revisited over r)
    # w_ref:   (9*Cin, Cout)      bf16
    # s_ref,b_ref: (1, Cout)      f32   -- folded BN scale/shift
    # o_ref:   (1, TH*W, Cout)    bf16  -- conv + BN (+act) output rows
    # p_ref:   (1, 1, 1, Cout)    f32   -- column sums per row tile (SE pool)
    # stage_ref: (TH*W, 9*Cin)    bf16  -- VMEM im2col staging block
    cin = x_ref.shape[-1]
    cout = w_ref.shape[-1]
    r = pl.program_id(1)
    h0 = pl.multiple_of(r * TH, TH)

    # bf16 major-dim collapse is layout-preserving only when W is a multiple
    # of the packed sublane tile (16); otherwise reshape via f32 (8-row tile).
    f32_reshape = (W % 16) != 0
    for t in range(9):                               # static, unrolled taps
        di, dj = t // 3, t % 3
        win = x_ref[0, pl.ds(h0 + di, TH), dj:dj + W, :]        # (TH, W, Cin)
        if f32_reshape:
            win = win.astype(jnp.float32)
        stage_ref[:, t * cin:(t + 1) * cin] = (
            win.reshape(TH * W, cin).astype(jnp.bfloat16))

    # One MXU contraction over K = 9*Cin (fills the systolic depth).
    y = jnp.dot(stage_ref[...], w_ref[...], preferred_element_type=jnp.float32)
    y = y * s_ref[...] + b_ref[...]                              # folded BN
    # Fused global-average-pool partial sums (pre-activation == bn output).
    p_ref[...] = jnp.sum(y, axis=0, keepdims=True).reshape(1, 1, 1, cout)
    y = _act_apply(y, act)
    # TODO(synk): lane-dense (128-wide) output slab when Cout < 128.
    o_ref[...] = y.astype(o_ref.dtype).reshape(1, TH * W, cout)


@functools.partial(jax.jit, static_argnames=("act",))
def conv3x3_s1_bn(x, w, scale, shift, *, act):
    """3x3 / stride 1 / pad 1 conv + folded BN (+act).

    x: (N, H, W, Cin), w: (3, 3, Cin, Cout).
    Returns (out (N, H, W, Cout) bf16, psum (N, R, 1, Cout) f32 column sums).
    """
    N, H, W, cin = x.shape
    cout = w.shape[-1]
    x = x.astype(jnp.bfloat16)                       # bf16 activations in HBM
    xp = jnp.pad(x, ((0, 0), (1, 1), (1, 1), (0, 0)))
    w9 = w.reshape(9 * cin, cout).astype(jnp.bfloat16)
    s2 = scale.astype(jnp.float32).reshape(1, cout)
    b2 = shift.astype(jnp.float32).reshape(1, cout)

    # Row tiling: largest divisor TH of H with TH*W <= 512 output rows.
    TH = H
    for cand in range(H, 0, -1):
        if H % cand != 0:
            continue
        rows = cand * W
        if rows <= 512 and (rows % 8 == 0 or cand == H):
            TH = cand
            break
    R = H // TH

    out, psum = pl.pallas_call(
        functools.partial(_conv3x3_s1_kernel, act, TH, W),
        out_shape=(jax.ShapeDtypeStruct((N, H * W, cout), jnp.bfloat16),
                   jax.ShapeDtypeStruct((N, R, 1, cout), jnp.float32)),
        grid_spec=pltpu.PrefetchScalarGridSpec(
            num_scalar_prefetch=0,
            grid=(N, R),
            in_specs=[
                pl.BlockSpec((1, H + 2, W + 2, cin), lambda n, r: (n, 0, 0, 0)),
                pl.BlockSpec((9 * cin, cout), lambda n, r: (0, 0)),
                pl.BlockSpec((1, cout), lambda n, r: (0, 0)),
                pl.BlockSpec((1, cout), lambda n, r: (0, 0)),
            ],
            out_specs=(
                pl.BlockSpec((1, TH * W, cout), lambda n, r: (n, r, 0)),
                pl.BlockSpec((1, 1, 1, cout), lambda n, r: (n, r, 0, 0)),
            ),
            scratch_shapes=[pltpu.VMEM((TH * W, 9 * cin), jnp.bfloat16)],
        ),
        compiler_params=pltpu.CompilerParams(
            dimension_semantics=("parallel", "parallel"),
            vmem_limit_bytes=32 * 1024 * 1024),
    )(xp, w9, s2, b2)
    return out.reshape(N, H, W, cout), psum


# ----------------------------------------------------------------------------
# Kernel 2: tiled bf16 matmul + folded BN + activation
# (used for strided 3x3 conv via bf16 im2col and the 1x1 downsample conv)
# ----------------------------------------------------------------------------
def _mm_kernel(act, a_ref, w_ref, s_ref, b_ref, o_ref, acc_ref):
    @pl.when(pl.program_id(2) == 0)
    def _():
        acc_ref[...] = jnp.zeros_like(acc_ref)

    acc_ref[...] += jnp.dot(a_ref[...], w_ref[...],
                            preferred_element_type=jnp.float32)

    @pl.when(pl.program_id(2) == pl.num_programs(2) - 1)
    def _():
        y = acc_ref[...] * s_ref[...] + b_ref[...]
        o_ref[...] = _act_apply(y, act).astype(o_ref.dtype)


def matmul_fused(a, w, scale, shift, *, act, out_dtype=jnp.bfloat16):
    """o = act((a @ w) * scale + shift).  a:[M,K] w:[K,N] scale,shift:[N]."""
    M, K = a.shape
    N = w.shape[1]
    a = a.astype(jnp.bfloat16)
    w = w.astype(jnp.bfloat16)

    # --- M tiles: full-dim fallback only when small; pad when large+unaligned.
    if M % 128 == 0:
        TM = 256 if (M % 256 == 0 and M >= 512) else 128
    elif M <= 512:
        TM = M
    else:
        mp = ((M + 127) // 128) * 128
        a = jnp.pad(a, ((0, mp - M), (0, 0)))
        TM = 128
    Mp = a.shape[0]

    # --- K tiles
    if K % 128 == 0:
        TK = 512 if K % 512 == 0 else (256 if K % 256 == 0 else 128)
    elif K <= 2048:
        TK = K
    else:
        kp = ((K + 127) // 128) * 128
        a = jnp.pad(a, ((0, 0), (0, kp - K)))
        w = jnp.pad(w, ((0, kp - K), (0, 0)))
        TK = 128
    Kp = a.shape[1]

    # --- N tiles (Cout is always 8-aligned here; full-dim fallback is legal)
    if N % 128 == 0:
        TN = 256 if (N % 256 == 0 and N >= 512) else 128
    else:
        TN = N

    s2 = scale.astype(jnp.float32).reshape(1, N)
    b2 = shift.astype(jnp.float32).reshape(1, N)

    out = pl.pallas_call(
        functools.partial(_mm_kernel, act),
        out_shape=jax.ShapeDtypeStruct((Mp, N), out_dtype),
        grid_spec=pltpu.PrefetchScalarGridSpec(
            num_scalar_prefetch=0,
            grid=(Mp // TM, N // TN, Kp // TK),
            in_specs=[
                pl.BlockSpec((TM, TK), lambda i, j, k: (i, k)),
                pl.BlockSpec((TK, TN), lambda i, j, k: (k, j)),
                pl.BlockSpec((1, TN), lambda i, j, k: (0, j)),
                pl.BlockSpec((1, TN), lambda i, j, k: (0, j)),
            ],
            out_specs=pl.BlockSpec((TM, TN), lambda i, j, k: (i, j)),
            scratch_shapes=[pltpu.VMEM((TM, TN), jnp.float32)],
        ),
        compiler_params=pltpu.CompilerParams(
            dimension_semantics=("parallel", "parallel", "arbitrary"),
            vmem_limit_bytes=32 * 1024 * 1024),
    )(a, w, s2, b2)
    if Mp != M:
        out = out[:M]
    return out


def _im2col(x, k, stride, padding):
    N, H, W, C = x.shape
    Ho = (H + 2 * padding - k) // stride + 1
    Wo = (W + 2 * padding - k) // stride + 1
    if padding:
        x = jnp.pad(x, ((0, 0), (padding, padding), (padding, padding), (0, 0)))
    cols = []
    for i in range(k):
        for j in range(k):
            cols.append(x[:, i:i + stride * (Ho - 1) + 1:stride,
                          j:j + stride * (Wo - 1) + 1:stride, :])
    patches = jnp.concatenate(cols, axis=-1)                      # stays bf16
    return patches.reshape(N * Ho * Wo, k * k * C), (N, Ho, Wo)


@functools.partial(jax.jit, static_argnames=("k", "stride", "padding", "act"))
def conv_bn_matmul(x, w, scale, shift, *, k, stride, padding, act):
    # TODO(synk): direct strided-halo Pallas conv kernel instead of im2col.
    x = x.astype(jnp.bfloat16)
    patches, (N, Ho, Wo) = _im2col(x, k, stride, padding)
    cout = w.shape[-1]
    y = matmul_fused(patches, w.reshape(-1, cout), scale, shift, act=act)
    return y.reshape(N, Ho, Wo, cout)


# ----------------------------------------------------------------------------
# Kernel 3: fused  relu(out * gate + residual)  with in-kernel gate broadcast
# ----------------------------------------------------------------------------
def _se_apply_kernel(out_ref, gate_ref, res_ref, o_ref):
    g = gate_ref[...]                                            # (1,1,f*C) f32
    o = out_ref[...].astype(jnp.float32) * g + res_ref[...].astype(jnp.float32)
    o_ref[...] = jnp.maximum(o, 0.0).astype(o_ref.dtype)


@jax.jit
def se_apply(out, gate, residual):
    """relu(out * gate[:,None,None,:] + residual); out/residual NHWC, gate (N,C)."""
    N, H, W, C = out.shape
    out = out.astype(jnp.bfloat16)
    residual = residual.astype(jnp.bfloat16)
    # Lane-dense last dim (multiple of 128) whenever C divides 128.
    f = 1
    if C < 128 and 128 % C == 0 and (H * W) % (128 // C) == 0:
        f = 128 // C
    L = (H * W) // f
    out2 = out.reshape(N, L, f * C)                 # same bytes, free reshape
    res2 = residual.reshape(N, L, f * C)
    gate2 = jnp.tile(gate.astype(jnp.float32), (1, f)).reshape(N, 1, f * C)
    y = pl.pallas_call(
        _se_apply_kernel,
        out_shape=jax.ShapeDtypeStruct((N, L, f * C), jnp.bfloat16),
        grid_spec=pltpu.PrefetchScalarGridSpec(
            num_scalar_prefetch=0,
            grid=(N,),
            in_specs=[
                pl.BlockSpec((1, L, f * C), lambda n: (n, 0, 0)),
                pl.BlockSpec((1, 1, f * C), lambda n: (n, 0, 0)),
                pl.BlockSpec((1, L, f * C), lambda n: (n, 0, 0)),
            ],
            out_specs=pl.BlockSpec((1, L, f * C), lambda n: (n, 0, 0)),
        ),
        compiler_params=pltpu.CompilerParams(
            dimension_semantics=("parallel",),
            vmem_limit_bytes=32 * 1024 * 1024),
    )(out2, gate2, res2)
    return y.reshape(N, H, W, C)


# ----------------------------------------------------------------------------
# Parameter init (shapes match the PyTorch module; BN folded, eval mode)
# ----------------------------------------------------------------------------
def _conv_w(key, k, cin, cout):
    return jax.random.normal(key, (k, k, cin, cout), jnp.float32) / math.sqrt(k * k * cin)


def _linear(key, cin, cout):
    w = jax.random.normal(key, (cin, cout), jnp.float32) / math.sqrt(cin)
    b = jax.random.normal(jax.random.fold_in(key, 1), (1, cout), jnp.float32) * 0.01
    return w, b


def init_se_basic_block(key, inplanes, planes, stride=1, downsample=False,
                        reduction=16):
    ks = jax.random.split(key, 5)
    bn_scale = jnp.full((planes,), 1.0 / math.sqrt(1.0 + EPS), jnp.float32)
    bn_shift = jnp.zeros((planes,), jnp.float32)
    fc1w, fc1b = _linear(ks[2], planes, planes // reduction)
    fc2w, fc2b = _linear(ks[3], planes // reduction, planes)
    p = dict(
        stride=stride,
        w1=_conv_w(ks[0], 3, inplanes, planes), s1=bn_scale, sh1=bn_shift,
        w2=_conv_w(ks[1], 3, planes, planes), s2=bn_scale, sh2=bn_shift,
        fc1w=fc1w, fc1b=fc1b, fc2w=fc2w, fc2b=fc2b,
        downw=None, downs=None, downsh=None,
    )
    if downsample:
        p["downw"] = _conv_w(ks[4], 1, inplanes, planes)
        p["downs"] = bn_scale
        p["downsh"] = bn_shift
    return p


# ----------------------------------------------------------------------------
# SEBasicBlock forward
# ----------------------------------------------------------------------------
def se_basic_block(x, p):
    x = x.astype(jnp.bfloat16)
    stride = p["stride"]
    if stride == 1:
        out, _ = conv3x3_s1_bn(x, p["w1"], p["s1"], p["sh1"], act="relu")
    else:
        out = conv_bn_matmul(x, p["w1"], p["s1"], p["sh1"],
                             k=3, stride=stride, padding=1, act="relu")
    out, psum = conv3x3_s1_bn(out, p["w2"], p["s2"], p["sh2"], act="none")

    N, H, W, C = out.shape
    pooled = psum[:, :, 0, :].sum(axis=1) / float(H * W)        # fused avg pool
    # SE excitation FCs in plain JAX: (batch x C x C/16) is MXU-irrelevant;
    # avoids an extra kernel launch + HBM round trip for the gate.
    h = jnp.maximum(pooled @ p["fc1w"] + p["fc1b"], 0.0)
    gate = jax.nn.sigmoid(h @ p["fc2w"] + p["fc2b"])            # (N, C) f32

    if p["downw"] is not None:
        residual = conv_bn_matmul(x, p["downw"], p["downs"], p["downsh"],
                                  k=1, stride=stride, padding=0, act="none")
    else:
        residual = x
    return se_apply(out, gate, residual)                # relu(out*gate + res)


def se_basic_block_nchw(x_nchw, p):
    x = jnp.transpose(x_nchw, (0, 2, 3, 1))                      # NCHW -> NHWC
    y = se_basic_block(x, p)
    return jnp.transpose(y, (0, 3, 1, 2)).astype(jnp.float32)    # back to NCHW


# ----------------------------------------------------------------------------
# Pure-JAX f32 reference (for correctness verification)
# ----------------------------------------------------------------------------
def _conv_ref(x, w, stride, padding):
    return jax.lax.conv_general_dilated(
        x, w, window_strides=(stride, stride),
        padding=[(padding, padding), (padding, padding)],
        dimension_numbers=("NHWC", "HWIO", "NHWC"))


def se_basic_block_ref(x_nchw, p):
    x = jnp.transpose(x_nchw, (0, 2, 3, 1)).astype(jnp.float32)
    s = p["stride"]
    out = jnp.maximum(_conv_ref(x, p["w1"], s, 1) * p["s1"] + p["sh1"], 0.0)
    out = _conv_ref(out, p["w2"], 1, 1) * p["s2"] + p["sh2"]
    pooled = jnp.mean(out, axis=(1, 2))
    h = jnp.maximum(pooled @ p["fc1w"] + p["fc1b"], 0.0)
    gate = jax.nn.sigmoid(h @ p["fc2w"] + p["fc2b"])
    if p["downw"] is not None:
        residual = _conv_ref(x, p["downw"], s, 0) * p["downs"] + p["downsh"]
    else:
        residual = x
    out = jnp.maximum(out * gate[:, None, None, :] + residual, 0.0)
    return jnp.transpose(out, (0, 3, 1, 2))


def _assert_close(y, ref, name):
    y = jnp.asarray(y, jnp.float32)
    ref = jnp.asarray(ref, jnp.float32)
    max_err = float(jnp.max(jnp.abs(y - ref)))
    max_ref = float(jnp.max(jnp.abs(ref))) + 1e-6
    mean_err = float(jnp.mean(jnp.abs(y - ref)))
    mean_ref = float(jnp.mean(jnp.abs(ref))) + 1e-6
    assert max_err / max_ref < 5e-2, (name, max_err, max_ref)
    assert mean_err / mean_ref < 3e-2, (name, mean_err, mean_ref)
    assert bool(jnp.all(jnp.isfinite(y))), name


# ----------------------------------------------------------------------------
if __name__ == "__main__":
    key = jax.random.PRNGKey(0)
    kA, kB, kC, kx, kx2 = jax.random.split(key, 5)

    x = jax.random.normal(kx, (2, 64, 16, 16), jnp.float32)      # NCHW

    # Case A: identity residual (inplanes == planes, stride 1)
    pA = init_se_basic_block(kA, 64, 64, stride=1, downsample=False)
    yA = jax.block_until_ready(se_basic_block_nchw(x, pA))
    assert yA.shape == (2, 64, 16, 16), yA.shape
    _assert_close(yA, se_basic_block_ref(x, pA), "caseA")

    # Case B: projection residual (stride 2 + 1x1 conv downsample)
    pB = init_se_basic_block(kB, 64, 128, stride=2, downsample=True)
    yB = jax.block_until_ready(se_basic_block_nchw(x, pB))
    assert yB.shape == (2, 128, 8, 8), yB.shape
    _assert_close(yB, se_basic_block_ref(x, pB), "caseB")

    # Case C: larger spatial size -> exercises the multi-row-tile conv path.
    x2 = jax.random.normal(kx2, (1, 64, 32, 32), jnp.float32)
    pC = init_se_basic_block(kC, 64, 64, stride=1, downsample=False)
    yC = jax.block_until_ready(se_basic_block_nchw(x2, pC))
    assert yC.shape == (1, 64, 32, 32), yC.shape
    _assert_close(yC, se_basic_block_ref(x2, pC), "caseC")

    print("KERNEL_OK")
</pallas_src>

<mosaic_0001>
module attributes {stable_mosaic.version = 11 : i64} {
  func.func @_conv3x3_s1_kernel(%arg0: i32, %arg1: i32, %arg2: memref<1x18x18x64xbf16, #tpu.memory_space<vmem>>, %arg3: memref<576x64xbf16, #tpu.memory_space<vmem>>, %arg4: memref<1x64xf32, #tpu.memory_space<vmem>>, %arg5: memref<1x64xf32, #tpu.memory_space<vmem>>, %arg6: memref<1x256x64xbf16, #tpu.memory_space<vmem>>, %arg7: memref<1x1x1x64xf32, #tpu.memory_space<vmem>>, %arg8: memref<256x576xbf16, #tpu.memory_space<vmem>>) attributes {dimension_semantics = [#tpu.dimension_semantics<parallel>, #tpu.dimension_semantics<parallel>], iteration_bounds = array<i64: 2, 1>, scalar_prefetch = 0 : i64, scratch_operands = 1 : i64, tpu.core_type = #tpu.core_type<tc>, window_params = [{transform_indices = @transform_0, window_bounds = array<i64: 1, 18, 18, 64>}, {pipeline_mode = #tpu.pipeline_mode<synchronous>, transform_indices = @transform_1, window_bounds = array<i64: 576, 64>}, {pipeline_mode = #tpu.pipeline_mode<synchronous>, transform_indices = @transform_2, window_bounds = array<i64: 1, 64>}, {pipeline_mode = #tpu.pipeline_mode<synchronous>, transform_indices = @transform_3, window_bounds = array<i64: 1, 64>}, {transform_indices = @transform_4, window_bounds = array<i64: 1, 256, 64>}, {transform_indices = @transform_5, window_bounds = array<i64: 1, 1, 1, 64>}]} {
    %c16_i32 = arith.constant 16 : i32
    %0 = arith.muli %arg1, %c16_i32 : i32
    %1 = tpu.assume_multiple %0, 16 : i32
    %c0_i32 = arith.constant 0 : i32
    %2 = arith.addi %1, %c0_i32 : i32
    %c0 = arith.constant 0 : index
    %3 = arith.index_cast %2 : i32 to index
    %c0_0 = arith.constant 0 : index
    %c0_1 = arith.constant 0 : index
    %4 = vector.load %arg2[%c0, %3, %c0_0, %c0_1] : memref<1x18x18x64xbf16, #tpu.memory_space<vmem>>, vector<1x16x16x64xbf16>
    %5 = vector.shape_cast %4 : vector<1x16x16x64xbf16> to vector<16x16x64xbf16>
    %6 = vector.shape_cast %5 : vector<16x16x64xbf16> to vector<256x64xbf16>
    %c0_2 = arith.constant 0 : index
    %c0_3 = arith.constant 0 : index
    %7 = vector.load %arg8[%c0_2, %c0_3] : memref<256x576xbf16, #tpu.memory_space<vmem>>, vector<256x64xbf16>
    tpu.vector_store %arg8[%c0_2, %c0_3], %6 {strides = array<i32>} : memref<256x576xbf16, #tpu.memory_space<vmem>>, vector<256x64xbf16>,
    %c0_i32_4 = arith.constant 0 : i32
    %8 = arith.addi %1, %c0_i32_4 : i32
    %c0_5 = arith.constant 0 : index
    %9 = arith.index_cast %8 : i32 to index
    %c1 = arith.constant 1 : index
    %c0_6 = arith.constant 0 : index
    %10 = vector.load %arg2[%c0_5, %9, %c1, %c0_6] : memref<1x18x18x64xbf16, #tpu.memory_space<vmem>>, vector<1x16x16x64xbf16>
    %11 = vector.shape_cast %10 : vector<1x16x16x64xbf16> to vector<16x16x64xbf16>
    %12 = vector.shape_cast %11 : vector<16x16x64xbf16> to vector<256x64xbf16>
    %c0_7 = arith.constant 0 : index
    %c64 = arith.constant 64 : index
    %13 = vector.load %arg8[%c0_7, %c64] : memref<256x576xbf16, #tpu.memory_space<vmem>>, vector<256x64xbf16>
    tpu.vector_store %arg8[%c0_7, %c64], %12 {strides = array<i32>} : memref<256x576xbf16, #tpu.memory_space<vmem>>, vector<256x64xbf16>,
    %c0_i32_8 = arith.constant 0 : i32
    %14 = arith.addi %1, %c0_i32_8 : i32
    %c0_9 = arith.constant 0 : index
    %15 = arith.index_cast %14 : i32 to index
    %c2 = arith.constant 2 : index
    %c0_10 = arith.constant 0 : index
    %16 = vector.load %arg2[%c0_9, %15, %c2, %c0_10] : memref<1x18x18x64xbf16, #tpu.memory_space<vmem>>, vector<1x16x16x64xbf16>
    %17 = vector.shape_cast %16 : vector<1x16x16x64xbf16> to vector<16x16x64xbf16>
    %18 = vector.shape_cast %17 : vector<16x16x64xbf16> to vector<256x64xbf16>
    %c0_11 = arith.constant 0 : index
    %c128 = arith.constant 128 : index
    %19 = vector.load %arg8[%c0_11, %c128] : memref<256x576xbf16, #tpu.memory_space<vmem>>, vector<256x64xbf16>
    tpu.vector_store %arg8[%c0_11, %c128], %18 {strides = array<i32>} : memref<256x576xbf16, #tpu.memory_space<vmem>>, vector<256x64xbf16>,
    %c1_i32 = arith.constant 1 : i32
    %20 = arith.addi %1, %c1_i32 : i32
    %c0_12 = arith.constant 0 : index
    %21 = arith.index_cast %20 : i32 to index
    %c0_13 = arith.constant 0 : index
    %c0_14 = arith.constant 0 : index
    %22 = vector.load %arg2[%c0_12, %21, %c0_13, %c0_14] : memref<1x18x18x64xbf16, #tpu.memory_space<vmem>>, vector<1x16x16x64xbf16>
    %23 = vector.shape_cast %22 : vector<1x16x16x64xbf16> to vector<16x16x64xbf16>
    %24 = vector.shape_cast %23 : vector<16x16x64xbf16> to vector<256x64xbf16>
    %c0_15 = arith.constant 0 : index
    %c192 = arith.constant 192 : index
    %25 = vector.load %arg8[%c0_15, %c192] : memref<256x576xbf16, #tpu.memory_space<vmem>>, vector<256x64xbf16>
    tpu.vector_store %arg8[%c0_15, %c192], %24 {strides = array<i32>} : memref<256x576xbf16, #tpu.memory_space<vmem>>, vector<256x64xbf16>,
    %c1_i32_16 = arith.constant 1 : i32
    %26 = arith.addi %1, %c1_i32_16 : i32
    %c0_17 = arith.constant 0 : index
    %27 = arith.index_cast %26 : i32 to index
    %c1_18 = arith.constant 1 : index
    %c0_19 = arith.constant 0 : index
    %28 = vector.load %arg2[%c0_17, %27, %c1_18, %c0_19] : memref<1x18x18x64xbf16, #tpu.memory_space<vmem>>, vector<1x16x16x64xbf16>
    %29 = vector.shape_cast %28 : vector<1x16x16x64xbf16> to vector<16x16x64xbf16>
    %30 = vector.shape_cast %29 : vector<16x16x64xbf16> to vector<256x64xbf16>
    %c0_20 = arith.constant 0 : index
    %c256 = arith.constant 256 : index
    %31 = vector.load %arg8[%c0_20, %c256] : memref<256x576xbf16, #tpu.memory_space<vmem>>, vector<256x64xbf16>
    tpu.vector_store %arg8[%c0_20, %c256], %30 {strides = array<i32>} : memref<256x576xbf16, #tpu.memory_space<vmem>>, vector<256x64xbf16>,
    %c1_i32_21 = arith.constant 1 : i32
    %32 = arith.addi %1, %c1_i32_21 : i32
    %c0_22 = arith.constant 0 : index
    %33 = arith.index_cast %32 : i32 to index
    %c2_23 = arith.constant 2 : index
    %c0_24 = arith.constant 0 : index
    %34 = vector.load %arg2[%c0_22, %33, %c2_23, %c0_24] : memref<1x18x18x64xbf16, #tpu.memory_space<vmem>>, vector<1x16x16x64xbf16>
    %35 = vector.shape_cast %34 : vector<1x16x16x64xbf16> to vector<16x16x64xbf16>
    %36 = vector.shape_cast %35 : vector<16x16x64xbf16> to vector<256x64xbf16>
    %c0_25 = arith.constant 0 : index
    %c320 = arith.constant 320 : index
    %37 = vector.load %arg8[%c0_25, %c320] : memref<256x576xbf16, #tpu.memory_space<vmem>>, vector<256x64xbf16>
    tpu.vector_store %arg8[%c0_25, %c320], %36 {strides = array<i32>} : memref<256x576xbf16, #tpu.memory_space<vmem>>, vector<256x64xbf16>,
    %c2_i32 = arith.constant 2 : i32
    %38 = arith.addi %1, %c2_i32 : i32
    %c0_26 = arith.constant 0 : index
    %39 = arith.index_cast %38 : i32 to index
    %c0_27 = arith.constant 0 : index
    %c0_28 = arith.constant 0 : index
    %40 = vector.load %arg2[%c0_26, %39, %c0_27, %c0_28] : memref<1x18x18x64xbf16, #tpu.memory_space<vmem>>, vector<1x16x16x64xbf16>
    %41 = vector.shape_cast %40 : vector<1x16x16x64xbf16> to vector<16x16x64xbf16>
    %42 = vector.shape_cast %41 : vector<16x16x64xbf16> to vector<256x64xbf16>
    %c0_29 = arith.constant 0 : index
    %c384 = arith.constant 384 : index
    %43 = vector.load %arg8[%c0_29, %c384] : memref<256x576xbf16, #tpu.memory_space<vmem>>, vector<256x64xbf16>
    tpu.vector_store %arg8[%c0_29, %c384], %42 {strides = array<i32>} : memref<256x576xbf16, #tpu.memory_space<vmem>>, vector<256x64xbf16>,
    %c2_i32_30 = arith.constant 2 : i32
    %44 = arith.addi %1, %c2_i32_30 : i32
    %c0_31 = arith.constant 0 : index
    %45 = arith.index_cast %44 : i32 to index
    %c1_32 = arith.constant 1 : index
    %c0_33 = arith.constant 0 : index
    %46 = vector.load %arg2[%c0_31, %45, %c1_32, %c0_33] : memref<1x18x18x64xbf16, #tpu.memory_space<vmem>>, vector<1x16x16x64xbf16>
    %47 = vector.shape_cast %46 : vector<1x16x16x64xbf16> to vector<16x16x64xbf16>
    %48 = vector.shape_cast %47 : vector<16x16x64xbf16> to vector<256x64xbf16>
    %c0_34 = arith.constant 0 : index
    %c448 = arith.constant 448 : index
    %49 = vector.load %arg8[%c0_34, %c448] : memref<256x576xbf16, #tpu.memory_space<vmem>>, vector<256x64xbf16>
    tpu.vector_store %arg8[%c0_34, %c448], %48 {strides = array<i32>} : memref<256x576xbf16, #tpu.memory_space<vmem>>, vector<256x64xbf16>,
    %c2_i32_35 = arith.constant 2 : i32
    %50 = arith.addi %1, %c2_i32_35 : i32
    %c0_36 = arith.constant 0 : index
    %51 = arith.index_cast %50 : i32 to index
    %c2_37 = arith.constant 2 : index
    %c0_38 = arith.constant 0 : index
    %52 = vector.load %arg2[%c0_36, %51, %c2_37, %c0_38] : memref<1x18x18x64xbf16, #tpu.memory_space<vmem>>, vector<1x16x16x64xbf16>
    %53 = vector.shape_cast %52 : vector<1x16x16x64xbf16> to vector<16x16x64xbf16>
    %54 = vector.shape_cast %53 : vector<16x16x64xbf16> to vector<256x64xbf16>
    %c0_39 = arith.constant 0 : index
    %c512 = arith.constant 512 : index
    %55 = vector.load %arg8[%c0_39, %c512] : memref<256x576xbf16, #tpu.memory_space<vmem>>, vector<256x64xbf16>
    tpu.vector_store %arg8[%c0_39, %c512], %54 {strides = array<i32>} : memref<256x576xbf16, #tpu.memory_space<vmem>>, vector<256x64xbf16>,
    %c0_40 = arith.constant 0 : index
    %c0_41 = arith.constant 0 : index
    %56 = vector.load %arg8[%c0_40, %c0_41] : memref<256x576xbf16, #tpu.memory_space<vmem>>, vector<256x576xbf16>
    %c0_42 = arith.constant 0 : index
    %c0_43 = arith.constant 0 : index
    %57 = vector.load %arg3[%c0_42, %c0_43] : memref<576x64xbf16, #tpu.memory_space<vmem>>, vector<576x64xbf16>
    %cst = arith.constant dense<0.000000e+00> : vector<256x64xf32>
    %58 = tpu.matmul %56, %57, %cst {dimension_numbers = #tpu.dot_dimension_numbers<[1], [0], [0], [1], [0, 0, 1, 1], [], []>} : vector<256x576xbf16>, vector<576x64xbf16>, vector<256x64xf32> -> vector<256x64xf32>
    %c0_44 = arith.constant 0 : index
    %c0_45 = arith.constant 0 : index
    %59 = vector.load %arg4[%c0_44, %c0_45] : memref<1x64xf32, #tpu.memory_space<vmem>>, vector<1x64xf32>
    %60 = vector.broadcast %59 : vector<1x64xf32> to vector<256x64xf32>
    %61 = arith.mulf %58, %60 : vector<256x64xf32>
    %c0_46 = arith.constant 0 : index
    %c0_47 = arith.constant 0 : index
    %62 = vector.load %arg5[%c0_46, %c0_47] : memref<1x64xf32, #tpu.memory_space<vmem>>, vector<1x64xf32>
    %63 = vector.broadcast %62 : vector<1x64xf32> to vector<256x64xf32>
    %64 = arith.addf %61, %63 : vector<256x64xf32>
    %cst_48 = arith.constant dense<0.000000e+00> : vector<64xf32>
    %65 = vector.multi_reduction <add>, %64, %cst_48 [0] : vector<256x64xf32> to vector<64xf32>
    %66 = vector.shape_cast %65 : vector<64xf32> to vector<1x64xf32>
    %67 = vector.shape_cast %66 : vector<1x64xf32> to vector<1x1x1x64xf32>
    %c0_49 = arith.constant 0 : index
    %c0_50 = arith.constant 0 : index
    %c0_51 = arith.constant 0 : index
    %c0_52 = arith.constant 0 : index
    %68 = vector.load %arg7[%c0_49, %c0_50, %c0_51, %c0_52] : memref<1x1x1x64xf32, #tpu.memory_space<vmem>>, vector<1x1x1x64xf32>
    tpu.vector_store %arg7[%c0_49, %c0_50, %c0_51, %c0_52], %67 {strides = array<i32>} : memref<1x1x1x64xf32, #tpu.memory_space<vmem>>, vector<1x1x1x64xf32>,
    %cst_53 = arith.constant 0.000000e+00 : f32
    %69 = vector.broadcast %cst_53 : f32 to vector<256x64xf32>
    %70 = arith.maximumf %64, %69 : vector<256x64xf32>
    %71 = arith.truncf %70 : vector<256x64xf32> to vector<256x64xbf16>
    %72 = vector.shape_cast %71 : vector<256x64xbf16> to vector<1x256x64xbf16>
    %c0_54 = arith.constant 0 : index
    %c0_55 = arith.constant 0 : index
    %c0_56 = arith.constant 0 : index
    %73 = vector.load %arg6[%c0_54, %c0_55, %c0_56] : memref<1x256x64xbf16, #tpu.memory_space<vmem>>, vector<1x256x64xbf16>
    tpu.vector_store %arg6[%c0_54, %c0_55, %c0_56], %72 {strides = array<i32>} : memref<1x256x64xbf16, #tpu.memory_space<vmem>>, vector<1x256x64xbf16>,
    return
  }
  func.func @transform_0(%arg0: i32, %arg1: i32) -> (i32, i32, i32, i32) {
    %c0_i32 = arith.constant 0 : i32
    %c0_i32_0 = arith.constant 0 : i32
    %c0_i32_1 = arith.constant 0 : i32
    %c0_i32_2 = arith.constant 0 : i32
    return %arg0, %c0_i32, %c0_i32_0, %c0_i32_1 : i32, i32, i32, i32
  }
  func.func @transform_1(%arg0: i32, %arg1: i32) -> (i32, i32) {
    %c0_i32 = arith.constant 0 : i32
    %c0_i32_0 = arith.constant 0 : i32
    %c0_i32_1 = arith.constant 0 : i32
    return %c0_i32, %c0_i32_0 : i32, i32
  }
  func.func @transform_2(%arg0: i32, %arg1: i32) -> (i32, i32) {
    %c0_i32 = arith.constant 0 : i32
    %c0_i32_0 = arith.constant 0 : i32
    %c0_i32_1 = arith.constant 0 : i32
    return %c0_i32, %c0_i32_0 : i32, i32
  }
  func.func @transform_3(%arg0: i32, %arg1: i32) -> (i32, i32) {
    %c0_i32 = arith.constant 0 : i32
    %c0_i32_0 = arith.constant 0 : i32
    %c0_i32_1 = arith.constant 0 : i32
    return %c0_i32, %c0_i32_0 : i32, i32
  }
  func.func @transform_4(%arg0: i32, %arg1: i32) -> (i32, i32, i32) {
    %c0_i32 = arith.constant 0 : i32
    %c0_i32_0 = arith.constant 0 : i32
    return %arg0, %arg1, %c0_i32 : i32, i32, i32
  }
  func.func @transform_5(%arg0: i32, %arg1: i32) -> (i32, i32, i32, i32) {
    %c0_i32 = arith.constant 0 : i32
    %c0_i32_0 = arith.constant 0 : i32
    %c0_i32_1 = arith.constant 0 : i32
    return %arg0, %arg1, %c0_i32, %c0_i32_0 : i32, i32, i32, i32
  }
}

</mosaic_0001>

<llo_original>
// kernel: conv3x3_s1_bn.1
$region0: #{conv3x3_s1_bn.1}
  #allocation0 [shape = 'u32[]', space=smem, size = 0x4, offset = 0x4, fixed_abs, tag = 'smem constant byte address 0x4 - core index']
  #allocation1 [shape = 'u32[144,128]{1,0:T(1,128)}', space=vmem, size = 0x12000, scoped, tag = 'internal scratch']
  #allocation2 [shape = 'bf16[256,576]{1,0:T(16,128)(2,1)}', space=vmem, size = 0x50000, scoped, tag = 'scratch operand']
  %s0 = inlined_call_operand.vmem [shape: bf16[2,18,18,64], index: 0, kind: input, shape index: {}]
  %s1 = inlined_call_operand.vmem [shape: bf16[576,64], index: 1, kind: input, shape index: {}]
  %s2 = inlined_call_operand.vmem [shape: f32[1,64], index: 2, kind: input, shape index: {}]
  %s3 = inlined_call_operand.vmem [shape: f32[1,64], index: 3, kind: input, shape index: {}]
  %s4 = inlined_call_operand.hbm [shape: bf16[2,256,64], index: 4, kind: output, shape index: {0}]
  %s5 = inlined_call_operand.hbm [shape: f32[2,1,1,64], index: 5, kind: output, shape index: {1}]
  %6 = xla_tuple %s4, %s5
  %s7 = sld [smem:[#allocation0]]
  $region57: #{conv3x3_s1_bn.1} parent=0
    _
  %s9 = ssub.s32 1, %s7
  %s10 = scalar_select 0, %s9, %s7
  $region1: #{conv3x3_s1_bn.1} parent=0
    #allocation3 [shape = 'u8[131072]{0}', space=vmem, size = 0x20000, scoped, tag = 'output window, operand 0']
    #allocation4 [shape = 's32[2]{0}', space=sflag, size = 0x8, scoped, tag = 'scoped memory for conv3x3_s1_bn.1']
    #allocation5 [shape = 'u8[1024]{0}', space=vmem, size = 0x400, scoped, tag = 'output window, operand 1']
    #allocation6 [shape = 's32[2]{0}', space=sflag, size = 0x8, scoped, tag = 'scoped memory for conv3x3_s1_bn.1']
    %11 = vsyncpa [#allocation4], 0
    %s12 = scalar_lea.sflag [#allocation4], 1
    %13 = vsyncpa %s12, 0
    %14 = vsyncpa [#allocation6], 0
    %s15 = scalar_lea.sflag [#allocation6], 1
    %16 = vsyncpa %s15, 0
    loop: start=0, step=1, limit=4
    $region2: #{conv3x3_s1_bn.1} parent=1 // loop_pre_header
      _
    $region3: #{conv3x3_s1_bn.1} parent=1 // loop_header
      %s18 = sphi 0, %s22
      %p19 = scmp.ge.s32.totalorder %s18, 4
      %s25 = sphi 0, %s37
      %s26 = sphi 0, %s33
      %s27 = sphi 0, %s25
      %s28 = sphi 0, %s26
      %s29 = sphi 0, %s27
      %s30 = sphi 0, %s28
      %s40 = sphi 0, %s42
      %s43 = sphi 0, %s40
      %s44 = sphi 0, %s43
      %s60 = sphi 0, %s44
      %s64 = sphi 0, %s64
      %s66 = sphi 0, %s64
      %s67 = sphi 0, %s66
      %s81 = sphi 0, %s67
      %s85 = sphi 0, %s85
      %s87 = sphi 0, %s85
      %s88 = sphi 0, %s87
      %s102 = sphi 0, %s88
      %s106 = sphi 0, %s106
      %s108 = sphi 0, %s106
      %s109 = sphi 0, %s108
      %s123 = sphi 0, %s109
      %s131 = sphi 0, %s133
      %s134 = sphi 0, %s131
      %s135 = sphi 0, %s134
      %s151 = sphi 0, %s135
      %s159 = sphi 0, %s161
      %s162 = sphi 0, %s159
      %s163 = sphi 0, %s162
      %s179 = sphi 0, %s163
    $region4: #{conv3x3_s1_bn.1} parent=1 // loop_header_branch
      %21 = sbr.rel (%p19) target = $region8
    $region5: #{conv3x3_s1_bn.1} parent=1 // loop_body
      %s23 = ssub.s32 %s18, 1
      %s24 = ssub.s32 %s18, 2
      %s31 = sadd.s32 1, %s26
      %p32 = scmp.ge.s32.totalorder %s31, 1
      %s33 = scalar_select %p32, 0, %s31
      %s34 = sadd.s32 1, %s25
      %s35 = scalar_select %p32, %s34, %s25
      %p36 = scmp.ge.s32.totalorder %s35, 2
      %s37 = scalar_select %p36, 0, %s35
      %s38 = ssub.s32 %s25, %s37
      %p39 = scmp.eq.s32.totalorder %s38, 0
      %s41 = sadd.s32 %s40, 1
      %s42 = scalar_select %p39, %s40, %s41
      %p45 = pneg %p39
      %p46 = scmp.eq.s32.totalorder %s18, 1
      %p47 = por %p45, %p46
      %p48 = scmp.ne.s32.totalorder %s40, %s43
      %p49 = scmp.eq.s32.totalorder %s18, 0
      %p50 = por %p48, %p49
      %p51 = scmp.ne.s32.totalorder %s40, %s43
      %p52 = scmp.eq.s32.totalorder %s23, 1
      %p53 = por %p51, %p52
      %p54 = scmp.ne.s32.totalorder %s43, %s44
      %p55 = scmp.eq.s32.totalorder %s23, 0
      %p56 = por %p54, %p55
      %p57 = scmp.ne.s32.totalorder %s43, %s44
      %p58 = scmp.eq.s32.totalorder %s24, 1
      %p59 = por %p57, %p58
      %p61 = scmp.ne.s32.totalorder %s44, %s60
      %p62 = scmp.eq.s32.totalorder %s24, 0
      %p63 = por %p61, %p62
      %s65 = sadd.s32 %s64, 1
      %p68 = scmp.eq.s32.totalorder %s18, 1
      %p69 = scmp.ne.s32.totalorder %s64, %s66
      %p70 = scmp.eq.s32.totalorder %s18, 0
      %p71 = por %p69, %p70
      %p72 = scmp.ne.s32.totalorder %s64, %s66
      %p73 = scmp.eq.s32.totalorder %s23, 1
      %p74 = por %p72, %p73
      %p75 = scmp.ne.s32.totalorder %s66, %s67
      %p76 = scmp.eq.s32.totalorder %s23, 0
      %p77 = por %p75, %p76
      %p78 = scmp.ne.s32.totalorder %s66, %s67
      %p79 = scmp.eq.s32.totalorder %s24, 1
      %p80 = por %p78, %p79
      %p82 = scmp.ne.s32.totalorder %s67, %s81
      %p83 = scmp.eq.s32.totalorder %s24, 0
      %p84 = por %p82, %p83
      %s86 = sadd.s32 %s85, 1
      %p89 = scmp.eq.s32.totalorder %s18, 1
      %p90 = scmp.ne.s32.totalorder %s85, %s87
      %p91 = scmp.eq.s32.totalorder %s18, 0
      %p92 = por %p90, %p91
      %p93 = scmp.ne.s32.totalorder %s85, %s87
      %p94 = scmp.eq.s32.totalorder %s23, 1
      %p95 = por %p93, %p94
      %p96 = scmp.ne.s32.totalorder %s87, %s88
      %p97 = scmp.eq.s32.totalorder %s23, 0
      %p98 = por %p96, %p97
      %p99 = scmp.ne.s32.totalorder %s87, %s88
      %p100 = scmp.eq.s32.totalorder %s24, 1
      %p101 = por %p99, %p100
      %p103 = scmp.ne.s32.totalorder %s88, %s102
      %p104 = scmp.eq.s32.totalorder %s24, 0
      %p105 = por %p103, %p104
      %s107 = sadd.s32 %s106, 1
      %p110 = scmp.eq.s32.totalorder %s18, 1
      %p111 = scmp.ne.s32.totalorder %s106, %s108
      %p112 = scmp.eq.s32.totalorder %s18, 0
      %p113 = por %p111, %p112
      %p114 = scmp.ne.s32.totalorder %s106, %s108
      %p115 = scmp.eq.s32.totalorder %s23, 1
      %p116 = por %p114, %p115
      %p117 = scmp.ne.s32.totalorder %s108, %s109
      %p118 = scmp.eq.s32.totalorder %s23, 0
      %p119 = por %p117, %p118
      %p120 = scmp.ne.s32.totalorder %s108, %s109
      %p121 = scmp.eq.s32.totalorder %s24, 1
      %p122 = por %p120, %p121
      %p124 = scmp.ne.s32.totalorder %s109, %s123
      %p125 = scmp.eq.s32.totalorder %s24, 0
      %p126 = por %p124, %p125
      %s127 = ssub.s32 %s25, %s37
      %s128 = ssub.s32 %s26, %s33
      %s129 = sor.u32 %s127, %s128
      %p130 = scmp.eq.s32.totalorder %s129, 0
      %s132 = sadd.s32 %s131, 1
      %s133 = scalar_select %p130, %s131, %s132
      %p136 = pneg %p130
      %p137 = scmp.eq.s32.totalorder %s18, 1
      %p138 = por %p136, %p137
      %p139 = scmp.ne.s32.totalorder %s131, %s134
      %p140 = scmp.eq.s32.totalorder %s18, 0
      %p141 = por %p139, %p140
      %p142 = scmp.ne.s32.totalorder %s131, %s134
      %p143 = scmp.eq.s32.totalorder %s23, 1
      %p144 = por %p142, %p143
      %p145 = scmp.ne.s32.totalorder %s134, %s135
      %p146 = scmp.eq.s32.totalorder %s23, 0
      %p147 = por %p145, %p146
      %p148 = scmp.ne.s32.totalorder %s134, %s135
      %p149 = scmp.eq.s32.totalorder %s24, 1
      %p150 = por %p148, %p149
      %p152 = scmp.ne.s32.totalorder %s135, %s151
      %p153 = scmp.eq.s32.totalorder %s24, 0
      %p154 = por %p152, %p153
      %s155 = ssub.s32 %s25, %s37
      %s156 = ssub.s32 %s26, %s33
      %s157 = sor.u32 %s155, %s156
      %p158 = scmp.eq.s32.totalorder %s157, 0
      %s160 = sadd.s32 %s159, 1
      %s161 = scalar_select %p158, %s159, %s160
      %p164 = pneg %p158
      %p165 = scmp.eq.s32.totalorder %s18, 1
      %p166 = por %p164, %p165
      %p167 = scmp.ne.s32.totalorder %s159, %s162
      %p168 = scmp.eq.s32.totalorder %s18, 0
      %p169 = por %p167, %p168
      %p170 = scmp.ne.s32.totalorder %s159, %s162
      %p171 = scmp.eq.s32.totalorder %s23, 1
      %p172 = por %p170, %p171
      %p173 = scmp.ne.s32.totalorder %s162, %s163
      %p174 = scmp.eq.s32.totalorder %s23, 0
      %p175 = por %p173, %p174
      %p176 = scmp.ne.s32.totalorder %s162, %s163
      %p177 = scmp.eq.s32.totalorder %s24, 1
      %p178 = por %p176, %p177
      %p180 = scmp.ne.s32.totalorder %s163, %s179
      %p181 = scmp.eq.s32.totalorder %s24, 0
      %p182 = por %p180, %p181
      %p183 = scmp.le.s32.totalorder 1, %s18
      %p184 = scmp.lt.s32.totalorder %s18, 3
      %p185 = pnand %p183, %p184
      %p186 = pneg %p185
      // Predicated region
      $region9: #{conv3x3_s1_bn.1} parent=5 // pred_check
        _
      $region10: #{conv3x3_s1_bn.1} parent=5 // pred_check_branch
        %188 = sbr.rel (%p185) target = $region12
      $region11: #{conv3x3_s1_bn.1} parent=5 // pred_region
        %s189 = ssub.s32 %s18, 1
        // Predicated region
        $region13: #{conv3x3_s1_bn.1} parent=11 // pred_check
          %p190 = pneg %p77
        $region14: #{conv3x3_s1_bn.1} parent=11 // pred_check_branch
          %192 = sbr.rel (%p190) target = $region16
        $region15: #{conv3x3_s1_bn.1} parent=11 // pred_region
          _
        $region16: #{conv3x3_s1_bn.1} parent=11 // pred_fallthru
          _
        // Predicated region
        $region17: #{conv3x3_s1_bn.1} parent=11 // pred_check
          %p193 = pneg %p98
        $region18: #{conv3x3_s1_bn.1} parent=11 // pred_check_branch
          %195 = sbr.rel (%p193) target = $region20
        $region19: #{conv3x3_s1_bn.1} parent=11 // pred_region
          _
        $region20: #{conv3x3_s1_bn.1} parent=11 // pred_fallthru
          _
        // Predicated region
        $region21: #{conv3x3_s1_bn.1} parent=11 // pred_check
          %p196 = pneg %p119
        $region22: #{conv3x3_s1_bn.1} parent=11 // pred_check_branch
          %198 = sbr.rel (%p196) target = $region24
        $region23: #{conv3x3_s1_bn.1} parent=11 // pred_region
          _
        $region24: #{conv3x3_s1_bn.1} parent=11 // pred_fallthru
          _
      $region12: #{conv3x3_s1_bn.1} parent=5 // pred_fallthru
        _
      %p199 = scmp.lt.s32.totalorder %s18, 2
      // Predicated region
      $region25: #{conv3x3_s1_bn.1} parent=5 // pred_check
        %p200 = pneg %p199
      $region26: #{conv3x3_s1_bn.1} parent=5 // pred_check_branch
        %202 = sbr.rel (%p200) target = $region28
      $region27: #{conv3x3_s1_bn.1} parent=5 // pred_region
        // Predicated region
        $region29: #{conv3x3_s1_bn.1} parent=27 // pred_check
          %p203 = pneg %p50
        $region30: #{conv3x3_s1_bn.1} parent=27 // pred_check_branch
          %205 = sbr.rel (%p203) target = $region32
        $region31: #{conv3x3_s1_bn.1} parent=27 // pred_region
          %p206 = scmp.lt.s32.totalorder %s25, 1
          %s207 = scalar_select %p206, %s25, 1
          %s208 = smul.addr %s207, 54
          %s209 = smul.addr %s208, 4
          %s210 = scalar_lea.vmem %s0, %s209
        $region32: #{conv3x3_s1_bn.1} parent=27 // pred_fallthru
          _
      $region28: #{conv3x3_s1_bn.1} parent=5 // pred_fallthru
        _
      %p211 = scmp.le.s32.totalorder 1, %s18
      %p212 = scmp.lt.s32.totalorder %s18, 3
      %p213 = pnand %p211, %p212
      %p214 = pneg %p213
      // Predicated region
      $region33: #{conv3x3_s1_bn.1} parent=5 // pred_check
        _
      $region34: #{conv3x3_s1_bn.1} parent=5 // pred_check_branch
        %216 = sbr.rel (%p213) target = $region36
      $region35: #{conv3x3_s1_bn.1} parent=5 // pred_region
        %s217 = ssub.s32 %s18, 1
        %p218 = scmp.lt.s32.totalorder %s27, 1
        %s219 = scalar_select %p218, %s27, 1
        %s220 = smul.addr %s219, 54
        %s221 = smul.addr %s220, 4
        %s222 = scalar_lea.vmem %s0, %s221
        %p223 = pneg %p56
        %p224 = pneg %p53
        %p225 = pneg %p77
        %p226 = pneg %p74
        %p227 = pneg %p98
        %p228 = pneg %p95
        %p229 = pneg %p119
        %p230 = pneg %p116
        %p231 = pneg %p147
        %p232 = pneg %p144
        %s233 = sand.u32 %s134, 1
        %s234 = scalar_lea.sflag [#allocation4], %s233
        %s235 = sand.u32 %s134, 1
        %s236 = smul.addr %s235, 128
        %s237 = scalar_lea.vmem [#allocation3], %s236
        %p238 = pneg %p175
        %p239 = pneg %p172
        %s240 = sand.u32 %s162, 1
        %s241 = scalar_lea.sflag [#allocation6], %s240
        %s242 = sand.u32 %s162, 1
        %s243 = scalar_lea.vmem [#allocation5], %s242
        %p244 = scmp.lt.s32.totalorder %s27, 1
        %s245 = scalar_select %p244, %s27, 1
        %s246 = smul.addr %s245, 54
        %s247 = smul.addr %s246, 4
        %s248 = scalar_lea.vmem %s0, %s247
        %s249 = smul.u32 32, %s28
        %s251 = smul.u32 %s28, 16
        %s252 = smul.u32 %s251, 3
        %s253 = smul.addr %s252, 4
        %s254 = scalar_lea.vmem %s248, %s253
        %v255 = vld [vmem:[%s254] sm:$0xf]
        %v256 = vld [vmem:[%s254 + $0x4] sm:$0xf]
        %v257 = vld [vmem:[%s254 + $0xc] sm:$0xf]
        %v258 = vld [vmem:[%s254 + $0x10] sm:$0xf]
        %v259 = vld [vmem:[%s254 + $0x18] sm:$0xf]
        %v260 = vld [vmem:[%s254 + $0x1c] sm:$0xf]
        %v261 = vld [vmem:[%s254 + $0x24] sm:$0xf]
        %v262 = vld [vmem:[%s254 + $0x28] sm:$0xf]
        %v263 = vld [vmem:[%s254 + $0x30] sm:$0xf]
        %v264 = vld [vmem:[%s254 + $0x34] sm:$0xf]
        %v265 = vld [vmem:[%s254 + $0x3c] sm:$0xf]
        %v266 = vld [vmem:[%s254 + $0x40] sm:$0xf]
        %v267 = vld [vmem:[%s254 + $0x48] sm:$0xf]
        %v268 = vld [vmem:[%s254 + $0x4c] sm:$0xf]
        %v269 = vld [vmem:[%s254 + $0x54] sm:$0xf]
        %v270 = vld [vmem:[%s254 + $0x58] sm:$0xf]
        %v271 = vld [vmem:[%s254 + $0x60] sm:$0xf]
        %v272 = vld [vmem:[%s254 + $0x64] sm:$0xf]
        %v273 = vld [vmem:[%s254 + $0x6c] sm:$0xf]
        %v274 = vld [vmem:[%s254 + $0x70] sm:$0xf]
        %v275 = vld [vmem:[%s254 + $0x78] sm:$0xf]
        %v276 = vld [vmem:[%s254 + $0x7c] sm:$0xf]
        %v277 = vld [vmem:[%s254 + $0x84] sm:$0xf]
        %v278 = vld [vmem:[%s254 + $0x88] sm:$0xf]
        %v279 = vld [vmem:[%s254 + $0x90] sm:$0xf]
        %v280 = vld [vmem:[%s254 + $0x94] sm:$0xf]
        %v281 = vld [vmem:[%s254 + $0x9c] sm:$0xf]
        %v282 = vld [vmem:[%s254 + $0xa0] sm:$0xf]
        %v283 = vld [vmem:[%s254 + $0xa8] sm:$0xf]
        %v284 = vld [vmem:[%s254 + $0xac] sm:$0xf]
        %v285 = vld [vmem:[%s254 + $0xb4] sm:$0xf]
        %v286 = vld [vmem:[%s254 + $0xb8] sm:$0xf]
        %v319 = vunpack.c.l.b16 %v255
        %v320 = vunpack.c.l.b16 %v256
        %v321 = vunpack.c.l.b16 %v257
        %v322 = vunpack.c.l.b16 %v258
        %v323 = vunpack.c.l.b16 %v259
        %v324 = vunpack.c.l.b16 %v260
        %v325 = vunpack.c.l.b16 %v261
        %v326 = vunpack.c.l.b16 %v262
        %v327 = vunpack.c.l.b16 %v263
        %v328 = vunpack.c.l.b16 %v264
        %v329 = vunpack.c.l.b16 %v265
        %v330 = vunpack.c.l.b16 %v266
        %v331 = vunpack.c.l.b16 %v267
        %v332 = vunpack.c.l.b16 %v268
        %v333 = vunpack.c.l.b16 %v269
        %v334 = vunpack.c.l.b16 %v270
        %v335 = vunpack.c.l.b16 %v271
        %v336 = vunpack.c.l.b16 %v272
        %v337 = vunpack.c.l.b16 %v273
        %v338 = vunpack.c.l.b16 %v274
        %v339 = vunpack.c.l.b16 %v275
        %v340 = vunpack.c.l.b16 %v276
        %v341 = vunpack.c.l.b16 %v277
        %v342 = vunpack.c.l.b16 %v278
        %v343 = vunpack.c.l.b16 %v279
        %v344 = vunpack.c.l.b16 %v280
        %v345 = vunpack.c.l.b16 %v281
        %v346 = vunpack.c.l.b16 %v282
        %v347 = vunpack.c.l.b16 %v283
        %v348 = vunpack.c.l.b16 %v284
        %v349 = vunpack.c.l.b16 %v285
        %v350 = vunpack.c.l.b16 %v286
        %v351 = vpack.c.b16 %v320, %v319
        %v352 = vpack.c.b16 %v322, %v321
        %v353 = vpack.c.b16 %v324, %v323
        %v354 = vpack.c.b16 %v326, %v325
        %v355 = vpack.c.b16 %v328, %v327
        %v356 = vpack.c.b16 %v330, %v329
        %v357 = vpack.c.b16 %v332, %v331
        %v358 = vpack.c.b16 %v334, %v333
        %v359 = vpack.c.b16 %v336, %v335
        %v360 = vpack.c.b16 %v338, %v337
        %v361 = vpack.c.b16 %v340, %v339
        %v362 = vpack.c.b16 %v342, %v341
        %v363 = vpack.c.b16 %v344, %v343
        %v364 = vpack.c.b16 %v346, %v345
        %v365 = vpack.c.b16 %v348, %v347
        %v366 = vpack.c.b16 %v350, %v349
        %vm383 = vcmask 523264
        %384 = vst.msk [vmem:[#allocation2] sm:$0xff] %vm383, %v351
        %385 = vst.msk [vmem:[#allocation2 + $0x28] sm:$0xff] %vm383, %v352
        %386 = vst.msk [vmem:[#allocation2 + $0x50] sm:$0xff] %vm383, %v353
        %387 = vst.msk [vmem:[#allocation2 + $0x78] sm:$0xff] %vm383, %v354
        %388 = vst.msk [vmem:[#allocation2 + $0xa0] sm:$0xff] %vm383, %v355
        %389 = vst.msk [vmem:[#allocation2 + $0xc8] sm:$0xff] %vm383, %v356
        %390 = vst.msk [vmem:[#allocation2 + $0xf0] sm:$0xff] %vm383, %v357
        %391 = vst.msk [vmem:[#allocation2 + $0x118] sm:$0xff] %vm383, %v358
        %392 = vst.msk [vmem:[#allocation2 + $0x140] sm:$0xff] %vm383, %v359
        %393 = vst.msk [vmem:[#allocation2 + $0x168] sm:$0xff] %vm383, %v360
        %394 = vst.msk [vmem:[#allocation2 + $0x190] sm:$0xff] %vm383, %v361
        %395 = vst.msk [vmem:[#allocation2 + $0x1b8] sm:$0xff] %vm383, %v362
        %396 = vst.msk [vmem:[#allocation2 + $0x1e0] sm:$0xff] %vm383, %v363
        %397 = vst.msk [vmem:[#allocation2 + $0x208] sm:$0xff] %vm383, %v364
        %398 = vst.msk [vmem:[#allocation2 + $0x230] sm:$0xff] %vm383, %v365
        %399 = vst.msk [vmem:[#allocation2 + $0x258] sm:$0xff] %vm383, %v366
        %v400 = vld [vmem:[%s254] sm:$0xf]
        %v401 = vld [vmem:[%s254 + $0x4] sm:$0xf]
        %v402 = vld [vmem:[%s254 + $0x8] sm:$0x1]
        %v403 = vld [vmem:[%s254 + $0xc] sm:$0xf]
        %v404 = vld [vmem:[%s254 + $0x10] sm:$0xf]
        %v405 = vld [vmem:[%s254 + $0x14] sm:$0x1]
        %v406 = vld [vmem:[%s254 + $0x18] sm:$0xf]
        %v407 = vld [vmem:[%s254 + $0x1c] sm:$0xf]
        %v408 = vld [vmem:[%s254 + $0x20] sm:$0x1]
        %v409 = vld [vmem:[%s254 + $0x24] sm:$0xf]
        %v410 = vld [vmem:[%s254 + $0x28] sm:$0xf]
        %v411 = vld [vmem:[%s254 + $0x2c] sm:$0x1]
        %v412 = vld [vmem:[%s254 + $0x30] sm:$0xf]
        %v413 = vld [vmem:[%s254 + $0x34] sm:$0xf]
        %v414 = vld [vmem:[%s254 + $0x38] sm:$0x1]
        %v415 = vld [vmem:[%s254 + $0x3c] sm:$0xf]
        %v416 = vld [vmem:[%s254 + $0x40] sm:$0xf]
        %v417 = vld [vmem:[%s254 + $0x44] sm:$0x1]
        %v418 = vld [vmem:[%s254 + $0x48] sm:$0xf]
        %v419 = vld [vmem:[%s254 + $0x4c] sm:$0xf]
        %v420 = vld [vmem:[%s254 + $0x50] sm:$0x1]
        %v421 = vld [vmem:[%s254 + $0x54] sm:$0xf]
        %v422 = vld [vmem:[%s254 + $0x58] sm:$0xf]
        %v423 = vld [vmem:[%s254 + $0x5c] sm:$0x1]
        %v424 = vld [vmem:[%s254 + $0x60] sm:$0xf]
        %v425 = vld [vmem:[%s254 + $0x64] sm:$0xf]
        %v426 = vld [vmem:[%s254 + $0x68] sm:$0x1]
        %v427 = vld [vmem:[%s254 + $0x6c] sm:$0xf]
        %v428 = vld [vmem:[%s254 + $0x70] sm:$0xf]
        %v429 = vld [vmem:[%s254 + $0x74] sm:$0x1]
        %v430 = vld [vmem:[%s254 + $0x78] sm:$0xf]
        %v431 = vld [vmem:[%s254 + $0x7c] sm:$0xf]
        %v432 = vld [vmem:[%s254 + $0x80] sm:$0x1]
        %v433 = vld [vmem:[%s254 + $0x84] sm:$0xf]
        %v434 = vld [vmem:[%s254 + $0x88] sm:$0xf]
        %v435 = vld [vmem:[%s254 + $0x8c] sm:$0x1]
        %v436 = vld [vmem:[%s254 + $0x90] sm:$0xf]
        %v437 = vld [vmem:[%s254 + $0x94] sm:$0xf]
        %v438 = vld [vmem:[%s254 + $0x98] sm:$0x1]
        %v439 = vld [vmem:[%s254 + $0x9c] sm:$0xf]
        %v440 = vld [vmem:[%s254 + $0xa0] sm:$0xf]
        %v441 = vld [vmem:[%s254 + $0xa4] sm:$0x1]
        %v442 = vld [vmem:[%s254 + $0xa8] sm:$0xf]
        %v443 = vld [vmem:[%s254 + $0xac] sm:$0xf]
        %v444 = vld [vmem:[%s254 + $0xb0] sm:$0x1]
        %v445 = vld [vmem:[%s254 + $0xb4] sm:$0xf]
        %v446 = vld [vmem:[%s254 + $0xb8] sm:$0xf]
        %v447 = vld [vmem:[%s254 + $0xbc] sm:$0x1]
        %vm448 = vsmask.f32 3328
        %vm449 = vsmask.f32 7440
        %vm450 = vmor %vm448, %vm449
        %v452 = vshrl.u32 %v400, 16
        %v454 = vrot.slane %v452, 4
        %v455 = vshll.u32 %v400, 16
        %v457 = vrot.slane %v455, 5
        %v458 = vor.u32 %v454, %v457
        %v459 = vrot.slane %v458, 4
        %v461 = vshll.u32 %v401, 16
        %v463 = vrot.slane %v461, 5
        %v464 = vsel %vm450, %v459, %v463
        %v465 = vshrl.u32 %v401, 16
        %v467 = vrot.slane %v465, 4
        %v468 = vor.u32 %v467, %v463
        %v469 = vrot.slane %v468, 4
        %v471 = vshll.u32 %v402, 16
        %v473 = vrot.slane %v471, 5
        %v474 = vsel %vm450, %v469, %v473
        %v476 = vshrl.u32 %v403, 16
        %v478 = vrot.slane %v476, 4
        %v479 = vshll.u32 %v403, 16
        %v481 = vrot.slane %v479, 5
        %v482 = vor.u32 %v478, %v481
        %v483 = vrot.slane %v482, 4
        %v485 = vshll.u32 %v404, 16
        %v487 = vrot.slane %v485, 5
        %v488 = vsel %vm450, %v483, %v487
        %v489 = vshrl.u32 %v404, 16
        %v491 = vrot.slane %v489, 4
        %v492 = vor.u32 %v491, %v487
        %v493 = vrot.slane %v492, 4
        %v495 = vshll.u32 %v405, 16
        %v497 = vrot.slane %v495, 5
        %v498 = vsel %vm450, %v493, %v497
        %v500 = vshrl.u32 %v406, 16
        %v502 = vrot.slane %v500, 4
        %v503 = vshll.u32 %v406, 16
        %v505 = vrot.slane %v503, 5
        %v506 = vor.u32 %v502, %v505
        %v507 = vrot.slane %v506, 4
        %v509 = vshll.u32 %v407, 16
        %v511 = vrot.slane %v509, 5
        %v512 = vsel %vm450, %v507, %v511
        %v513 = vshrl.u32 %v407, 16
        %v515 = vrot.slane %v513, 4
        %v516 = vor.u32 %v515, %v511
        %v517 = vrot.slane %v516, 4
        %v519 = vshll.u32 %v408, 16
        %v521 = vrot.slane %v519, 5
        %v522 = vsel %vm450, %v517, %v521
        %v524 = vshrl.u32 %v409, 16
        %v526 = vrot.slane %v524, 4
        %v527 = vshll.u32 %v409, 16
        %v529 = vrot.slane %v527, 5
        %v530 = vor.u32 %v526, %v529
        %v531 = vrot.slane %v530, 4
        %v533 = vshll.u32 %v410, 16
        %v535 = vrot.slane %v533, 5
        %v536 = vsel %vm450, %v531, %v535
        %v537 = vshrl.u32 %v410, 16
        %v539 = vrot.slane %v537, 4
        %v540 = vor.u32 %v539, %v535
        %v541 = vrot.slane %v540, 4
        %v543 = vshll.u32 %v411, 16
        %v545 = vrot.slane %v543, 5
        %v546 = vsel %vm450, %v541, %v545
        %v548 = vshrl.u32 %v412, 16
        %v550 = vrot.slane %v548, 4
        %v551 = vshll.u32 %v412, 16
        %v553 = vrot.slane %v551, 5
        %v554 = vor.u32 %v550, %v553
        %v555 = vrot.slane %v554, 4
        %v557 = vshll.u32 %v413, 16
        %v559 = vrot.slane %v557, 5
        %v560 = vsel %vm450, %v555, %v559
        %v561 = vshrl.u32 %v413, 16
        %v563 = vrot.slane %v561, 4
        %v564 = vor.u32 %v563, %v559
        %v565 = vrot.slane %v564, 4
        %v567 = vshll.u32 %v414, 16
        %v569 = vrot.slane %v567, 5
        %v570 = vsel %vm450, %v565, %v569
        %v572 = vshrl.u32 %v415, 16
        %v574 = vrot.slane %v572, 4
        %v575 = vshll.u32 %v415, 16
        %v577 = vrot.slane %v575, 5
        %v578 = vor.u32 %v574, %v577
        %v579 = vrot.slane %v578, 4
        %v581 = vshll.u32 %v416, 16
        %v583 = vrot.slane %v581, 5
        %v584 = vsel %vm450, %v579, %v583
        %v585 = vshrl.u32 %v416, 16
        %v587 = vrot.slane %v585, 4
        %v588 = vor.u32 %v587, %v583
        %v589 = vrot.slane %v588, 4
        %v591 = vshll.u32 %v417, 16
        %v593 = vrot.slane %v591, 5
        %v594 = vsel %vm450, %v589, %v593
        %v596 = vshrl.u32 %v418, 16
        %v598 = vrot.slane %v596, 4
        %v599 = vshll.u32 %v418, 16
        %v601 = vrot.slane %v599, 5
        %v602 = vor.u32 %v598, %v601
        %v603 = vrot.slane %v602, 4
        %v605 = vshll.u32 %v419, 16
        %v607 = vrot.slane %v605, 5
        %v608 = vsel %vm450, %v603, %v607
        %v609 = vshrl.u32 %v419, 16
        %v611 = vrot.slane %v609, 4
        %v612 = vor.u32 %v611, %v607
        %v613 = vrot.slane %v612, 4
        %v615 = vshll.u32 %v420, 16
        %v617 = vrot.slane %v615, 5
        %v618 = vsel %vm450, %v613, %v617
        %v620 = vshrl.u32 %v421, 16
        %v622 = vrot.slane %v620, 4
        %v623 = vshll.u32 %v421, 16
        %v625 = vrot.slane %v623, 5
        %v626 = vor.u32 %v622, %v625
        %v627 = vrot.slane %v626, 4
        %v629 = vshll.u32 %v422, 16
        %v631 = vrot.slane %v629, 5
        %v632 = vsel %vm450, %v627, %v631
        %v633 = vshrl.u32 %v422, 16
        %v635 = vrot.slane %v633, 4
        %v636 = vor.u32 %v635, %v631
        %v637 = vrot.slane %v636, 4
        %v639 = vshll.u32 %v423, 16
        %v641 = vrot.slane %v639, 5
        %v642 = vsel %vm450, %v637, %v641
        %v644 = vshrl.u32 %v424, 16
        %v646 = vrot.slane %v644, 4
        %v647 = vshll.u32 %v424, 16
        %v649 = vrot.slane %v647, 5
        %v650 = vor.u32 %v646, %v649
        %v651 = vrot.slane %v650, 4
        %v653 = vshll.u32 %v425, 16
        %v655 = vrot.slane %v653, 5
        %v656 = vsel %vm450, %v651, %v655
        %v657 = vshrl.u32 %v425, 16
        %v659 = vrot.slane %v657, 4
        %v660 = vor.u32 %v659, %v655
        %v661 = vrot.slane %v660, 4
        %v663 = vshll.u32 %v426, 16
        %v665 = vrot.slane %v663, 5
        %v666 = vsel %vm450, %v661, %v665
        %v668 = vshrl.u32 %v427, 16
        %v670 = vrot.slane %v668, 4
        %v671 = vshll.u32 %v427, 16
        %v673 = vrot.slane %v671, 5
        %v674 = vor.u32 %v670, %v673
        %v675 = vrot.slane %v674, 4
        %v677 = vshll.u32 %v428, 16
        %v679 = vrot.slane %v677, 5
        %v680 = vsel %vm450, %v675, %v679
        %v681 = vshrl.u32 %v428, 16
        %v683 = vrot.slane %v681, 4
        %v684 = vor.u32 %v683, %v679
        %v685 = vrot.slane %v684, 4
        %v687 = vshll.u32 %v429, 16
        %v689 = vrot.slane %v687, 5
        %v690 = vsel %vm450, %v685, %v689
        %v692 = vshrl.u32 %v430, 16
        %v694 = vrot.slane %v692, 4
        %v695 = vshll.u32 %v430, 16
        %v697 = vrot.slane %v695, 5
        %v698 = vor.u32 %v694, %v697
        %v699 = vrot.slane %v698, 4
        %v701 = vshll.u32 %v431, 16
        %v703 = vrot.slane %v701, 5
        %v704 = vsel %vm450, %v699, %v703
        %v705 = vshrl.u32 %v431, 16
        %v707 = vrot.slane %v705, 4
        %v708 = vor.u32 %v707, %v703
        %v709 = vrot.slane %v708, 4
        %v711 = vshll.u32 %v432, 16
        %v713 = vrot.slane %v711, 5
        %v714 = vsel %vm450, %v709, %v713
        %v716 = vshrl.u32 %v433, 16
        %v718 = vrot.slane %v716, 4
        %v719 = vshll.u32 %v433, 16
        %v721 = vrot.slane %v719, 5
        %v722 = vor.u32 %v718, %v721
        %v723 = vrot.slane %v722, 4
        %v725 = vshll.u32 %v434, 16
        %v727 = vrot.slane %v725, 5
        %v728 = vsel %vm450, %v723, %v727
        %v729 = vshrl.u32 %v434, 16
        %v731 = vrot.slane %v729, 4
        %v732 = vor.u32 %v731, %v727
        %v733 = vrot.slane %v732, 4
        %v735 = vshll.u32 %v435, 16
        %v737 = vrot.slane %v735, 5
        %v738 = vsel %vm450, %v733, %v737
        %v740 = vshrl.u32 %v436, 16
        %v742 = vrot.slane %v740, 4
        %v743 = vshll.u32 %v436, 16
        %v745 = vrot.slane %v743, 5
        %v746 = vor.u32 %v742, %v745
        %v747 = vrot.slane %v746, 4
        %v749 = vshll.u32 %v437, 16
        %v751 = vrot.slane %v749, 5
        %v752 = vsel %vm450, %v747, %v751
        %v753 = vshrl.u32 %v437, 16
        %v755 = vrot.slane %v753, 4
        %v756 = vor.u32 %v755, %v751
        %v757 = vrot.slane %v756, 4
        %v759 = vshll.u32 %v438, 16
        %v761 = vrot.slane %v759, 5
        %v762 = vsel %vm450, %v757, %v761
        %v764 = vshrl.u32 %v439, 16
        %v766 = vrot.slane %v764, 4
        %v767 = vshll.u32 %v439, 16
        %v769 = vrot.slane %v767, 5
        %v770 = vor.u32 %v766, %v769
        %v771 = vrot.slane %v770, 4
        %v773 = vshll.u32 %v440, 16
        %v775 = vrot.slane %v773, 5
        %v776 = vsel %vm450, %v771, %v775
        %v777 = vshrl.u32 %v440, 16
        %v779 = vrot.slane %v777, 4
        %v780 = vor.u32 %v779, %v775
        %v781 = vrot.slane %v780, 4
        %v783 = vshll.u32 %v441, 16
        %v785 = vrot.slane %v783, 5
        %v786 = vsel %vm450, %v781, %v785
        %v788 = vshrl.u32 %v442, 16
        %v790 = vrot.slane %v788, 4
        %v791 = vshll.u32 %v442, 16
        %v793 = vrot.slane %v791, 5
        %v794 = vor.u32 %v790, %v793
        %v795 = vrot.slane %v794, 4
        %v797 = vshll.u32 %v443, 16
        %v799 = vrot.slane %v797, 5
        %v800 = vsel %vm450, %v795, %v799
        %v801 = vshrl.u32 %v443, 16
        %v803 = vrot.slane %v801, 4
        %v804 = vor.u32 %v803, %v799
        %v805 = vrot.slane %v804, 4
        %v807 = vshll.u32 %v444, 16
        %v809 = vrot.slane %v807, 5
        %v810 = vsel %vm450, %v805, %v809
        %v812 = vshrl.u32 %v445, 16
        %v814 = vrot.slane %v812, 4
        %v815 = vshll.u32 %v445, 16
        %v817 = vrot.slane %v815, 5
        %v818 = vor.u32 %v814, %v817
        %v819 = vrot.slane %v818, 4
        %v821 = vshll.u32 %v446, 16
        %v823 = vrot.slane %v821, 5
        %v824 = vsel %vm450, %v819, %v823
        %v825 = vshrl.u32 %v446, 16
        %v827 = vrot.slane %v825, 4
        %v828 = vor.u32 %v827, %v823
        %v829 = vrot.slane %v828, 4
        %v831 = vshll.u32 %v447, 16
        %v833 = vrot.slane %v831, 5
        %v834 = vsel %vm450, %v829, %v833
        %v835 = vunpack.c.l.b16 %v464
        %v836 = vunpack.c.l.b16 %v474
        %v837 = vunpack.c.l.b16 %v488
        %v838 = vunpack.c.l.b16 %v498
        %v839 = vunpack.c.l.b16 %v512
        %v840 = vunpack.c.l.b16 %v522
        %v841 = vunpack.c.l.b16 %v536
        %v842 = vunpack.c.l.b16 %v546
        %v843 = vunpack.c.l.b16 %v560
        %v844 = vunpack.c.l.b16 %v570
        %v845 = vunpack.c.l.b16 %v584
        %v846 = vunpack.c.l.b16 %v594
        %v847 = vunpack.c.l.b16 %v608
        %v848 = vunpack.c.l.b16 %v618
        %v849 = vunpack.c.l.b16 %v632
        %v850 = vunpack.c.l.b16 %v642
        %v851 = vunpack.c.l.b16 %v656
        %v852 = vunpack.c.l.b16 %v666
        %v853 = vunpack.c.l.b16 %v680
        %v854 = vunpack.c.l.b16 %v690
        %v855 = vunpack.c.l.b16 %v704
        %v856 = vunpack.c.l.b16 %v714
        %v857 = vunpack.c.l.b16 %v728
        %v858 = vunpack.c.l.b16 %v738
        %v859 = vunpack.c.l.b16 %v752
        %v860 = vunpack.c.l.b16 %v762
        %v861 = vunpack.c.l.b16 %v776
        %v862 = vunpack.c.l.b16 %v786
        %v863 = vunpack.c.l.b16 %v800
        %v864 = vunpack.c.l.b16 %v810
        %v865 = vunpack.c.l.b16 %v824
        %v866 = vunpack.c.l.b16 %v834
        %v867 = vpack.c.b16 %v836, %v835
        %v868 = vpack.c.b16 %v838, %v837
        %v869 = vpack.c.b16 %v840, %v839
        %v870 = vpack.c.b16 %v842, %v841
        %v871 = vpack.c.b16 %v844, %v843
        %v872 = vpack.c.b16 %v846, %v845
        %v873 = vpack.c.b16 %v848, %v847
        %v874 = vpack.c.b16 %v850, %v849
        %v875 = vpack.c.b16 %v852, %v851
        %v876 = vpack.c.b16 %v854, %v853
        %v877 = vpack.c.b16 %v856, %v855
        %v878 = vpack.c.b16 %v858, %v857
        %v879 = vpack.c.b16 %v860, %v859
        %v880 = vpack.c.b16 %v862, %v861
        %v881 = vpack.c.b16 %v864, %v863
        %v882 = vpack.c.b16 %v866, %v865
        %883 = vrot.lane.b32.xlu0 %v867, 64
        %v884 = vpop.permute.xlu0 %883
        %885 = vrot.lane.b32.xlu0 %v868, 64
        %v886 = vpop.permute.xlu0 %885
        %887 = vrot.lane.b32.xlu0 %v869, 64
        %v888 = vpop.permute.xlu0 %887
        %889 = vrot.lane.b32.xlu0 %v870, 64
        %v890 = vpop.permute.xlu0 %889
        %891 = vrot.lane.b32.xlu0 %v871, 64
        %v892 = vpop.permute.xlu0 %891
        %893 = vrot.lane.b32.xlu0 %v872, 64
        %v894 = vpop.permute.xlu0 %893
        %895 = vrot.lane.b32.xlu0 %v873, 64
        %v896 = vpop.permute.xlu0 %895
        %897 = vrot.lane.b32.xlu0 %v874, 64
        %v898 = vpop.permute.xlu0 %897
        %899 = vrot.lane.b32.xlu0 %v875, 64
        %v900 = vpop.permute.xlu0 %899
        %901 = vrot.lane.b32.xlu0 %v876, 64
        %v902 = vpop.permute.xlu0 %901
        %903 = vrot.lane.b32.xlu0 %v877, 64
        %v904 = vpop.permute.xlu0 %903
        %905 = vrot.lane.b32.xlu0 %v878, 64
        %v906 = vpop.permute.xlu0 %905
        %907 = vrot.lane.b32.xlu0 %v879, 64
        %v908 = vpop.permute.xlu0 %907
        %909 = vrot.lane.b32.xlu0 %v880, 64
        %v910 = vpop.permute.xlu0 %909
        %911 = vrot.lane.b32.xlu0 %v881, 64
        %v912 = vpop.permute.xlu0 %911
        %913 = vrot.lane.b32.xlu0 %v882, 64
        %v914 = vpop.permute.xlu0 %913
        %vm931 = vcmask 1048064
        %932 = vst.msk [vmem:[#allocation2] sm:$0xff] %vm931, %v884
        %933 = vst.msk [vmem:[#allocation2 + $0x28] sm:$0xff] %vm931, %v886
        %934 = vst.msk [vmem:[#allocation2 + $0x50] sm:$0xff] %vm931, %v888
        %935 = vst.msk [vmem:[#allocation2 + $0x78] sm:$0xff] %vm931, %v890
        %936 = vst.msk [vmem:[#allocation2 + $0xa0] sm:$0xff] %vm931, %v892
        %937 = vst.msk [vmem:[#allocation2 + $0xc8] sm:$0xff] %vm931, %v894
        %938 = vst.msk [vmem:[#allocation2 + $0xf0] sm:$0xff] %vm931, %v896
        %939 = vst.msk [vmem:[#allocation2 + $0x118] sm:$0xff] %vm931, %v898
        %940 = vst.msk [vmem:[#allocation2 + $0x140] sm:$0xff] %vm931, %v900
        %941 = vst.msk [vmem:[#allocation2 + $0x168] sm:$0xff] %vm931, %v902
        %942 = vst.msk [vmem:[#allocation2 + $0x190] sm:$0xff] %vm931, %v904
        %943 = vst.msk [vmem:[#allocation2 + $0x1b8] sm:$0xff] %vm931, %v906
        %944 = vst.msk [vmem:[#allocation2 + $0x1e0] sm:$0xff] %vm931, %v908
        %945 = vst.msk [vmem:[#allocation2 + $0x208] sm:$0xff] %vm931, %v910
        %946 = vst.msk [vmem:[#allocation2 + $0x230] sm:$0xff] %vm931, %v912
        %947 = vst.msk [vmem:[#allocation2 + $0x258] sm:$0xff] %vm931, %v914
        %v948 = vld [vmem:[%s254] sm:$0xe]
        %v949 = vld [vmem:[%s254 + $0x4] sm:$0xf]
        %v950 = vld [vmem:[%s254 + $0x8] sm:$0x1]
        %v951 = vld [vmem:[%s254 + $0xc] sm:$0xe]
        %v952 = vld [vmem:[%s254 + $0x10] sm:$0xf]
        %v953 = vld [vmem:[%s254 + $0x14] sm:$0x1]
        %v954 = vld [vmem:[%s254 + $0x18] sm:$0xe]
        %v955 = vld [vmem:[%s254 + $0x1c] sm:$0xf]
        %v956 = vld [vmem:[%s254 + $0x20] sm:$0x1]
        %v957 = vld [vmem:[%s254 + $0x24] sm:$0xe]
        %v958 = vld [vmem:[%s254 + $0x28] sm:$0xf]
        %v959 = vld [vmem:[%s254 + $0x2c] sm:$0x1]
        %v960 = vld [vmem:[%s254 + $0x30] sm:$0xe]
        %v961 = vld [vmem:[%s254 + $0x34] sm:$0xf]
        %v962 = vld [vmem:[%s254 + $0x38] sm:$0x1]
        %v963 = vld [vmem:[%s254 + $0x3c] sm:$0xe]
        %v964 = vld [vmem:[%s254 + $0x40] sm:$0xf]
        %v965 = vld [vmem:[%s254 + $0x44] sm:$0x1]
        %v966 = vld [vmem:[%s254 + $0x48] sm:$0xe]
        %v967 = vld [vmem:[%s254 + $0x4c] sm:$0xf]
        %v968 = vld [vmem:[%s254 + $0x50] sm:$0x1]
        %v969 = vld [vmem:[%s254 + $0x54] sm:$0xe]
        %v970 = vld [vmem:[%s254 + $0x58] sm:$0xf]
        %v971 = vld [vmem:[%s254 + $0x5c] sm:$0x1]
        %v972 = vld [vmem:[%s254 + $0x60] sm:$0xe]
        %v973 = vld [vmem:[%s254 + $0x64] sm:$0xf]
        %v974 = vld [vmem:[%s254 + $0x68] sm:$0x1]
        %v975 = vld [vmem:[%s254 + $0x6c] sm:$0xe]
        %v976 = vld [vmem:[%s254 + $0x70] sm:$0xf]
        %v977 = vld [vmem:[%s254 + $0x74] sm:$0x1]
        %v978 = vld [vmem:[%s254 + $0x78] sm:$0xe]
        %v979 = vld [vmem:[%s254 + $0x7c] sm:$0xf]
        %v980 = vld [vmem:[%s254 + $0x80] sm:$0x1]
        %v981 = vld [vmem:[%s254 + $0x84] sm:$0xe]
        %v982 = vld [vmem:[%s254 + $0x88] sm:$0xf]
        %v983 = vld [vmem:[%s254 + $0x8c] sm:$0x1]
        %v984 = vld [vmem:[%s254 + $0x90] sm:$0xe]
        %v985 = vld [vmem:[%s254 + $0x94] sm:$0xf]
        %v986 = vld [vmem:[%s254 + $0x98] sm:$0x1]
        %v987 = vld [vmem:[%s254 + $0x9c] sm:$0xe]
        %v988 = vld [vmem:[%s254 + $0xa0] sm:$0xf]
        %v989 = vld [vmem:[%s254 + $0xa4] sm:$0x1]
        %v990 = vld [vmem:[%s254 + $0xa8] sm:$0xe]
        %v991 = vld [vmem:[%s254 + $0xac] sm:$0xf]
        %v992 = vld [vmem:[%s254 + $0xb0] sm:$0x1]
        %v993 = vld [vmem:[%s254 + $0xb4] sm:$0xe]
        %v994 = vld [vmem:[%s254 + $0xb8] sm:$0xf]
        %v995 = vld [vmem:[%s254 + $0xbc] sm:$0x1]
        %vm1044 = vcmask 1042432
        %vm1045 = vcmask 1046532
        %vm1046 = vmor %vm1044, %vm1045
        %v1047 = vrot.slane %v948, 5
        %v1048 = vrot.slane %v1047, 4
        %v1049 = vrot.slane %v949, 5
        %v1050 = vsel %vm1046, %v1048, %v1049
        %v1051 = vrot.slane %v1049, 4
        %v1052 = vrot.slane %v950, 5
        %v1053 = vsel %vm1046, %v1051, %v1052
        %v1054 = vrot.slane %v951, 5
        %v1055 = vrot.slane %v1054, 4
        %v1056 = vrot.slane %v952, 5
        %v1057 = vsel %vm1046, %v1055, %v1056
        %v1058 = vrot.slane %v1056, 4
        %v1059 = vrot.slane %v953, 5
        %v1060 = vsel %vm1046, %v1058, %v1059
        %v1061 = vrot.slane %v954, 5
        %v1062 = vrot.slane %v1061, 4
        %v1063 = vrot.slane %v955, 5
        %v1064 = vsel %vm1046, %v1062, %v1063
        %v1065 = vrot.slane %v1063, 4
        %v1066 = vrot.slane %v956, 5
        %v1067 = vsel %vm1046, %v1065, %v1066
        %v1068 = vrot.slane %v957, 5
        %v1069 = vrot.slane %v1068, 4
        %v1070 = vrot.slane %v958, 5
        %v1071 = vsel %vm1046, %v1069, %v1070
        %v1072 = vrot.slane %v1070, 4
        %v1073 = vrot.slane %v959, 5
        %v1074 = vsel %vm1046, %v1072, %v1073
        %v1075 = vrot.slane %v960, 5
        %v1076 = vrot.slane %v1075, 4
        %v1077 = vrot.slane %v961, 5
        %v1078 = vsel %vm1046, %v1076, %v1077
        %v1079 = vrot.slane %v1077, 4
        %v1080 = vrot.slane %v962, 5
        %v1081 = vsel %vm1046, %v1079, %v1080
        %v1082 = vrot.slane %v963, 5
        %v1083 = vrot.slane %v1082, 4
        %v1084 = vrot.slane %v964, 5
        %v1085 = vsel %vm1046, %v1083, %v1084
        %v1086 = vrot.slane %v1084, 4
        %v1087 = vrot.slane %v965, 5
        %v1088 = vsel %vm1046, %v1086, %v1087
        %v1089 = vrot.slane %v966, 5
        %v1090 = vrot.slane %v1089, 4
        %v1091 = vrot.slane %v967, 5
        %v1092 = vsel %vm1046, %v1090, %v1091
        %v1093 = vrot.slane %v1091, 4
        %v1094 = vrot.slane %v968, 5
        %v1095 = vsel %vm1046, %v1093, %v1094
        %v1096 = vrot.slane %v969, 5
        %v1097 = vrot.slane %v1096, 4
        %v1098 = vrot.slane %v970, 5
        %v1099 = vsel %vm1046, %v1097, %v1098
        %v1100 = vrot.slane %v1098, 4
        %v1101 = vrot.slane %v971, 5
        %v1102 = vsel %vm1046, %v1100, %v1101
        %v1103 = vrot.slane %v972, 5
        %v1104 = vrot.slane %v1103, 4
        %v1105 = vrot.slane %v973, 5
        %v1106 = vsel %vm1046, %v1104, %v1105
        %v1107 = vrot.slane %v1105, 4
        %v1108 = vrot.slane %v974, 5
        %v1109 = vsel %vm1046, %v1107, %v1108
        %v1110 = vrot.slane %v975, 5
        %v1111 = vrot.slane %v1110, 4
        %v1112 = vrot.slane %v976, 5
        %v1113 = vsel %vm1046, %v1111, %v1112
        %v1114 = vrot.slane %v1112, 4
        %v1115 = vrot.slane %v977, 5
        %v1116 = vsel %vm1046, %v1114, %v1115
        %v1117 = vrot.slane %v978, 5
        %v1118 = vrot.slane %v1117, 4
        %v1119 = vrot.slane %v979, 5
        %v1120 = vsel %vm1046, %v1118, %v1119
        %v1121 = vrot.slane %v1119, 4
        %v1122 = vrot.slane %v980, 5
        %v1123 = vsel %vm1046, %v1121, %v1122
        %v1124 = vrot.slane %v981, 5
        %v1125 = vrot.slane %v1124, 4
        %v1126 = vrot.slane %v982, 5
        %v1127 = vsel %vm1046, %v1125, %v1126
        %v1128 = vrot.slane %v1126, 4
        %v1129 = vrot.slane %v983, 5
        %v1130 = vsel %vm1046, %v1128, %v1129
        %v1131 = vrot.slane %v984, 5
        %v1132 = vrot.slane %v1131, 4
        %v1133 = vrot.slane %v985, 5
        %v1134 = vsel %vm1046, %v1132, %v1133
        %v1135 = vrot.slane %v1133, 4
        %v1136 = vrot.slane %v986, 5
        %v1137 = vsel %vm1046, %v1135, %v1136
        %v1138 = vrot.slane %v987, 5
        %v1139 = vrot.slane %v1138, 4
        %v1140 = vrot.slane %v988, 5
        %v1141 = vsel %vm1046, %v1139, %v1140
        %v1142 = vrot.slane %v1140, 4
        %v1143 = vrot.slane %v989, 5
        %v1144 = vsel %vm1046, %v1142, %v1143
        %v1145 = vrot.slane %v990, 5
        %v1146 = vrot.slane %v1145, 4
        %v1147 = vrot.slane %v991, 5
        %v1148 = vsel %vm1046, %v1146, %v1147
        %v1149 = vrot.slane %v1147, 4
        %v1150 = vrot.slane %v992, 5
        %v1151 = vsel %vm1046, %v1149, %v1150
        %v1152 = vrot.slane %v993, 5
        %v1153 = vrot.slane %v1152, 4
        %v1154 = vrot.slane %v994, 5
        %v1155 = vsel %vm1046, %v1153, %v1154
        %v1156 = vrot.slane %v1154, 4
        %v1157 = vrot.slane %v995, 5
        %v1158 = vsel %vm1046, %v1156, %v1157
        %v1159 = vunpack.c.l.b16 %v1050
        %v1160 = vunpack.c.l.b16 %v1053
        %v1161 = vunpack.c.l.b16 %v1057
        %v1162 = vunpack.c.l.b16 %v1060
        %v1163 = vunpack.c.l.b16 %v1064
        %v1164 = vunpack.c.l.b16 %v1067
        %v1165 = vunpack.c.l.b16 %v1071
        %v1166 = vunpack.c.l.b16 %v1074
        %v1167 = vunpack.c.l.b16 %v1078
        %v1168 = vunpack.c.l.b16 %v1081
        %v1169 = vunpack.c.l.b16 %v1085
        %v1170 = vunpack.c.l.b16 %v1088
        %v1171 = vunpack.c.l.b16 %v1092
        %v1172 = vunpack.c.l.b16 %v1095
        %v1173 = vunpack.c.l.b16 %v1099
        %v1174 = vunpack.c.l.b16 %v1102
        %v1175 = vunpack.c.l.b16 %v1106
        %v1176 = vunpack.c.l.b16 %v1109
        %v1177 = vunpack.c.l.b16 %v1113
        %v1178 = vunpack.c.l.b16 %v1116
        %v1179 = vunpack.c.l.b16 %v1120
        %v1180 = vunpack.c.l.b16 %v1123
        %v1181 = vunpack.c.l.b16 %v1127
        %v1182 = vunpack.c.l.b16 %v1130
        %v1183 = vunpack.c.l.b16 %v1134
        %v1184 = vunpack.c.l.b16 %v1137
        %v1185 = vunpack.c.l.b16 %v1141
        %v1186 = vunpack.c.l.b16 %v1144
        %v1187 = vunpack.c.l.b16 %v1148
        %v1188 = vunpack.c.l.b16 %v1151
        %v1189 = vunpack.c.l.b16 %v1155
        %v1190 = vunpack.c.l.b16 %v1158
        %v1191 = vpack.c.b16 %v1160, %v1159
        %v1192 = vpack.c.b16 %v1162, %v1161
        %v1193 = vpack.c.b16 %v1164, %v1163
        %v1194 = vpack.c.b16 %v1166, %v1165
        %v1195 = vpack.c.b16 %v1168, %v1167
        %v1196 = vpack.c.b16 %v1170, %v1169
        %v1197 = vpack.c.b16 %v1172, %v1171
        %v1198 = vpack.c.b16 %v1174, %v1173
        %v1199 = vpack.c.b16 %v1176, %v1175
        %v1200 = vpack.c.b16 %v1178, %v1177
        %v1201 = vpack.c.b16 %v1180, %v1179
        %v1202 = vpack.c.b16 %v1182, %v1181
        %v1203 = vpack.c.b16 %v1184, %v1183
        %v1204 = vpack.c.b16 %v1186, %v1185
        %v1205 = vpack.c.b16 %v1188, %v1187
        %v1206 = vpack.c.b16 %v1190, %v1189
        %1223 = vst.msk [vmem:[#allocation2 + $0x8] sm:$0xff] %vm383, %v1191
        %1224 = vst.msk [vmem:[#allocation2 + $0x30] sm:$0xff] %vm383, %v1192
        %1225 = vst.msk [vmem:[#allocation2 + $0x58] sm:$0xff] %vm383, %v1193
        %1226 = vst.msk [vmem:[#allocation2 + $0x80] sm:$0xff] %vm383, %v1194
        %1227 = vst.msk [vmem:[#allocation2 + $0xa8] sm:$0xff] %vm383, %v1195
        %1228 = vst.msk [vmem:[#allocation2 + $0xd0] sm:$0xff] %vm383, %v1196
        %1229 = vst.msk [vmem:[#allocation2 + $0xf8] sm:$0xff] %vm383, %v1197
        %1230 = vst.msk [vmem:[#allocation2 + $0x120] sm:$0xff] %vm383, %v1198
        %1231 = vst.msk [vmem:[#allocation2 + $0x148] sm:$0xff] %vm383, %v1199
        %1232 = vst.msk [vmem:[#allocation2 + $0x170] sm:$0xff] %vm383, %v1200
        %1233 = vst.msk [vmem:[#allocation2 + $0x198] sm:$0xff] %vm383, %v1201
        %1234 = vst.msk [vmem:[#allocation2 + $0x1c0] sm:$0xff] %vm383, %v1202
        %1235 = vst.msk [vmem:[#allocation2 + $0x1e8] sm:$0xff] %vm383, %v1203
        %1236 = vst.msk [vmem:[#allocation2 + $0x210] sm:$0xff] %vm383, %v1204
        %1237 = vst.msk [vmem:[#allocation2 + $0x238] sm:$0xff] %vm383, %v1205
        %1238 = vst.msk [vmem:[#allocation2 + $0x260] sm:$0xff] %vm383, %v1206
        %s1239 = sadd.s32 %s251, 1
        %s1240 = smul.u32 %s1239, 3
        %s1241 = smul.addr %s1240, 4
        %s1242 = scalar_lea.vmem %s248, %s1241
        %v1243 = vld [vmem:[%s1242] sm:$0xf]
        %v1244 = vld [vmem:[%s1242 + $0x4] sm:$0xf]
        %v1245 = vld [vmem:[%s1242 + $0xc] sm:$0xf]
        %v1246 = vld [vmem:[%s1242 + $0x10] sm:$0xf]
        %v1247 = vld [vmem:[%s1242 + $0x18] sm:$0xf]
        %v1248 = vld [vmem:[%s1242 + $0x1c] sm:$0xf]
        %v1249 = vld [vmem:[%s1242 + $0x24] sm:$0xf]
        %v1250 = vld [vmem:[%s1242 + $0x28] sm:$0xf]
        %v1251 = vld [vmem:[%s1242 + $0x30] sm:$0xf]
        %v1252 = vld [vmem:[%s1242 + $0x34] sm:$0xf]
        %v1253 = vld [vmem:[%s1242 + $0x3c] sm:$0xf]
        %v1254 = vld [vmem:[%s1242 + $0x40] sm:$0xf]
        %v1255 = vld [vmem:[%s1242 + $0x48] sm:$0xf]
        %v1256 = vld [vmem:[%s1242 + $0x4c] sm:$0xf]
        %v1257 = vld [vmem:[%s1242 + $0x54] sm:$0xf]
        %v1258 = vld [vmem:[%s1242 + $0x58] sm:$0xf]
        %v1259 = vld [vmem:[%s1242 + $0x60] sm:$0xf]
        %v1260 = vld [vmem:[%s1242 + $0x64] sm:$0xf]
        %v1261 = vld [vmem:[%s1242 + $0x6c] sm:$0xf]
        %v1262 = vld [vmem:[%s1242 + $0x70] sm:$0xf]
        %v1263 = vld [vmem:[%s1242 + $0x78] sm:$0xf]
        %v1264 = vld [vmem:[%s1242 + $0x7c] sm:$0xf]
        %v1265 = vld [vmem:[%s1242 + $0x84] sm:$0xf]
        %v1266 = vld [vmem:[%s1242 + $0x88] sm:$0xf]
        %v1267 = vld [vmem:[%s1242 + $0x90] sm:$0xf]
        %v1268 = vld [vmem:[%s1242 + $0x94] sm:$0xf]
        %v1269 = vld [vmem:[%s1242 + $0x9c] sm:$0xf]
        %v1270 = vld [vmem:[%s1242 + $0xa0] sm:$0xf]
        %v1271 = vld [vmem:[%s1242 + $0xa8] sm:$0xf]
        %v1272 = vld [vmem:[%s1242 + $0xac] sm:$0xf]
        %v1273 = vld [vmem:[%s1242 + $0xb4] sm:$0xf]
        %v1274 = vld [vmem:[%s1242 + $0xb8] sm:$0xf]
        %v1307 = vunpack.c.l.b16 %v1243
        %v1308 = vunpack.c.l.b16 %v1244
        %v1309 = vunpack.c.l.b16 %v1245
        %v1310 = vunpack.c.l.b16 %v1246
        %v1311 = vunpack.c.l.b16 %v1247
        %v1312 = vunpack.c.l.b16 %v1248
        %v1313 = vunpack.c.l.b16 %v1249
        %v1314 = vunpack.c.l.b16 %v1250
        %v1315 = vunpack.c.l.b16 %v1251
        %v1316 = vunpack.c.l.b16 %v1252
        %v1317 = vunpack.c.l.b16 %v1253
        %v1318 = vunpack.c.l.b16 %v1254
        %v1319 = vunpack.c.l.b16 %v1255
        %v1320 = vunpack.c.l.b16 %v1256
        %v1321 = vunpack.c.l.b16 %v1257
        %v1322 = vunpack.c.l.b16 %v1258
        %v1323 = vunpack.c.l.b16 %v1259
        %v1324 = vunpack.c.l.b16 %v1260
        %v1325 = vunpack.c.l.b16 %v1261
        %v1326 = vunpack.c.l.b16 %v1262
        %v1327 = vunpack.c.l.b16 %v1263
        %v1328 = vunpack.c.l.b16 %v1264
        %v1329 = vunpack.c.l.b16 %v1265
        %v1330 = vunpack.c.l.b16 %v1266
        %v1331 = vunpack.c.l.b16 %v1267
        %v1332 = vunpack.c.l.b16 %v1268
        %v1333 = vunpack.c.l.b16 %v1269
        %v1334 = vunpack.c.l.b16 %v1270
        %v1335 = vunpack.c.l.b16 %v1271
        %v1336 = vunpack.c.l.b16 %v1272
        %v1337 = vunpack.c.l.b16 %v1273
        %v1338 = vunpack.c.l.b16 %v1274
        %v1339 = vpack.c.b16 %v1308, %v1307
        %v1340 = vpack.c.b16 %v1310, %v1309
        %v1341 = vpack.c.b16 %v1312, %v1311
        %v1342 = vpack.c.b16 %v1314, %v1313
        %v1343 = vpack.c.b16 %v1316, %v1315
        %v1344 = vpack.c.b16 %v1318, %v1317
        %v1345 = vpack.c.b16 %v1320, %v1319
        %v1346 = vpack.c.b16 %v1322, %v1321
        %v1347 = vpack.c.b16 %v1324, %v1323
        %v1348 = vpack.c.b16 %v1326, %v1325
        %v1349 = vpack.c.b16 %v1328, %v1327
        %v1350 = vpack.c.b16 %v1330, %v1329
        %v1351 = vpack.c.b16 %v1332, %v1331
        %v1352 = vpack.c.b16 %v1334, %v1333
        %v1353 = vpack.c.b16 %v1336, %v1335
        %v1354 = vpack.c.b16 %v1338, %v1337
        %1355 = vrot.lane.b32.xlu0 %v1339, 64
        %v1356 = vpop.permute.xlu0 %1355
        %1357 = vrot.lane.b32.xlu0 %v1340, 64
        %v1358 = vpop.permute.xlu0 %1357
        %1359 = vrot.lane.b32.xlu0 %v1341, 64
        %v1360 = vpop.permute.xlu0 %1359
        %1361 = vrot.lane.b32.xlu0 %v1342, 64
        %v1362 = vpop.permute.xlu0 %1361
        %1363 = vrot.lane.b32.xlu0 %v1343, 64
        %v1364 = vpop.permute.xlu0 %1363
        %1365 = vrot.lane.b32.xlu0 %v1344, 64
        %v1366 = vpop.permute.xlu0 %1365
        %1367 = vrot.lane.b32.xlu0 %v1345, 64
        %v1368 = vpop.permute.xlu0 %1367
        %1369 = vrot.lane.b32.xlu0 %v1346, 64
        %v1370 = vpop.permute.xlu0 %1369
        %1371 = vrot.lane.b32.xlu0 %v1347, 64
        %v1372 = vpop.permute.xlu0 %1371
        %1373 = vrot.lane.b32.xlu0 %v1348, 64
        %v1374 = vpop.permute.xlu0 %1373
        %1375 = vrot.lane.b32.xlu0 %v1349, 64
        %v1376 = vpop.permute.xlu0 %1375
        %1377 = vrot.lane.b32.xlu0 %v1350, 64
        %v1378 = vpop.permute.xlu0 %1377
        %1379 = vrot.lane.b32.xlu0 %v1351, 64
        %v1380 = vpop.permute.xlu0 %1379
        %1381 = vrot.lane.b32.xlu0 %v1352, 64
        %v1382 = vpop.permute.xlu0 %1381
        %1383 = vrot.lane.b32.xlu0 %v1353, 64
        %v1384 = vpop.permute.xlu0 %1383
        %1385 = vrot.lane.b32.xlu0 %v1354, 64
        %v1386 = vpop.permute.xlu0 %1385
        %1403 = vst.msk [vmem:[#allocation2 + $0x8] sm:$0xff] %vm931, %v1356
        %1404 = vst.msk [vmem:[#allocation2 + $0x30] sm:$0xff] %vm931, %v1358
        %1405 = vst.msk [vmem:[#allocation2 + $0x58] sm:$0xff] %vm931, %v1360
        %1406 = vst.msk [vmem:[#allocation2 + $0x80] sm:$0xff] %vm931, %v1362
        %1407 = vst.msk [vmem:[#allocation2 + $0xa8] sm:$0xff] %vm931, %v1364
        %1408 = vst.msk [vmem:[#allocation2 + $0xd0] sm:$0xff] %vm931, %v1366
        %1409 = vst.msk [vmem:[#allocation2 + $0xf8] sm:$0xff] %vm931, %v1368
        %1410 = vst.msk [vmem:[#allocation2 + $0x120] sm:$0xff] %vm931, %v1370
        %1411 = vst.msk [vmem:[#allocation2 + $0x148] sm:$0xff] %vm931, %v1372
        %1412 = vst.msk [vmem:[#allocation2 + $0x170] sm:$0xff] %vm931, %v1374
        %1413 = vst.msk [vmem:[#allocation2 + $0x198] sm:$0xff] %vm931, %v1376
        %1414 = vst.msk [vmem:[#allocation2 + $0x1c0] sm:$0xff] %vm931, %v1378
        %1415 = vst.msk [vmem:[#allocation2 + $0x1e8] sm:$0xff] %vm931, %v1380
        %1416 = vst.msk [vmem:[#allocation2 + $0x210] sm:$0xff] %vm931, %v1382
        %1417 = vst.msk [vmem:[#allocation2 + $0x238] sm:$0xff] %vm931, %v1384
        %1418 = vst.msk [vmem:[#allocation2 + $0x260] sm:$0xff] %vm931, %v1386
        %v1419 = vld [vmem:[%s1242] sm:$0xf]
        %v1420 = vld [vmem:[%s1242 + $0x4] sm:$0xf]
        %v1421 = vld [vmem:[%s1242 + $0x8] sm:$0x1]
        %v1422 = vld [vmem:[%s1242 + $0xc] sm:$0xf]
        %v1423 = vld [vmem:[%s1242 + $0x10] sm:$0xf]
        %v1424 = vld [vmem:[%s1242 + $0x14] sm:$0x1]
        %v1425 = vld [vmem:[%s1242 + $0x18] sm:$0xf]
        %v1426 = vld [vmem:[%s1242 + $0x1c] sm:$0xf]
        %v1427 = vld [vmem:[%s1242 + $0x20] sm:$0x1]
        %v1428 = vld [vmem:[%s1242 + $0x24] sm:$0xf]
        %v1429 = vld [vmem:[%s1242 + $0x28] sm:$0xf]
        %v1430 = vld [vmem:[%s1242 + $0x2c] sm:$0x1]
        %v1431 = vld [vmem:[%s1242 + $0x30] sm:$0xf]
        %v1432 = vld [vmem:[%s1242 + $0x34] sm:$0xf]
        %v1433 = vld [vmem:[%s1242 + $0x38] sm:$0x1]
        %v1434 = vld [vmem:[%s1242 + $0x3c] sm:$0xf]
        %v1435 = vld [vmem:[%s1242 + $0x40] sm:$0xf]
        %v1436 = vld [vmem:[%s1242 + $0x44] sm:$0x1]
        %v1437 = vld [vmem:[%s1242 + $0x48] sm:$0xf]
        %v1438 = vld [vmem:[%s1242 + $0x4c] sm:$0xf]
        %v1439 = vld [vmem:[%s1242 + $0x50] sm:$0x1]
        %v1440 = vld [vmem:[%s1242 + $0x54] sm:$0xf]
        %v1441 = vld [vmem:[%s1242 + $0x58] sm:$0xf]
        %v1442 = vld [vmem:[%s1242 + $0x5c] sm:$0x1]
        %v1443 = vld [vmem:[%s1242 + $0x60] sm:$0xf]
        %v1444 = vld [vmem:[%s1242 + $0x64] sm:$0xf]
        %v1445 = vld [vmem:[%s1242 + $0x68] sm:$0x1]
        %v1446 = vld [vmem:[%s1242 + $0x6c] sm:$0xf]
        %v1447 = vld [vmem:[%s1242 + $0x70] sm:$0xf]
        %v1448 = vld [vmem:[%s1242 + $0x74] sm:$0x1]
        %v1449 = vld [vmem:[%s1242 + $0x78] sm:$0xf]
        %v1450 = vld [vmem:[%s1242 + $0x7c] sm:$0xf]
        %v1451 = vld [vmem:[%s1242 + $0x80] sm:$0x1]
        %v1452 = vld [vmem:[%s1242 + $0x84] sm:$0xf]
        %v1453 = vld [vmem:[%s1242 + $0x88] sm:$0xf]
        %v1454 = vld [vmem:[%s1242 + $0x8c] sm:$0x1]
        %v1455 = vld [vmem:[%s1242 + $0x90] sm:$0xf]
        %v1456 = vld [vmem:[%s1242 + $0x94] sm:$0xf]
        %v1457 = vld [vmem:[%s1242 + $0x98] sm:$0x1]
        %v1458 = vld [vmem:[%s1242 + $0x9c] sm:$0xf]
        %v1459 = vld [vmem:[%s1242 + $0xa0] sm:$0xf]
        %v1460 = vld [vmem:[%s1242 + $0xa4] sm:$0x1]
        %v1461 = vld [vmem:[%s1242 + $0xa8] sm:$0xf]
        %v1462 = vld [vmem:[%s1242 + $0xac] sm:$0xf]
        %v1463 = vld [vmem:[%s1242 + $0xb0] sm:$0x1]
        %v1464 = vld [vmem:[%s1242 + $0xb4] sm:$0xf]
        %v1465 = vld [vmem:[%s1242 + $0xb8] sm:$0xf]
        %v1466 = vld [vmem:[%s1242 + $0xbc] sm:$0x1]
        %v1468 = vshrl.u32 %v1419, 16
        %v1470 = vrot.slane %v1468, 4
        %v1471 = vshll.u32 %v1419, 16
        %v1473 = vrot.slane %v1471, 5
        %v1474 = vor.u32 %v1470, %v1473
        %v1475 = vrot.slane %v1474, 4
        %v1477 = vshll.u32 %v1420, 16
        %v1479 = vrot.slane %v1477, 5
        %v1480 = vsel %vm450, %v1475, %v1479
        %v1481 = vshrl.u32 %v1420, 16
        %v1483 = vrot.slane %v1481, 4
        %v1484 = vor.u32 %v1483, %v1479
        %v1485 = vrot.slane %v1484, 4
        %v1487 = vshll.u32 %v1421, 16
        %v1489 = vrot.slane %v1487, 5
        %v1490 = vsel %vm450, %v1485, %v1489
        %v1492 = vshrl.u32 %v1422, 16
        %v1494 = vrot.slane %v1492, 4
        %v1495 = vshll.u32 %v1422, 16
        %v1497 = vrot.slane %v1495, 5
        %v1498 = vor.u32 %v1494, %v1497
        %v1499 = vrot.slane %v1498, 4
        %v1501 = vshll.u32 %v1423, 16
        %v1503 = vrot.slane %v1501, 5
        %v1504 = vsel %vm450, %v1499, %v1503
        %v1505 = vshrl.u32 %v1423, 16
        %v1507 = vrot.slane %v1505, 4
        %v1508 = vor.u32 %v1507, %v1503
        %v1509 = vrot.slane %v1508, 4
        %v1511 = vshll.u32 %v1424, 16
        %v1513 = vrot.slane %v1511, 5
        %v1514 = vsel %vm450, %v1509, %v1513
        %v1516 = vshrl.u32 %v1425, 16
        %v1518 = vrot.slane %v1516, 4
        %v1519 = vshll.u32 %v1425, 16
        %v1521 = vrot.slane %v1519, 5
        %v1522 = vor.u32 %v1518, %v1521
        %v1523 = vrot.slane %v1522, 4
        %v1525 = vshll.u32 %v1426, 16
        %v1527 = vrot.slane %v1525, 5
        %v1528 = vsel %vm450, %v1523, %v1527
        %v1529 = vshrl.u32 %v1426, 16
        %v1531 = vrot.slane %v1529, 4
        %v1532 = vor.u32 %v1531, %v1527
        %v1533 = vrot.slane %v1532, 4
        %v1535 = vshll.u32 %v1427, 16
        %v1537 = vrot.slane %v1535, 5
        %v1538 = vsel %vm450, %v1533, %v1537
        %v1540 = vshrl.u32 %v1428, 16
        %v1542 = vrot.slane %v1540, 4
        %v1543 = vshll.u32 %v1428, 16
        %v1545 = vrot.slane %v1543, 5
        %v1546 = vor.u32 %v1542, %v1545
        %v1547 = vrot.slane %v1546, 4
        %v1549 = vshll.u32 %v1429, 16
        %v1551 = vrot.slane %v1549, 5
        %v1552 = vsel %vm450, %v1547, %v1551
        %v1553 = vshrl.u32 %v1429, 16
        %v1555 = vrot.slane %v1553, 4
        %v1556 = vor.u32 %v1555, %v1551
        %v1557 = vrot.slane %v1556, 4
        %v1559 = vshll.u32 %v1430, 16
        %v1561 = vrot.slane %v1559, 5
        %v1562 = vsel %vm450, %v1557, %v1561
        %v1564 = vshrl.u32 %v1431, 16
        %v1566 = vrot.slane %v1564, 4
        %v1567 = vshll.u32 %v1431, 16
        %v1569 = vrot.slane %v1567, 5
        %v1570 = vor.u32 %v1566, %v1569
        %v1571 = vrot.slane %v1570, 4
        %v1573 = vshll.u32 %v1432, 16
        %v1575 = vrot.slane %v1573, 5
        %v1576 = vsel %vm450, %v1571, %v1575
        %v1577 = vshrl.u32 %v1432, 16
        %v1579 = vrot.slane %v1577, 4
        %v1580 = vor.u32 %v1579, %v1575
        %v1581 = vrot.slane %v1580, 4
        %v1583 = vshll.u32 %v1433, 16
        %v1585 = vrot.slane %v1583, 5
        %v1586 = vsel %vm450, %v1581, %v1585
        %v1588 = vshrl.u32 %v1434, 16
        %v1590 = vrot.slane %v1588, 4
        %v1591 = vshll.u32 %v1434, 16
        %v1593 = vrot.slane %v1591, 5
        %v1594 = vor.u32 %v1590, %v1593
        %v1595 = vrot.slane %v1594, 4
        %v1597 = vshll.u32 %v1435, 16
        %v1599 = vrot.slane %v1597, 5
        %v1600 = vsel %vm450, %v1595, %v1599
        %v1601 = vshrl.u32 %v1435, 16
        %v1603 = vrot.slane %v1601, 4
        %v1604 = vor.u32 %v1603, %v1599
        %v1605 = vrot.slane %v1604, 4
        %v1607 = vshll.u32 %v1436, 16
        %v1609 = vrot.slane %v1607, 5
        %v1610 = vsel %vm450, %v1605, %v1609
        %v1612 = vshrl.u32 %v1437, 16
        %v1614 = vrot.slane %v1612, 4
        %v1615 = vshll.u32 %v1437, 16
        %v1617 = vrot.slane %v1615, 5
        %v1618 = vor.u32 %v1614, %v1617
        %v1619 = vrot.slane %v1618, 4
        %v1621 = vshll.u32 %v1438, 16
        %v1623 = vrot.slane %v1621, 5
        %v1624 = vsel %vm450, %v1619, %v1623
        %v1625 = vshrl.u32 %v1438, 16
        %v1627 = vrot.slane %v1625, 4
        %v1628 = vor.u32 %v1627, %v1623
        %v1629 = vrot.slane %v1628, 4
        %v1631 = vshll.u32 %v1439, 16
        %v1633 = vrot.slane %v1631, 5
        %v1634 = vsel %vm450, %v1629, %v1633
        %v1636 = vshrl.u32 %v1440, 16
        %v1638 = vrot.slane %v1636, 4
        %v1639 = vshll.u32 %v1440, 16
        %v1641 = vrot.slane %v1639, 5
        %v1642 = vor.u32 %v1638, %v1641
        %v1643 = vrot.slane %v1642, 4
        %v1645 = vshll.u32 %v1441, 16
        %v1647 = vrot.slane %v1645, 5
        %v1648 = vsel %vm450, %v1643, %v1647
        %v1649 = vshrl.u32 %v1441, 16
        %v1651 = vrot.slane %v1649, 4
        %v1652 = vor.u32 %v1651, %v1647
        %v1653 = vrot.slane %v1652, 4
        %v1655 = vshll.u32 %v1442, 16
        %v1657 = vrot.slane %v1655, 5
        %v1658 = vsel %vm450, %v1653, %v1657
        %v1660 = vshrl.u32 %v1443, 16
        %v1662 = vrot.slane %v1660, 4
        %v1663 = vshll.u32 %v1443, 16
        %v1665 = vrot.slane %v1663, 5
        %v1666 = vor.u32 %v1662, %v1665
        %v1667 = vrot.slane %v1666, 4
        %v1669 = vshll.u32 %v1444, 16
        %v1671 = vrot.slane %v1669, 5
        %v1672 = vsel %vm450, %v1667, %v1671
        %v1673 = vshrl.u32 %v1444, 16
        %v1675 = vrot.slane %v1673, 4
        %v1676 = vor.u32 %v1675, %v1671
        %v1677 = vrot.slane %v1676, 4
        %v1679 = vshll.u32 %v1445, 16
        %v1681 = vrot.slane %v1679, 5
        %v1682 = vsel %vm450, %v1677, %v1681
        %v1684 = vshrl.u32 %v1446, 16
        %v1686 = vrot.slane %v1684, 4
        %v1687 = vshll.u32 %v1446, 16
        %v1689 = vrot.slane %v1687, 5
        %v1690 = vor.u32 %v1686, %v1689
        %v1691 = vrot.slane %v1690, 4
        %v1693 = vshll.u32 %v1447, 16
        %v1695 = vrot.slane %v1693, 5
        %v1696 = vsel %vm450, %v1691, %v1695
        %v1697 = vshrl.u32 %v1447, 16
        %v1699 = vrot.slane %v1697, 4
        %v1700 = vor.u32 %v1699, %v1695
        %v1701 = vrot.slane %v1700, 4
        %v1703 = vshll.u32 %v1448, 16
        %v1705 = vrot.slane %v1703, 5
        %v1706 = vsel %vm450, %v1701, %v1705
        %v1708 = vshrl.u32 %v1449, 16
        %v1710 = vrot.slane %v1708, 4
        %v1711 = vshll.u32 %v1449, 16
        %v1713 = vrot.slane %v1711, 5
        %v1714 = vor.u32 %v1710, %v1713
        %v1715 = vrot.slane %v1714, 4
        %v1717 = vshll.u32 %v1450, 16
        %v1719 = vrot.slane %v1717, 5
        %v1720 = vsel %vm450, %v1715, %v1719
        %v1721 = vshrl.u32 %v1450, 16
        %v1723 = vrot.slane %v1721, 4
        %v1724 = vor.u32 %v1723, %v1719
        %v1725 = vrot.slane %v1724, 4
        %v1727 = vshll.u32 %v1451, 16
        %v1729 = vrot.slane %v1727, 5
        %v1730 = vsel %vm450, %v1725, %v1729
        %v1732 = vshrl.u32 %v1452, 16
        %v1734 = vrot.slane %v1732, 4
        %v1735 = vshll.u32 %v1452, 16
        %v1737 = vrot.slane %v1735, 5
        %v1738 = vor.u32 %v1734, %v1737
        %v1739 = vrot.slane %v1738, 4
        %v1741 = vshll.u32 %v1453, 16
        %v1743 = vrot.slane %v1741, 5
        %v1744 = vsel %vm450, %v1739, %v1743
        %v1745 = vshrl.u32 %v1453, 16
        %v1747 = vrot.slane %v1745, 4
        %v1748 = vor.u32 %v1747, %v1743
        %v1749 = vrot.slane %v1748, 4
        %v1751 = vshll.u32 %v1454, 16
        %v1753 = vrot.slane %v1751, 5
        %v1754 = vsel %vm450, %v1749, %v1753
        %v1756 = vshrl.u32 %v1455, 16
        %v1758 = vrot.slane %v1756, 4
        %v1759 = vshll.u32 %v1455, 16
        %v1761 = vrot.slane %v1759, 5
        %v1762 = vor.u32 %v1758, %v1761
        %v1763 = vrot.slane %v1762, 4
        %v1765 = vshll.u32 %v1456, 16
        %v1767 = vrot.slane %v1765, 5
        %v1768 = vsel %vm450, %v1763, %v1767
        %v1769 = vshrl.u32 %v1456, 16
        %v1771 = vrot.slane %v1769, 4
        %v1772 = vor.u32 %v1771, %v1767
        %v1773 = vrot.slane %v1772, 4
        %v1775 = vshll.u32 %v1457, 16
        %v1777 = vrot.slane %v1775, 5
        %v1778 = vsel %vm450, %v1773, %v1777
        %v1780 = vshrl.u32 %v1458, 16
        %v1782 = vrot.slane %v1780, 4
        %v1783 = vshll.u32 %v1458, 16
        %v1785 = vrot.slane %v1783, 5
        %v1786 = vor.u32 %v1782, %v1785
        %v1787 = vrot.slane %v1786, 4
        %v1789 = vshll.u32 %v1459, 16
        %v1791 = vrot.slane %v1789, 5
        %v1792 = vsel %vm450, %v1787, %v1791
        %v1793 = vshrl.u32 %v1459, 16
        %v1795 = vrot.slane %v1793, 4
        %v1796 = vor.u32 %v1795, %v1791
        %v1797 = vrot.slane %v1796, 4
        %v1799 = vshll.u32 %v1460, 16
        %v1801 = vrot.slane %v1799, 5
        %v1802 = vsel %vm450, %v1797, %v1801
        %v1804 = vshrl.u32 %v1461, 16
        %v1806 = vrot.slane %v1804, 4
        %v1807 = vshll.u32 %v1461, 16
        %v1809 = vrot.slane %v1807, 5
        %v1810 = vor.u32 %v1806, %v1809
        %v1811 = vrot.slane %v1810, 4
        %v1813 = vshll.u32 %v1462, 16
        %v1815 = vrot.slane %v1813, 5
        %v1816 = vsel %vm450, %v1811, %v1815
        %v1817 = vshrl.u32 %v1462, 16
        %v1819 = vrot.slane %v1817, 4
        %v1820 = vor.u32 %v1819, %v1815
        %v1821 = vrot.slane %v1820, 4
        %v1823 = vshll.u32 %v1463, 16
        %v1825 = vrot.slane %v1823, 5
        %v1826 = vsel %vm450, %v1821, %v1825
        %v1828 = vshrl.u32 %v1464, 16
        %v1830 = vrot.slane %v1828, 4
        %v1831 = vshll.u32 %v1464, 16
        %v1833 = vrot.slane %v1831, 5
        %v1834 = vor.u32 %v1830, %v1833
        %v1835 = vrot.slane %v1834, 4
        %v1837 = vshll.u32 %v1465, 16
        %v1839 = vrot.slane %v1837, 5
        %v1840 = vsel %vm450, %v1835, %v1839
        %v1841 = vshrl.u32 %v1465, 16
        %v1843 = vrot.slane %v1841, 4
        %v1844 = vor.u32 %v1843, %v1839
        %v1845 = vrot.slane %v1844, 4
        %v1847 = vshll.u32 %v1466, 16
        %v1849 = vrot.slane %v1847, 5
        %v1850 = vsel %vm450, %v1845, %v1849
        %v1851 = vunpack.c.l.b16 %v1480
        %v1852 = vunpack.c.l.b16 %v1490
        %v1853 = vunpack.c.l.b16 %v1504
        %v1854 = vunpack.c.l.b16 %v1514
        %v1855 = vunpack.c.l.b16 %v1528
        %v1856 = vunpack.c.l.b16 %v1538
        %v1857 = vunpack.c.l.b16 %v1552
        %v1858 = vunpack.c.l.b16 %v1562
        %v1859 = vunpack.c.l.b16 %v1576
        %v1860 = vunpack.c.l.b16 %v1586
        %v1861 = vunpack.c.l.b16 %v1600
        %v1862 = vunpack.c.l.b16 %v1610
        %v1863 = vunpack.c.l.b16 %v1624
        %v1864 = vunpack.c.l.b16 %v1634
        %v1865 = vunpack.c.l.b16 %v1648
        %v1866 = vunpack.c.l.b16 %v1658
        %v1867 = vunpack.c.l.b16 %v1672
        %v1868 = vunpack.c.l.b16 %v1682
        %v1869 = vunpack.c.l.b16 %v1696
        %v1870 = vunpack.c.l.b16 %v1706
        %v1871 = vunpack.c.l.b16 %v1720
        %v1872 = vunpack.c.l.b16 %v1730
        %v1873 = vunpack.c.l.b16 %v1744
        %v1874 = vunpack.c.l.b16 %v1754
        %v1875 = vunpack.c.l.b16 %v1768
        %v1876 = vunpack.c.l.b16 %v1778
        %v1877 = vunpack.c.l.b16 %v1792
        %v1878 = vunpack.c.l.b16 %v1802
        %v1879 = vunpack.c.l.b16 %v1816
        %v1880 = vunpack.c.l.b16 %v1826
        %v1881 = vunpack.c.l.b16 %v1840
        %v1882 = vunpack.c.l.b16 %v1850
        %v1883 = vpack.c.b16 %v1852, %v1851
        %v1884 = vpack.c.b16 %v1854, %v1853
        %v1885 = vpack.c.b16 %v1856, %v1855
        %v1886 = vpack.c.b16 %v1858, %v1857
        %v1887 = vpack.c.b16 %v1860, %v1859
        %v1888 = vpack.c.b16 %v1862, %v1861
        %v1889 = vpack.c.b16 %v1864, %v1863
        %v1890 = vpack.c.b16 %v1866, %v1865
        %v1891 = vpack.c.b16 %v1868, %v1867
        %v1892 = vpack.c.b16 %v1870, %v1869
        %v1893 = vpack.c.b16 %v1872, %v1871
        %v1894 = vpack.c.b16 %v1874, %v1873
        %v1895 = vpack.c.b16 %v1876, %v1875
        %v1896 = vpack.c.b16 %v1878, %v1877
        %v1897 = vpack.c.b16 %v1880, %v1879
        %v1898 = vpack.c.b16 %v1882, %v1881
        %1915 = vst.msk [vmem:[#allocation2 + $0x10] sm:$0xff] %vm383, %v1883
        %1916 = vst.msk [vmem:[#allocation2 + $0x38] sm:$0xff] %vm383, %v1884
        %1917 = vst.msk [vmem:[#allocation2 + $0x60] sm:$0xff] %vm383, %v1885
        %1918 = vst.msk [vmem:[#allocation2 + $0x88] sm:$0xff] %vm383, %v1886
        %1919 = vst.msk [vmem:[#allocation2 + $0xb0] sm:$0xff] %vm383, %v1887
        %1920 = vst.msk [vmem:[#allocation2 + $0xd8] sm:$0xff] %vm383, %v1888
        %1921 = vst.msk [vmem:[#allocation2 + $0x100] sm:$0xff] %vm383, %v1889
        %1922 = vst.msk [vmem:[#allocation2 + $0x128] sm:$0xff] %vm383, %v1890
        %1923 = vst.msk [vmem:[#allocation2 + $0x150] sm:$0xff] %vm383, %v1891
        %1924 = vst.msk [vmem:[#allocation2 + $0x178] sm:$0xff] %vm383, %v1892
        %1925 = vst.msk [vmem:[#allocation2 + $0x1a0] sm:$0xff] %vm383, %v1893
        %1926 = vst.msk [vmem:[#allocation2 + $0x1c8] sm:$0xff] %vm383, %v1894
        %1927 = vst.msk [vmem:[#allocation2 + $0x1f0] sm:$0xff] %vm383, %v1895
        %1928 = vst.msk [vmem:[#allocation2 + $0x218] sm:$0xff] %vm383, %v1896
        %1929 = vst.msk [vmem:[#allocation2 + $0x240] sm:$0xff] %vm383, %v1897
        %1930 = vst.msk [vmem:[#allocation2 + $0x268] sm:$0xff] %vm383, %v1898
        %v1931 = vld [vmem:[%s1242] sm:$0xe]
        %v1932 = vld [vmem:[%s1242 + $0x4] sm:$0xf]
        %v1933 = vld [vmem:[%s1242 + $0x8] sm:$0x1]
        %v1934 = vld [vmem:[%s1242 + $0xc] sm:$0xe]
        %v1935 = vld [vmem:[%s1242 + $0x10] sm:$0xf]
        %v1936 = vld [vmem:[%s1242 + $0x14] sm:$0x1]
        %v1937 = vld [vmem:[%s1242 + $0x18] sm:$0xe]
        %v1938 = vld [vmem:[%s1242 + $0x1c] sm:$0xf]
        %v1939 = vld [vmem:[%s1242 + $0x20] sm:$0x1]
        %v1940 = vld [vmem:[%s1242 + $0x24] sm:$0xe]
        %v1941 = vld [vmem:[%s1242 + $0x28] sm:$0xf]
        %v1942 = vld [vmem:[%s1242 + $0x2c] sm:$0x1]
        %v1943 = vld [vmem:[%s1242 + $0x30] sm:$0xe]
        %v1944 = vld [vmem:[%s1242 + $0x34] sm:$0xf]
        %v1945 = vld [vmem:[%s1242 + $0x38] sm:$0x1]
        %v1946 = vld [vmem:[%s1242 + $0x3c] sm:$0xe]
        %v1947 = vld [vmem:[%s1242 + $0x40] sm:$0xf]
        %v1948 = vld [vmem:[%s1242 + $0x44] sm:$0x1]
        %v1949 = vld [vmem:[%s1242 + $0x48] sm:$0xe]
        %v1950 = vld [vmem:[%s1242 + $0x4c] sm:$0xf]
        %v1951 = vld [vmem:[%s1242 + $0x50] sm:$0x1]
        %v1952 = vld [vmem:[%s1242 + $0x54] sm:$0xe]
        %v1953 = vld [vmem:[%s1242 + $0x58] sm:$0xf]
        %v1954 = vld [vmem:[%s1242 + $0x5c] sm:$0x1]
        %v1955 = vld [vmem:[%s1242 + $0x60] sm:$0xe]
        %v1956 = vld [vmem:[%s1242 + $0x64] sm:$0xf]
        %v1957 = vld [vmem:[%s1242 + $0x68] sm:$0x1]
        %v1958 = vld [vmem:[%s1242 + $0x6c] sm:$0xe]
        %v1959 = vld [vmem:[%s1242 + $0x70] sm:$0xf]
        %v1960 = vld [vmem:[%s1242 + $0x74] sm:$0x1]
        %v1961 = vld [vmem:[%s1242 + $0x78] sm:$0xe]
        %v1962 = vld [vmem:[%s1242 + $0x7c] sm:$0xf]
        %v1963 = vld [vmem:[%s1242 + $0x80] sm:$0x1]
        %v1964 = vld [vmem:[%s1242 + $0x84] sm:$0xe]
        %v1965 = vld [vmem:[%s1242 + $0x88] sm:$0xf]
        %v1966 = vld [vmem:[%s1242 + $0x8c] sm:$0x1]
        %v1967 = vld [vmem:[%s1242 + $0x90] sm:$0xe]
        %v1968 = vld [vmem:[%s1242 + $0x94] sm:$0xf]
        %v1969 = vld [vmem:[%s1242 + $0x98] sm:$0x1]
        %v1970 = vld [vmem:[%s1242 + $0x9c] sm:$0xe]
        %v1971 = vld [vmem:[%s1242 + $0xa0] sm:$0xf]
        %v1972 = vld [vmem:[%s1242 + $0xa4] sm:$0x1]
        %v1973 = vld [vmem:[%s1242 + $0xa8] sm:$0xe]
        %v1974 = vld [vmem:[%s1242 + $0xac] sm:$0xf]
        %v1975 = vld [vmem:[%s1242 + $0xb0] sm:$0x1]
        %v1976 = vld [vmem:[%s1242 + $0xb4] sm:$0xe]
        %v1977 = vld [vmem:[%s1242 + $0xb8] sm:$0xf]
        %v1978 = vld [vmem:[%s1242 + $0xbc] sm:$0x1]
        %v2027 = vrot.slane %v1931, 5
        %v2028 = vrot.slane %v2027, 4
        %v2029 = vrot.slane %v1932, 5
        %v2030 = vsel %vm1046, %v2028, %v2029
        %v2031 = vrot.slane %v2029, 4
        %v2032 = vrot.slane %v1933, 5
        %v2033 = vsel %vm1046, %v2031, %v2032
        %v2034 = vrot.slane %v1934, 5
        %v2035 = vrot.slane %v2034, 4
        %v2036 = vrot.slane %v1935, 5
        %v2037 = vsel %vm1046, %v2035, %v2036
        %v2038 = vrot.slane %v2036, 4
        %v2039 = vrot.slane %v1936, 5
        %v2040 = vsel %vm1046, %v2038, %v2039
        %v2041 = vrot.slane %v1937, 5
        %v2042 = vrot.slane %v2041, 4
        %v2043 = vrot.slane %v1938, 5
        %v2044 = vsel %vm1046, %v2042, %v2043
        %v2045 = vrot.slane %v2043, 4
        %v2046 = vrot.slane %v1939, 5
        %v2047 = vsel %vm1046, %v2045, %v2046
        %v2048 = vrot.slane %v1940, 5
        %v2049 = vrot.slane %v2048, 4
        %v2050 = vrot.slane %v1941, 5
        %v2051 = vsel %vm1046, %v2049, %v2050
        %v2052 = vrot.slane %v2050, 4
        %v2053 = vrot.slane %v1942, 5
        %v2054 = vsel %vm1046, %v2052, %v2053
        %v2055 = vrot.slane %v1943, 5
        %v2056 = vrot.slane %v2055, 4
        %v2057 = vrot.slane %v1944, 5
        %v2058 = vsel %vm1046, %v2056, %v2057
        %v2059 = vrot.slane %v2057, 4
        %v2060 = vrot.slane %v1945, 5
        %v2061 = vsel %vm1046, %v2059, %v2060
        %v2062 = vrot.slane %v1946, 5
        %v2063 = vrot.slane %v2062, 4
        %v2064 = vrot.slane %v1947, 5
        %v2065 = vsel %vm1046, %v2063, %v2064
        %v2066 = vrot.slane %v2064, 4
        %v2067 = vrot.slane %v1948, 5
        %v2068 = vsel %vm1046, %v2066, %v2067
        %v2069 = vrot.slane %v1949, 5
        %v2070 = vrot.slane %v2069, 4
        %v2071 = vrot.slane %v1950, 5
        %v2072 = vsel %vm1046, %v2070, %v2071
        %v2073 = vrot.slane %v2071, 4
        %v2074 = vrot.slane %v1951, 5
        %v2075 = vsel %vm1046, %v2073, %v2074
        %v2076 = vrot.slane %v1952, 5
        %v2077 = vrot.slane %v2076, 4
        %v2078 = vrot.slane %v1953, 5
        %v2079 = vsel %vm1046, %v2077, %v2078
        %v2080 = vrot.slane %v2078, 4
        %v2081 = vrot.slane %v1954, 5
        %v2082 = vsel %vm1046, %v2080, %v2081
        %v2083 = vrot.slane %v1955, 5
        %v2084 = vrot.slane %v2083, 4
        %v2085 = vrot.slane %v1956, 5
        %v2086 = vsel %vm1046, %v2084, %v2085
        %v2087 = vrot.slane %v2085, 4
        %v2088 = vrot.slane %v1957, 5
        %v2089 = vsel %vm1046, %v2087, %v2088
        %v2090 = vrot.slane %v1958, 5
        %v2091 = vrot.slane %v2090, 4
        %v2092 = vrot.slane %v1959, 5
        %v2093 = vsel %vm1046, %v2091, %v2092
        %v2094 = vrot.slane %v2092, 4
        %v2095 = vrot.slane %v1960, 5
        %v2096 = vsel %vm1046, %v2094, %v2095
        %v2097 = vrot.slane %v1961, 5
        %v2098 = vrot.slane %v2097, 4
        %v2099 = vrot.slane %v1962, 5
        %v2100 = vsel %vm1046, %v2098, %v2099
        %v2101 = vrot.slane %v2099, 4
        %v2102 = vrot.slane %v1963, 5
        %v2103 = vsel %vm1046, %v2101, %v2102
        %v2104 = vrot.slane %v1964, 5
        %v2105 = vrot.slane %v2104, 4
        %v2106 = vrot.slane %v1965, 5
        %v2107 = vsel %vm1046, %v2105, %v2106
        %v2108 = vrot.slane %v2106, 4
        %v2109 = vrot.slane %v1966, 5
        %v2110 = vsel %vm1046, %v2108, %v2109
        %v2111 = vrot.slane %v1967, 5
        %v2112 = vrot.slane %v2111, 4
        %v2113 = vrot.slane %v1968, 5
        %v2114 = vsel %vm1046, %v2112, %v2113
        %v2115 = vrot.slane %v2113, 4
        %v2116 = vrot.slane %v1969, 5
        %v2117 = vsel %vm1046, %v2115, %v2116
        %v2118 = vrot.slane %v1970, 5
        %v2119 = vrot.slane %v2118, 4
        %v2120 = vrot.slane %v1971, 5
        %v2121 = vsel %vm1046, %v2119, %v2120
        %v2122 = vrot.slane %v2120, 4
        %v2123 = vrot.slane %v1972, 5
        %v2124 = vsel %vm1046, %v2122, %v2123
        %v2125 = vrot.slane %v1973, 5
        %v2126 = vrot.slane %v2125, 4
        %v2127 = vrot.slane %v1974, 5
        %v2128 = vsel %vm1046, %v2126, %v2127
        %v2129 = vrot.slane %v2127, 4
        %v2130 = vrot.slane %v1975, 5
        %v2131 = vsel %vm1046, %v2129, %v2130
        %v2132 = vrot.slane %v1976, 5
        %v2133 = vrot.slane %v2132, 4
        %v2134 = vrot.slane %v1977, 5
        %v2135 = vsel %vm1046, %v2133, %v2134
        %v2136 = vrot.slane %v2134, 4
        %v2137 = vrot.slane %v1978, 5
        %v2138 = vsel %vm1046, %v2136, %v2137
        %v2139 = vunpack.c.l.b16 %v2030
        %v2140 = vunpack.c.l.b16 %v2033
        %v2141 = vunpack.c.l.b16 %v2037
        %v2142 = vunpack.c.l.b16 %v2040
        %v2143 = vunpack.c.l.b16 %v2044
        %v2144 = vunpack.c.l.b16 %v2047
        %v2145 = vunpack.c.l.b16 %v2051
        %v2146 = vunpack.c.l.b16 %v2054
        %v2147 = vunpack.c.l.b16 %v2058
        %v2148 = vunpack.c.l.b16 %v2061
        %v2149 = vunpack.c.l.b16 %v2065
        %v2150 = vunpack.c.l.b16 %v2068
        %v2151 = vunpack.c.l.b16 %v2072
        %v2152 = vunpack.c.l.b16 %v2075
        %v2153 = vunpack.c.l.b16 %v2079
        %v2154 = vunpack.c.l.b16 %v2082
        %v2155 = vunpack.c.l.b16 %v2086
        %v2156 = vunpack.c.l.b16 %v2089
        %v2157 = vunpack.c.l.b16 %v2093
        %v2158 = vunpack.c.l.b16 %v2096
        %v2159 = vunpack.c.l.b16 %v2100
        %v2160 = vunpack.c.l.b16 %v2103
        %v2161 = vunpack.c.l.b16 %v2107
        %v2162 = vunpack.c.l.b16 %v2110
        %v2163 = vunpack.c.l.b16 %v2114
        %v2164 = vunpack.c.l.b16 %v2117
        %v2165 = vunpack.c.l.b16 %v2121
        %v2166 = vunpack.c.l.b16 %v2124
        %v2167 = vunpack.c.l.b16 %v2128
        %v2168 = vunpack.c.l.b16 %v2131
        %v2169 = vunpack.c.l.b16 %v2135
        %v2170 = vunpack.c.l.b16 %v2138
        %v2171 = vpack.c.b16 %v2140, %v2139
        %v2172 = vpack.c.b16 %v2142, %v2141
        %v2173 = vpack.c.b16 %v2144, %v2143
        %v2174 = vpack.c.b16 %v2146, %v2145
        %v2175 = vpack.c.b16 %v2148, %v2147
        %v2176 = vpack.c.b16 %v2150, %v2149
        %v2177 = vpack.c.b16 %v2152, %v2151
        %v2178 = vpack.c.b16 %v2154, %v2153
        %v2179 = vpack.c.b16 %v2156, %v2155
        %v2180 = vpack.c.b16 %v2158, %v2157
        %v2181 = vpack.c.b16 %v2160, %v2159
        %v2182 = vpack.c.b16 %v2162, %v2161
        %v2183 = vpack.c.b16 %v2164, %v2163
        %v2184 = vpack.c.b16 %v2166, %v2165
        %v2185 = vpack.c.b16 %v2168, %v2167
        %v2186 = vpack.c.b16 %v2170, %v2169
        %2187 = vrot.lane.b32.xlu0 %v2171, 64
        %v2188 = vpop.permute.xlu0 %2187
        %2189 = vrot.lane.b32.xlu0 %v2172, 64
        %v2190 = vpop.permute.xlu0 %2189
        %2191 = vrot.lane.b32.xlu0 %v2173, 64
        %v2192 = vpop.permute.xlu0 %2191
        %2193 = vrot.lane.b32.xlu0 %v2174, 64
        %v2194 = vpop.permute.xlu0 %2193
        %2195 = vrot.lane.b32.xlu0 %v2175, 64
        %v2196 = vpop.permute.xlu0 %2195
        %2197 = vrot.lane.b32.xlu0 %v2176, 64
        %v2198 = vpop.permute.xlu0 %2197
        %2199 = vrot.lane.b32.xlu0 %v2177, 64
        %v2200 = vpop.permute.xlu0 %2199
        %2201 = vrot.lane.b32.xlu0 %v2178, 64
        %v2202 = vpop.permute.xlu0 %2201
        %2203 = vrot.lane.b32.xlu0 %v2179, 64
        %v2204 = vpop.permute.xlu0 %2203
        %2205 = vrot.lane.b32.xlu0 %v2180, 64
        %v2206 = vpop.permute.xlu0 %2205
        %2207 = vrot.lane.b32.xlu0 %v2181, 64
        %v2208 = vpop.permute.xlu0 %2207
        %2209 = vrot.lane.b32.xlu0 %v2182, 64
        %v2210 = vpop.permute.xlu0 %2209
        %2211 = vrot.lane.b32.xlu0 %v2183, 64
        %v2212 = vpop.permute.xlu0 %2211
        %2213 = vrot.lane.b32.xlu0 %v2184, 64
        %v2214 = vpop.permute.xlu0 %2213
        %2215 = vrot.lane.b32.xlu0 %v2185, 64
        %v2216 = vpop.permute.xlu0 %2215
        %2217 = vrot.lane.b32.xlu0 %v2186, 64
        %v2218 = vpop.permute.xlu0 %2217
        %2235 = vst.msk [vmem:[#allocation2 + $0x10] sm:$0xff] %vm931, %v2188
        %2236 = vst.msk [vmem:[#allocation2 + $0x38] sm:$0xff] %vm931, %v2190
        %2237 = vst.msk [vmem:[#allocation2 + $0x60] sm:$0xff] %vm931, %v2192
        %2238 = vst.msk [vmem:[#allocation2 + $0x88] sm:$0xff] %vm931, %v2194
        %2239 = vst.msk [vmem:[#allocation2 + $0xb0] sm:$0xff] %vm931, %v2196
        %2240 = vst.msk [vmem:[#allocation2 + $0xd8] sm:$0xff] %vm931, %v2198
        %2241 = vst.msk [vmem:[#allocation2 + $0x100] sm:$0xff] %vm931, %v2200
        %2242 = vst.msk [vmem:[#allocation2 + $0x128] sm:$0xff] %vm931, %v2202
        %2243 = vst.msk [vmem:[#allocation2 + $0x150] sm:$0xff] %vm931, %v2204
        %2244 = vst.msk [vmem:[#allocation2 + $0x178] sm:$0xff] %vm931, %v2206
        %2245 = vst.msk [vmem:[#allocation2 + $0x1a0] sm:$0xff] %vm931, %v2208
        %2246 = vst.msk [vmem:[#allocation2 + $0x1c8] sm:$0xff] %vm931, %v2210
        %2247 = vst.msk [vmem:[#allocation2 + $0x1f0] sm:$0xff] %vm931, %v2212
        %2248 = vst.msk [vmem:[#allocation2 + $0x218] sm:$0xff] %vm931, %v2214
        %2249 = vst.msk [vmem:[#allocation2 + $0x240] sm:$0xff] %vm931, %v2216
        %2250 = vst.msk [vmem:[#allocation2 + $0x268] sm:$0xff] %vm931, %v2218
        %s2251 = sadd.s32 %s251, 2
        %s2252 = smul.u32 %s2251, 3
        %s2253 = smul.addr %s2252, 4
        %s2254 = scalar_lea.vmem %s248, %s2253
        %v2255 = vld [vmem:[%s2254] sm:$0xf]
        %v2256 = vld [vmem:[%s2254 + $0x4] sm:$0xf]
        %v2257 = vld [vmem:[%s2254 + $0xc] sm:$0xf]
        %v2258 = vld [vmem:[%s2254 + $0x10] sm:$0xf]
        %v2259 = vld [vmem:[%s2254 + $0x18] sm:$0xf]
        %v2260 = vld [vmem:[%s2254 + $0x1c] sm:$0xf]
        %v2261 = vld [vmem:[%s2254 + $0x24] sm:$0xf]
        %v2262 = vld [vmem:[%s2254 + $0x28] sm:$0xf]
        %v2263 = vld [vmem:[%s2254 + $0x30] sm:$0xf]
        %v2264 = vld [vmem:[%s2254 + $0x34] sm:$0xf]
        %v2265 = vld [vmem:[%s2254 + $0x3c] sm:$0xf]
        %v2266 = vld [vmem:[%s2254 + $0x40] sm:$0xf]
        %v2267 = vld [vmem:[%s2254 + $0x48] sm:$0xf]
        %v2268 = vld [vmem:[%s2254 + $0x4c] sm:$0xf]
        %v2269 = vld [vmem:[%s2254 + $0x54] sm:$0xf]
        %v2270 = vld [vmem:[%s2254 + $0x58] sm:$0xf]
        %v2271 = vld [vmem:[%s2254 + $0x60] sm:$0xf]
        %v2272 = vld [vmem:[%s2254 + $0x64] sm:$0xf]
        %v2273 = vld [vmem:[%s2254 + $0x6c] sm:$0xf]
        %v2274 = vld [vmem:[%s2254 + $0x70] sm:$0xf]
        %v2275 = vld [vmem:[%s2254 + $0x78] sm:$0xf]
        %v2276 = vld [vmem:[%s2254 + $0x7c] sm:$0xf]
        %v2277 = vld [vmem:[%s2254 + $0x84] sm:$0xf]
        %v2278 = vld [vmem:[%s2254 + $0x88] sm:$0xf]
        %v2279 = vld [vmem:[%s2254 + $0x90] sm:$0xf]
        %v2280 = vld [vmem:[%s2254 + $0x94] sm:$0xf]
        %v2281 = vld [vmem:[%s2254 + $0x9c] sm:$0xf]
        %v2282 = vld [vmem:[%s2254 + $0xa0] sm:$0xf]
        %v2283 = vld [vmem:[%s2254 + $0xa8] sm:$0xf]
        %v2284 = vld [vmem:[%s2254 + $0xac] sm:$0xf]
        %v2285 = vld [vmem:[%s2254 + $0xb4] sm:$0xf]
        %v2286 = vld [vmem:[%s2254 + $0xb8] sm:$0xf]
        %v2319 = vunpack.c.l.b16 %v2255
        %v2320 = vunpack.c.l.b16 %v2256
        %v2321 = vunpack.c.l.b16 %v2257
        %v2322 = vunpack.c.l.b16 %v2258
        %v2323 = vunpack.c.l.b16 %v2259
        %v2324 = vunpack.c.l.b16 %v2260
        %v2325 = vunpack.c.l.b16 %v2261
        %v2326 = vunpack.c.l.b16 %v2262
        %v2327 = vunpack.c.l.b16 %v2263
        %v2328 = vunpack.c.l.b16 %v2264
        %v2329 = vunpack.c.l.b16 %v2265
        %v2330 = vunpack.c.l.b16 %v2266
        %v2331 = vunpack.c.l.b16 %v2267
        %v2332 = vunpack.c.l.b16 %v2268
        %v2333 = vunpack.c.l.b16 %v2269
        %v2334 = vunpack.c.l.b16 %v2270
        %v2335 = vunpack.c.l.b16 %v2271
        %v2336 = vunpack.c.l.b16 %v2272
        %v2337 = vunpack.c.l.b16 %v2273
        %v2338 = vunpack.c.l.b16 %v2274
        %v2339 = vunpack.c.l.b16 %v2275
        %v2340 = vunpack.c.l.b16 %v2276
        %v2341 = vunpack.c.l.b16 %v2277
        %v2342 = vunpack.c.l.b16 %v2278
        %v2343 = vunpack.c.l.b16 %v2279
        %v2344 = vunpack.c.l.b16 %v2280
        %v2345 = vunpack.c.l.b16 %v2281
        %v2346 = vunpack.c.l.b16 %v2282
        %v2347 = vunpack.c.l.b16 %v2283
        %v2348 = vunpack.c.l.b16 %v2284
        %v2349 = vunpack.c.l.b16 %v2285
        %v2350 = vunpack.c.l.b16 %v2286
        %v2351 = vpack.c.b16 %v2320, %v2319
        %v2352 = vpack.c.b16 %v2322, %v2321
        %v2353 = vpack.c.b16 %v2324, %v2323
        %v2354 = vpack.c.b16 %v2326, %v2325
        %v2355 = vpack.c.b16 %v2328, %v2327
        %v2356 = vpack.c.b16 %v2330, %v2329
        %v2357 = vpack.c.b16 %v2332, %v2331
        %v2358 = vpack.c.b16 %v2334, %v2333
        %v2359 = vpack.c.b16 %v2336, %v2335
        %v2360 = vpack.c.b16 %v2338, %v2337
        %v2361 = vpack.c.b16 %v2340, %v2339
        %v2362 = vpack.c.b16 %v2342, %v2341
        %v2363 = vpack.c.b16 %v2344, %v2343
        %v2364 = vpack.c.b16 %v2346, %v2345
        %v2365 = vpack.c.b16 %v2348, %v2347
        %v2366 = vpack.c.b16 %v2350, %v2349
        %2383 = vst.msk [vmem:[#allocation2 + $0x18] sm:$0xff] %vm383, %v2351
        %2384 = vst.msk [vmem:[#allocation2 + $0x40] sm:$0xff] %vm383, %v2352
        %2385 = vst.msk [vmem:[#allocation2 + $0x68] sm:$0xff] %vm383, %v2353
        %2386 = vst.msk [vmem:[#allocation2 + $0x90] sm:$0xff] %vm383, %v2354
        %2387 = vst.msk [vmem:[#allocation2 + $0xb8] sm:$0xff] %vm383, %v2355
        %2388 = vst.msk [vmem:[#allocation2 + $0xe0] sm:$0xff] %vm383, %v2356
        %2389 = vst.msk [vmem:[#allocation2 + $0x108] sm:$0xff] %vm383, %v2357
        %2390 = vst.msk [vmem:[#allocation2 + $0x130] sm:$0xff] %vm383, %v2358
        %2391 = vst.msk [vmem:[#allocation2 + $0x158] sm:$0xff] %vm383, %v2359
        %2392 = vst.msk [vmem:[#allocation2 + $0x180] sm:$0xff] %vm383, %v2360
        %2393 = vst.msk [vmem:[#allocation2 + $0x1a8] sm:$0xff] %vm383, %v2361
        %2394 = vst.msk [vmem:[#allocation2 + $0x1d0] sm:$0xff] %vm383, %v2362
        %2395 = vst.msk [vmem:[#allocation2 + $0x1f8] sm:$0xff] %vm383, %v2363
        %2396 = vst.msk [vmem:[#allocation2 + $0x220] sm:$0xff] %vm383, %v2364
        %2397 = vst.msk [vmem:[#allocation2 + $0x248] sm:$0xff] %vm383, %v2365
        %2398 = vst.msk [vmem:[#allocation2 + $0x270] sm:$0xff] %vm383, %v2366
        %v2399 = vld [vmem:[%s2254] sm:$0xf]
        %v2400 = vld [vmem:[%s2254 + $0x4] sm:$0xf]
        %v2401 = vld [vmem:[%s2254 + $0x8] sm:$0x1]
        %v2402 = vld [vmem:[%s2254 + $0xc] sm:$0xf]
        %v2403 = vld [vmem:[%s2254 + $0x10] sm:$0xf]
        %v2404 = vld [vmem:[%s2254 + $0x14] sm:$0x1]
        %v2405 = vld [vmem:[%s2254 + $0x18] sm:$0xf]
        %v2406 = vld [vmem:[%s2254 + $0x1c] sm:$0xf]
        %v2407 = vld [vmem:[%s2254 + $0x20] sm:$0x1]
        %v2408 = vld [vmem:[%s2254 + $0x24] sm:$0xf]
        %v2409 = vld [vmem:[%s2254 + $0x28] sm:$0xf]
        %v2410 = vld [vmem:[%s2254 + $0x2c] sm:$0x1]
        %v2411 = vld [vmem:[%s2254 + $0x30] sm:$0xf]
        %v2412 = vld [vmem:[%s2254 + $0x34] sm:$0xf]
        %v2413 = vld [vmem:[%s2254 + $0x38] sm:$0x1]
        %v2414 = vld [vmem:[%s2254 + $0x3c] sm:$0xf]
        %v2415 = vld [vmem:[%s2254 + $0x40] sm:$0xf]
        %v2416 = vld [vmem:[%s2254 + $0x44] sm:$0x1]
        %v2417 = vld [vmem:[%s2254 + $0x48] sm:$0xf]
        %v2418 = vld [vmem:[%s2254 + $0x4c] sm:$0xf]
        %v2419 = vld [vmem:[%s2254 + $0x50] sm:$0x1]
        %v2420 = vld [vmem:[%s2254 + $0x54] sm:$0xf]
        %v2421 = vld [vmem:[%s2254 + $0x58] sm:$0xf]
        %v2422 = vld [vmem:[%s2254 + $0x5c] sm:$0x1]
        %v2423 = vld [vmem:[%s2254 + $0x60] sm:$0xf]
        %v2424 = vld [vmem:[%s2254 + $0x64] sm:$0xf]
        %v2425 = vld [vmem:[%s2254 + $0x68] sm:$0x1]
        %v2426 = vld [vmem:[%s2254 + $0x6c] sm:$0xf]
        %v2427 = vld [vmem:[%s2254 + $0x70] sm:$0xf]
        %v2428 = vld [vmem:[%s2254 + $0x74] sm:$0x1]
        %v2429 = vld [vmem:[%s2254 + $0x78] sm:$0xf]
        %v2430 = vld [vmem:[%s2254 + $0x7c] sm:$0xf]
        %v2431 = vld [vmem:[%s2254 + $0x80] sm:$0x1]
        %v2432 = vld [vmem:[%s2254 + $0x84] sm:$0xf]
        %v2433 = vld [vmem:[%s2254 + $0x88] sm:$0xf]
        %v2434 = vld [vmem:[%s2254 + $0x8c] sm:$0x1]
        %v2435 = vld [vmem:[%s2254 + $0x90] sm:$0xf]
        %v2436 = vld [vmem:[%s2254 + $0x94] sm:$0xf]
        %v2437 = vld [vmem:[%s2254 + $0x98] sm:$0x1]
        %v2438 = vld [vmem:[%s2254 + $0x9c] sm:$0xf]
        %v2439 = vld [vmem:[%s2254 + $0xa0] sm:$0xf]
        %v2440 = vld [vmem:[%s2254 + $0xa4] sm:$0x1]
        %v2441 = vld [vmem:[%s2254 + $0xa8] sm:$0xf]
        %v2442 = vld [vmem:[%s2254 + $0xac] sm:$0xf]
        %v2443 = vld [vmem:[%s2254 + $0xb0] sm:$0x1]
        %v2444 = vld [vmem:[%s2254 + $0xb4] sm:$0xf]
        %v2445 = vld [vmem:[%s2254 + $0xb8] sm:$0xf]
        %v2446 = vld [vmem:[%s2254 + $0xbc] sm:$0x1]
        %v2448 = vshrl.u32 %v2399, 16
        %v2450 = vrot.slane %v2448, 4
        %v2451 = vshll.u32 %v2399, 16
        %v2453 = vrot.slane %v2451, 5
        %v2454 = vor.u32 %v2450, %v2453
        %v2455 = vrot.slane %v2454, 4
        %v2457 = vshll.u32 %v2400, 16
        %v2459 = vrot.slane %v2457, 5
        %v2460 = vsel %vm450, %v2455, %v2459
        %v2461 = vshrl.u32 %v2400, 16
        %v2463 = vrot.slane %v2461, 4
        %v2464 = vor.u32 %v2463, %v2459
        %v2465 = vrot.slane %v2464, 4
        %v2467 = vshll.u32 %v2401, 16
        %v2469 = vrot.slane %v2467, 5
        %v2470 = vsel %vm450, %v2465, %v2469
        %v2472 = vshrl.u32 %v2402, 16
        %v2474 = vrot.slane %v2472, 4
        %v2475 = vshll.u32 %v2402, 16
        %v2477 = vrot.slane %v2475, 5
        %v2478 = vor.u32 %v2474, %v2477
        %v2479 = vrot.slane %v2478, 4
        %v2481 = vshll.u32 %v2403, 16
        %v2483 = vrot.slane %v2481, 5
        %v2484 = vsel %vm450, %v2479, %v2483
        %v2485 = vshrl.u32 %v2403, 16
        %v2487 = vrot.slane %v2485, 4
        %v2488 = vor.u32 %v2487, %v2483
        %v2489 = vrot.slane %v2488, 4
        %v2491 = vshll.u32 %v2404, 16
        %v2493 = vrot.slane %v2491, 5
        %v2494 = vsel %vm450, %v2489, %v2493
        %v2496 = vshrl.u32 %v2405, 16
        %v2498 = vrot.slane %v2496, 4
        %v2499 = vshll.u32 %v2405, 16
        %v2501 = vrot.slane %v2499, 5
        %v2502 = vor.u32 %v2498, %v2501
        %v2503 = vrot.slane %v2502, 4
        %v2505 = vshll.u32 %v2406, 16
        %v2507 = vrot.slane %v2505, 5
        %v2508 = vsel %vm450, %v2503, %v2507
        %v2509 = vshrl.u32 %v2406, 16
        %v2511 = vrot.slane %v2509, 4
        %v2512 = vor.u32 %v2511, %v2507
        %v2513 = vrot.slane %v2512, 4
        %v2515 = vshll.u32 %v2407, 16
        %v2517 = vrot.slane %v2515, 5
        %v2518 = vsel %vm450, %v2513, %v2517
        %v2520 = vshrl.u32 %v2408, 16
        %v2522 = vrot.slane %v2520, 4
        %v2523 = vshll.u32 %v2408, 16
        %v2525 = vrot.slane %v2523, 5
        %v2526 = vor.u32 %v2522, %v2525
        %v2527 = vrot.slane %v2526, 4
        %v2529 = vshll.u32 %v2409, 16
        %v2531 = vrot.slane %v2529, 5
        %v2532 = vsel %vm450, %v2527, %v2531
        %v2533 = vshrl.u32 %v2409, 16
        %v2535 = vrot.slane %v2533, 4
        %v2536 = vor.u32 %v2535, %v2531
        %v2537 = vrot.slane %v2536, 4
        %v2539 = vshll.u32 %v2410, 16
        %v2541 = vrot.slane %v2539, 5
        %v2542 = vsel %vm450, %v2537, %v2541
        %v2544 = vshrl.u32 %v2411, 16
        %v2546 = vrot.slane %v2544, 4
        %v2547 = vshll.u32 %v2411, 16
        %v2549 = vrot.slane %v2547, 5
        %v2550 = vor.u32 %v2546, %v2549
        %v2551 = vrot.slane %v2550, 4
        %v2553 = vshll.u32 %v2412, 16
        %v2555 = vrot.slane %v2553, 5
        %v2556 = vsel %vm450, %v2551, %v2555
        %v2557 = vshrl.u32 %v2412, 16
        %v2559 = vrot.slane %v2557, 4
        %v2560 = vor.u32 %v2559, %v2555
        %v2561 = vrot.slane %v2560, 4
        %v2563 = vshll.u32 %v2413, 16
        %v2565 = vrot.slane %v2563, 5
        %v2566 = vsel %vm450, %v2561, %v2565
        %v2568 = vshrl.u32 %v2414, 16
        %v2570 = vrot.slane %v2568, 4
        %v2571 = vshll.u32 %v2414, 16
        %v2573 = vrot.slane %v2571, 5
        %v2574 = vor.u32 %v2570, %v2573
        %v2575 = vrot.slane %v2574, 4
        %v2577 = vshll.u32 %v2415, 16
        %v2579 = vrot.slane %v2577, 5
        %v2580 = vsel %vm450, %v2575, %v2579
        %v2581 = vshrl.u32 %v2415, 16
        %v2583 = vrot.slane %v2581, 4
        %v2584 = vor.u32 %v2583, %v2579
        %v2585 = vrot.slane %v2584, 4
        %v2587 = vshll.u32 %v2416, 16
        %v2589 = vrot.slane %v2587, 5
        %v2590 = vsel %vm450, %v2585, %v2589
        %v2592 = vshrl.u32 %v2417, 16
        %v2594 = vrot.slane %v2592, 4
        %v2595 = vshll.u32 %v2417, 16
        %v2597 = vrot.slane %v2595, 5
        %v2598 = vor.u32 %v2594, %v2597
        %v2599 = vrot.slane %v2598, 4
        %v2601 = vshll.u32 %v2418, 16
        %v2603 = vrot.slane %v2601, 5
        %v2604 = vsel %vm450, %v2599, %v2603
        %v2605 = vshrl.u32 %v2418, 16
        %v2607 = vrot.slane %v2605, 4
        %v2608 = vor.u32 %v2607, %v2603
        %v2609 = vrot.slane %v2608, 4
        %v2611 = vshll.u32 %v2419, 16
        %v2613 = vrot.slane %v2611, 5
        %v2614 = vsel %vm450, %v2609, %v2613
        %v2616 = vshrl.u32 %v2420, 16
        %v2618 = vrot.slane %v2616, 4
        %v2619 = vshll.u32 %v2420, 16
        %v2621 = vrot.slane %v2619, 5
        %v2622 = vor.u32 %v2618, %v2621
        %v2623 = vrot.slane %v2622, 4
        %v2625 = vshll.u32 %v2421, 16
        %v2627 = vrot.slane %v2625, 5
        %v2628 = vsel %vm450, %v2623, %v2627
        %v2629 = vshrl.u32 %v2421, 16
        %v2631 = vrot.slane %v2629, 4
        %v2632 = vor.u32 %v2631, %v2627
        %v2633 = vrot.slane %v2632, 4
        %v2635 = vshll.u32 %v2422, 16
        %v2637 = vrot.slane %v2635, 5
        %v2638 = vsel %vm450, %v2633, %v2637
        %v2640 = vshrl.u32 %v2423, 16
        %v2642 = vrot.slane %v2640, 4
        %v2643 = vshll.u32 %v2423, 16
        %v2645 = vrot.slane %v2643, 5
        %v2646 = vor.u32 %v2642, %v2645
        %v2647 = vrot.slane %v2646, 4
        %v2649 = vshll.u32 %v2424, 16
        %v2651 = vrot.slane %v2649, 5
        %v2652 = vsel %vm450, %v2647, %v2651
        %v2653 = vshrl.u32 %v2424, 16
        %v2655 = vrot.slane %v2653, 4
        %v2656 = vor.u32 %v2655, %v2651
        %v2657 = vrot.slane %v2656, 4
        %v2659 = vshll.u32 %v2425, 16
        %v2661 = vrot.slane %v2659, 5
        %v2662 = vsel %vm450, %v2657, %v2661
        %v2664 = vshrl.u32 %v2426, 16
        %v2666 = vrot.slane %v2664, 4
        %v2667 = vshll.u32 %v2426, 16
        %v2669 = vrot.slane %v2667, 5
        %v2670 = vor.u32 %v2666, %v2669
        %v2671 = vrot.slane %v2670, 4
        %v2673 = vshll.u32 %v2427, 16
        %v2675 = vrot.slane %v2673, 5
        %v2676 = vsel %vm450, %v2671, %v2675
        %v2677 = vshrl.u32 %v2427, 16
        %v2679 = vrot.slane %v2677, 4
        %v2680 = vor.u32 %v2679, %v2675
        %v2681 = vrot.slane %v2680, 4
        %v2683 = vshll.u32 %v2428, 16
        %v2685 = vrot.slane %v2683, 5
        %v2686 = vsel %vm450, %v2681, %v2685
        %v2688 = vshrl.u32 %v2429, 16
        %v2690 = vrot.slane %v2688, 4
        %v2691 = vshll.u32 %v2429, 16
        %v2693 = vrot.slane %v2691, 5
        %v2694 = vor.u32 %v2690, %v2693
        %v2695 = vrot.slane %v2694, 4
        %v2697 = vshll.u32 %v2430, 16
        %v2699 = vrot.slane %v2697, 5
        %v2700 = vsel %vm450, %v2695, %v2699
        %v2701 = vshrl.u32 %v2430, 16
        %v2703 = vrot.slane %v2701, 4
        %v2704 = vor.u32 %v2703, %v2699
        %v2705 = vrot.slane %v2704, 4
        %v2707 = vshll.u32 %v2431, 16
        %v2709 = vrot.slane %v2707, 5
        %v2710 = vsel %vm450, %v2705, %v2709
        %v2712 = vshrl.u32 %v2432, 16
        %v2714 = vrot.slane %v2712, 4
        %v2715 = vshll.u32 %v2432, 16
        %v2717 = vrot.slane %v2715, 5
        %v2718 = vor.u32 %v2714, %v2717
        %v2719 = vrot.slane %v2718, 4
        %v2721 = vshll.u32 %v2433, 16
        %v2723 = vrot.slane %v2721, 5
        %v2724 = vsel %vm450, %v2719, %v2723
        %v2725 = vshrl.u32 %v2433, 16
        %v2727 = vrot.slane %v2725, 4
        %v2728 = vor.u32 %v2727, %v2723
        %v2729 = vrot.slane %v2728, 4
        %v2731 = vshll.u32 %v2434, 16
        %v2733 = vrot.slane %v2731, 5
        %v2734 = vsel %vm450, %v2729, %v2733
        %v2736 = vshrl.u32 %v2435, 16
        %v2738 = vrot.slane %v2736, 4
        %v2739 = vshll.u32 %v2435, 16
        %v2741 = vrot.slane %v2739, 5
        %v2742 = vor.u32 %v2738, %v2741
        %v2743 = vrot.slane %v2742, 4
        %v2745 = vshll.u32 %v2436, 16
        %v2747 = vrot.slane %v2745, 5
        %v2748 = vsel %vm450, %v2743, %v2747
        %v2749 = vshrl.u32 %v2436, 16
        %v2751 = vrot.slane %v2749, 4
        %v2752 = vor.u32 %v2751, %v2747
        %v2753 = vrot.slane %v2752, 4
        %v2755 = vshll.u32 %v2437, 16
        %v2757 = vrot.slane %v2755, 5
        %v2758 = vsel %vm450, %v2753, %v2757
        %v2760 = vshrl.u32 %v2438, 16
        %v2762 = vrot.slane %v2760, 4
        %v2763 = vshll.u32 %v2438, 16
        %v2765 = vrot.slane %v2763, 5
        %v2766 = vor.u32 %v2762, %v2765
        %v2767 = vrot.slane %v2766, 4
        %v2769 = vshll.u32 %v2439, 16
        %v2771 = vrot.slane %v2769, 5
        %v2772 = vsel %vm450, %v2767, %v2771
        %v2773 = vshrl.u32 %v2439, 16
        %v2775 = vrot.slane %v2773, 4
        %v2776 = vor.u32 %v2775, %v2771
        %v2777 = vrot.slane %v2776, 4
        %v2779 = vshll.u32 %v2440, 16
        %v2781 = vrot.slane %v2779, 5
        %v2782 = vsel %vm450, %v2777, %v2781
        %v2784 = vshrl.u32 %v2441, 16
        %v2786 = vrot.slane %v2784, 4
        %v2787 = vshll.u32 %v2441, 16
        %v2789 = vrot.slane %v2787, 5
        %v2790 = vor.u32 %v2786, %v2789
        %v2791 = vrot.slane %v2790, 4
        %v2793 = vshll.u32 %v2442, 16
        %v2795 = vrot.slane %v2793, 5
        %v2796 = vsel %vm450, %v2791, %v2795
        %v2797 = vshrl.u32 %v2442, 16
        %v2799 = vrot.slane %v2797, 4
        %v2800 = vor.u32 %v2799, %v2795
        %v2801 = vrot.slane %v2800, 4
        %v2803 = vshll.u32 %v2443, 16
        %v2805 = vrot.slane %v2803, 5
        %v2806 = vsel %vm450, %v2801, %v2805
        %v2808 = vshrl.u32 %v2444, 16
        %v2810 = vrot.slane %v2808, 4
        %v2811 = vshll.u32 %v2444, 16
        %v2813 = vrot.slane %v2811, 5
        %v2814 = vor.u32 %v2810, %v2813
        %v2815 = vrot.slane %v2814, 4
        %v2817 = vshll.u32 %v2445, 16
        %v2819 = vrot.slane %v2817, 5
        %v2820 = vsel %vm450, %v2815, %v2819
        %v2821 = vshrl.u32 %v2445, 16
        %v2823 = vrot.slane %v2821, 4
        %v2824 = vor.u32 %v2823, %v2819
        %v2825 = vrot.slane %v2824, 4
        %v2827 = vshll.u32 %v2446, 16
        %v2829 = vrot.slane %v2827, 5
        %v2830 = vsel %vm450, %v2825, %v2829
        %v2831 = vunpack.c.l.b16 %v2460
        %v2832 = vunpack.c.l.b16 %v2470
        %v2833 = vunpack.c.l.b16 %v2484
        %v2834 = vunpack.c.l.b16 %v2494
        %v2835 = vunpack.c.l.b16 %v2508
        %v2836 = vunpack.c.l.b16 %v2518
        %v2837 = vunpack.c.l.b16 %v2532
        %v2838 = vunpack.c.l.b16 %v2542
        %v2839 = vunpack.c.l.b16 %v2556
        %v2840 = vunpack.c.l.b16 %v2566
        %v2841 = vunpack.c.l.b16 %v2580
        %v2842 = vunpack.c.l.b16 %v2590
        %v2843 = vunpack.c.l.b16 %v2604
        %v2844 = vunpack.c.l.b16 %v2614
        %v2845 = vunpack.c.l.b16 %v2628
        %v2846 = vunpack.c.l.b16 %v2638
        %v2847 = vunpack.c.l.b16 %v2652
        %v2848 = vunpack.c.l.b16 %v2662
        %v2849 = vunpack.c.l.b16 %v2676
        %v2850 = vunpack.c.l.b16 %v2686
        %v2851 = vunpack.c.l.b16 %v2700
        %v2852 = vunpack.c.l.b16 %v2710
        %v2853 = vunpack.c.l.b16 %v2724
        %v2854 = vunpack.c.l.b16 %v2734
        %v2855 = vunpack.c.l.b16 %v2748
        %v2856 = vunpack.c.l.b16 %v2758
        %v2857 = vunpack.c.l.b16 %v2772
        %v2858 = vunpack.c.l.b16 %v2782
        %v2859 = vunpack.c.l.b16 %v2796
        %v2860 = vunpack.c.l.b16 %v2806
        %v2861 = vunpack.c.l.b16 %v2820
        %v2862 = vunpack.c.l.b16 %v2830
        %v2863 = vpack.c.b16 %v2832, %v2831
        %v2864 = vpack.c.b16 %v2834, %v2833
        %v2865 = vpack.c.b16 %v2836, %v2835
        %v2866 = vpack.c.b16 %v2838, %v2837
        %v2867 = vpack.c.b16 %v2840, %v2839
        %v2868 = vpack.c.b16 %v2842, %v2841
        %v2869 = vpack.c.b16 %v2844, %v2843
        %v2870 = vpack.c.b16 %v2846, %v2845
        %v2871 = vpack.c.b16 %v2848, %v2847
        %v2872 = vpack.c.b16 %v2850, %v2849
        %v2873 = vpack.c.b16 %v2852, %v2851
        %v2874 = vpack.c.b16 %v2854, %v2853
        %v2875 = vpack.c.b16 %v2856, %v2855
        %v2876 = vpack.c.b16 %v2858, %v2857
        %v2877 = vpack.c.b16 %v2860, %v2859
        %v2878 = vpack.c.b16 %v2862, %v2861
        %2879 = vrot.lane.b32.xlu0 %v2863, 64
        %v2880 = vpop.permute.xlu0 %2879
        %2881 = vrot.lane.b32.xlu0 %v2864, 64
        %v2882 = vpop.permute.xlu0 %2881
        %2883 = vrot.lane.b32.xlu0 %v2865, 64
        %v2884 = vpop.permute.xlu0 %2883
        %2885 = vrot.lane.b32.xlu0 %v2866, 64
        %v2886 = vpop.permute.xlu0 %2885
        %2887 = vrot.lane.b32.xlu0 %v2867, 64
        %v2888 = vpop.permute.xlu0 %2887
        %2889 = vrot.lane.b32.xlu0 %v2868, 64
        %v2890 = vpop.permute.xlu0 %2889
        %2891 = vrot.lane.b32.xlu0 %v2869, 64
        %v2892 = vpop.permute.xlu0 %2891
        %2893 = vrot.lane.b32.xlu0 %v2870, 64
        %v2894 = vpop.permute.xlu0 %2893
        %2895 = vrot.lane.b32.xlu0 %v2871, 64
        %v2896 = vpop.permute.xlu0 %2895
        %2897 = vrot.lane.b32.xlu0 %v2872, 64
        %v2898 = vpop.permute.xlu0 %2897
        %2899 = vrot.lane.b32.xlu0 %v2873, 64
        %v2900 = vpop.permute.xlu0 %2899
        %2901 = vrot.lane.b32.xlu0 %v2874, 64
        %v2902 = vpop.permute.xlu0 %2901
        %2903 = vrot.lane.b32.xlu0 %v2875, 64
        %v2904 = vpop.permute.xlu0 %2903
        %2905 = vrot.lane.b32.xlu0 %v2876, 64
        %v2906 = vpop.permute.xlu0 %2905
        %2907 = vrot.lane.b32.xlu0 %v2877, 64
        %v2908 = vpop.permute.xlu0 %2907
        %2909 = vrot.lane.b32.xlu0 %v2878, 64
        %v2910 = vpop.permute.xlu0 %2909
        %2927 = vst.msk [vmem:[#allocation2 + $0x18] sm:$0xff] %vm931, %v2880
        %2928 = vst.msk [vmem:[#allocation2 + $0x40] sm:$0xff] %vm931, %v2882
        %2929 = vst.msk [vmem:[#allocation2 + $0x68] sm:$0xff] %vm931, %v2884
        %2930 = vst.msk [vmem:[#allocation2 + $0x90] sm:$0xff] %vm931, %v2886
        %2931 = vst.msk [vmem:[#allocation2 + $0xb8] sm:$0xff] %vm931, %v2888
        %2932 = vst.msk [vmem:[#allocation2 + $0xe0] sm:$0xff] %vm931, %v2890
        %2933 = vst.msk [vmem:[#allocation2 + $0x108] sm:$0xff] %vm931, %v2892
        %2934 = vst.msk [vmem:[#allocation2 + $0x130] sm:$0xff] %vm931, %v2894
        %2935 = vst.msk [vmem:[#allocation2 + $0x158] sm:$0xff] %vm931, %v2896
        %2936 = vst.msk [vmem:[#allocation2 + $0x180] sm:$0xff] %vm931, %v2898
        %2937 = vst.msk [vmem:[#allocation2 + $0x1a8] sm:$0xff] %vm931, %v2900
        %2938 = vst.msk [vmem:[#allocation2 + $0x1d0] sm:$0xff] %vm931, %v2902
        %2939 = vst.msk [vmem:[#allocation2 + $0x1f8] sm:$0xff] %vm931, %v2904
        %2940 = vst.msk [vmem:[#allocation2 + $0x220] sm:$0xff] %vm931, %v2906
        %2941 = vst.msk [vmem:[#allocation2 + $0x248] sm:$0xff] %vm931, %v2908
        %2942 = vst.msk [vmem:[#allocation2 + $0x270] sm:$0xff] %vm931, %v2910
        %v2943 = vld [vmem:[%s2254] sm:$0xe]
        %v2944 = vld [vmem:[%s2254 + $0x4] sm:$0xf]
        %v2945 = vld [vmem:[%s2254 + $0x8] sm:$0x1]
        %v2946 = vld [vmem:[%s2254 + $0xc] sm:$0xe]
        %v2947 = vld [vmem:[%s2254 + $0x10] sm:$0xf]
        %v2948 = vld [vmem:[%s2254 + $0x14] sm:$0x1]
        %v2949 = vld [vmem:[%s2254 + $0x18] sm:$0xe]
        %v2950 = vld [vmem:[%s2254 + $0x1c] sm:$0xf]
        %v2951 = vld [vmem:[%s2254 + $0x20] sm:$0x1]
        %v2952 = vld [vmem:[%s2254 + $0x24] sm:$0xe]
        %v2953 = vld [vmem:[%s2254 + $0x28] sm:$0xf]
        %v2954 = vld [vmem:[%s2254 + $0x2c] sm:$0x1]
        %v2955 = vld [vmem:[%s2254 + $0x30] sm:$0xe]
        %v2956 = vld [vmem:[%s2254 + $0x34] sm:$0xf]
        %v2957 = vld [vmem:[%s2254 + $0x38] sm:$0x1]
        %v2958 = vld [vmem:[%s2254 + $0x3c] sm:$0xe]
        %v2959 = vld [vmem:[%s2254 + $0x40] sm:$0xf]
        %v2960 = vld [vmem:[%s2254 + $0x44] sm:$0x1]
        %v2961 = vld [vmem:[%s2254 + $0x48] sm:$0xe]
        %v2962 = vld [vmem:[%s2254 + $0x4c] sm:$0xf]
        %v2963 = vld [vmem:[%s2254 + $0x50] sm:$0x1]
        %v2964 = vld [vmem:[%s2254 + $0x54] sm:$0xe]
        %v2965 = vld [vmem:[%s2254 + $0x58] sm:$0xf]
        %v2966 = vld [vmem:[%s2254 + $0x5c] sm:$0x1]
        %v2967 = vld [vmem:[%s2254 + $0x60] sm:$0xe]
        %v2968 = vld [vmem:[%s2254 + $0x64] sm:$0xf]
        %v2969 = vld [vmem:[%s2254 + $0x68] sm:$0x1]
        %v2970 = vld [vmem:[%s2254 + $0x6c] sm:$0xe]
        %v2971 = vld [vmem:[%s2254 + $0x70] sm:$0xf]
        %v2972 = vld [vmem:[%s2254 + $0x74] sm:$0x1]
        %v2973 = vld [vmem:[%s2254 + $0x78] sm:$0xe]
        %v2974 = vld [vmem:[%s2254 + $0x7c] sm:$0xf]
        %v2975 = vld [vmem:[%s2254 + $0x80] sm:$0x1]
        %v2976 = vld [vmem:[%s2254 + $0x84] sm:$0xe]
        %v2977 = vld [vmem:[%s2254 + $0x88] sm:$0xf]
        %v2978 = vld [vmem:[%s2254 + $0x8c] sm:$0x1]
        %v2979 = vld [vmem:[%s2254 + $0x90] sm:$0xe]
        %v2980 = vld [vmem:[%s2254 + $0x94] sm:$0xf]
        %v2981 = vld [vmem:[%s2254 + $0x98] sm:$0x1]
        %v2982 = vld [vmem:[%s2254 + $0x9c] sm:$0xe]
        %v2983 = vld [vmem:[%s2254 + $0xa0] sm:$0xf]
        %v2984 = vld [vmem:[%s2254 + $0xa4] sm:$0x1]
        %v2985 = vld [vmem:[%s2254 + $0xa8] sm:$0xe]
        %v2986 = vld [vmem:[%s2254 + $0xac] sm:$0xf]
        %v2987 = vld [vmem:[%s2254 + $0xb0] sm:$0x1]
        %v2988 = vld [vmem:[%s2254 + $0xb4] sm:$0xe]
        %v2989 = vld [vmem:[%s2254 + $0xb8] sm:$0xf]
        %v2990 = vld [vmem:[%s2254 + $0xbc] sm:$0x1]
        %v3039 = vrot.slane %v2943, 5
        %v3040 = vrot.slane %v3039, 4
        %v3041 = vrot.slane %v2944, 5
        %v3042 = vsel %vm1046, %v3040, %v3041
        %v3043 = vrot.slane %v3041, 4
        %v3044 = vrot.slane %v2945, 5
        %v3045 = vsel %vm1046, %v3043, %v3044
        %v3046 = vrot.slane %v2946, 5
        %v3047 = vrot.slane %v3046, 4
        %v3048 = vrot.slane %v2947, 5
        %v3049 = vsel %vm1046, %v3047, %v3048
        %v3050 = vrot.slane %v3048, 4
        %v3051 = vrot.slane %v2948, 5
        %v3052 = vsel %vm1046, %v3050, %v3051
        %v3053 = vrot.slane %v2949, 5
        %v3054 = vrot.slane %v3053, 4
        %v3055 = vrot.slane %v2950, 5
        %v3056 = vsel %vm1046, %v3054, %v3055
        %v3057 = vrot.slane %v3055, 4
        %v3058 = vrot.slane %v2951, 5
        %v3059 = vsel %vm1046, %v3057, %v3058
        %v3060 = vrot.slane %v2952, 5
        %v3061 = vrot.slane %v3060, 4
        %v3062 = vrot.slane %v2953, 5
        %v3063 = vsel %vm1046, %v3061, %v3062
        %v3064 = vrot.slane %v3062, 4
        %v3065 = vrot.slane %v2954, 5
        %v3066 = vsel %vm1046, %v3064, %v3065
        %v3067 = vrot.slane %v2955, 5
        %v3068 = vrot.slane %v3067, 4
        %v3069 = vrot.slane %v2956, 5
        %v3070 = vsel %vm1046, %v3068, %v3069
        %v3071 = vrot.slane %v3069, 4
        %v3072 = vrot.slane %v2957, 5
        %v3073 = vsel %vm1046, %v3071, %v3072
        %v3074 = vrot.slane %v2958, 5
        %v3075 = vrot.slane %v3074, 4
        %v3076 = vrot.slane %v2959, 5
        %v3077 = vsel %vm1046, %v3075, %v3076
        %v3078 = vrot.slane %v3076, 4
        %v3079 = vrot.slane %v2960, 5
        %v3080 = vsel %vm1046, %v3078, %v3079
        %v3081 = vrot.slane %v2961, 5
        %v3082 = vrot.slane %v3081, 4
        %v3083 = vrot.slane %v2962, 5
        %v3084 = vsel %vm1046, %v3082, %v3083
        %v3085 = vrot.slane %v3083, 4
        %v3086 = vrot.slane %v2963, 5
        %v3087 = vsel %vm1046, %v3085, %v3086
        %v3088 = vrot.slane %v2964, 5
        %v3089 = vrot.slane %v3088, 4
        %v3090 = vrot.slane %v2965, 5
        %v3091 = vsel %vm1046, %v3089, %v3090
        %v3092 = vrot.slane %v3090, 4
        %v3093 = vrot.slane %v2966, 5
        %v3094 = vsel %vm1046, %v3092, %v3093
        %v3095 = vrot.slane %v2967, 5
        %v3096 = vrot.slane %v3095, 4
        %v3097 = vrot.slane %v2968, 5
        %v3098 = vsel %vm1046, %v3096, %v3097
        %v3099 = vrot.slane %v3097, 4
        %v3100 = vrot.slane %v2969, 5
        %v3101 = vsel %vm1046, %v3099, %v3100
        %v3102 = vrot.slane %v2970, 5
        %v3103 = vrot.slane %v3102, 4
        %v3104 = vrot.slane %v2971, 5
        %v3105 = vsel %vm1046, %v3103, %v3104
        %v3106 = vrot.slane %v3104, 4
        %v3107 = vrot.slane %v2972, 5
        %v3108 = vsel %vm1046, %v3106, %v3107
        %v3109 = vrot.slane %v2973, 5
        %v3110 = vrot.slane %v3109, 4
        %v3111 = vrot.slane %v2974, 5
        %v3112 = vsel %vm1046, %v3110, %v3111
        %v3113 = vrot.slane %v3111, 4
        %v3114 = vrot.slane %v2975, 5
        %v3115 = vsel %vm1046, %v3113, %v3114
        %v3116 = vrot.slane %v2976, 5
        %v3117 = vrot.slane %v3116, 4
        %v3118 = vrot.slane %v2977, 5
        %v3119 = vsel %vm1046, %v3117, %v3118
        %v3120 = vrot.slane %v3118, 4
        %v3121 = vrot.slane %v2978, 5
        %v3122 = vsel %vm1046, %v3120, %v3121
        %v3123 = vrot.slane %v2979, 5
        %v3124 = vrot.slane %v3123, 4
        %v3125 = vrot.slane %v2980, 5
        %v3126 = vsel %vm1046, %v3124, %v3125
        %v3127 = vrot.slane %v3125, 4
        %v3128 = vrot.slane %v2981, 5
        %v3129 = vsel %vm1046, %v3127, %v3128
        %v3130 = vrot.slane %v2982, 5
        %v3131 = vrot.slane %v3130, 4
        %v3132 = vrot.slane %v2983, 5
        %v3133 = vsel %vm1046, %v3131, %v3132
        %v3134 = vrot.slane %v3132, 4
        %v3135 = vrot.slane %v2984, 5
        %v3136 = vsel %vm1046, %v3134, %v3135
        %v3137 = vrot.slane %v2985, 5
        %v3138 = vrot.slane %v3137, 4
        %v3139 = vrot.slane %v2986, 5
        %v3140 = vsel %vm1046, %v3138, %v3139
        %v3141 = vrot.slane %v3139, 4
        %v3142 = vrot.slane %v2987, 5
        %v3143 = vsel %vm1046, %v3141, %v3142
        %v3144 = vrot.slane %v2988, 5
        %v3145 = vrot.slane %v3144, 4
        %v3146 = vrot.slane %v2989, 5
        %v3147 = vsel %vm1046, %v3145, %v3146
        %v3148 = vrot.slane %v3146, 4
        %v3149 = vrot.slane %v2990, 5
        %v3150 = vsel %vm1046, %v3148, %v3149
        %v3151 = vunpack.c.l.b16 %v3042
        %v3152 = vunpack.c.l.b16 %v3045
        %v3153 = vunpack.c.l.b16 %v3049
        %v3154 = vunpack.c.l.b16 %v3052
        %v3155 = vunpack.c.l.b16 %v3056
        %v3156 = vunpack.c.l.b16 %v3059
        %v3157 = vunpack.c.l.b16 %v3063
        %v3158 = vunpack.c.l.b16 %v3066
        %v3159 = vunpack.c.l.b16 %v3070
        %v3160 = vunpack.c.l.b16 %v3073
        %v3161 = vunpack.c.l.b16 %v3077
        %v3162 = vunpack.c.l.b16 %v3080
        %v3163 = vunpack.c.l.b16 %v3084
        %v3164 = vunpack.c.l.b16 %v3087
        %v3165 = vunpack.c.l.b16 %v3091
        %v3166 = vunpack.c.l.b16 %v3094
        %v3167 = vunpack.c.l.b16 %v3098
        %v3168 = vunpack.c.l.b16 %v3101
        %v3169 = vunpack.c.l.b16 %v3105
        %v3170 = vunpack.c.l.b16 %v3108
        %v3171 = vunpack.c.l.b16 %v3112
        %v3172 = vunpack.c.l.b16 %v3115
        %v3173 = vunpack.c.l.b16 %v3119
        %v3174 = vunpack.c.l.b16 %v3122
        %v3175 = vunpack.c.l.b16 %v3126
        %v3176 = vunpack.c.l.b16 %v3129
        %v3177 = vunpack.c.l.b16 %v3133
        %v3178 = vunpack.c.l.b16 %v3136
        %v3179 = vunpack.c.l.b16 %v3140
        %v3180 = vunpack.c.l.b16 %v3143
        %v3181 = vunpack.c.l.b16 %v3147
        %v3182 = vunpack.c.l.b16 %v3150
        %v3183 = vpack.c.b16 %v3152, %v3151
        %v3184 = vpack.c.b16 %v3154, %v3153
        %v3185 = vpack.c.b16 %v3156, %v3155
        %v3186 = vpack.c.b16 %v3158, %v3157
        %v3187 = vpack.c.b16 %v3160, %v3159
        %v3188 = vpack.c.b16 %v3162, %v3161
        %v3189 = vpack.c.b16 %v3164, %v3163
        %v3190 = vpack.c.b16 %v3166, %v3165
        %v3191 = vpack.c.b16 %v3168, %v3167
        %v3192 = vpack.c.b16 %v3170, %v3169
        %v3193 = vpack.c.b16 %v3172, %v3171
        %v3194 = vpack.c.b16 %v3174, %v3173
        %v3195 = vpack.c.b16 %v3176, %v3175
        %v3196 = vpack.c.b16 %v3178, %v3177
        %v3197 = vpack.c.b16 %v3180, %v3179
        %v3198 = vpack.c.b16 %v3182, %v3181
        %3215 = vst.msk [vmem:[#allocation2 + $0x20] sm:$0xff] %vm383, %v3183
        %3216 = vst.msk [vmem:[#allocation2 + $0x48] sm:$0xff] %vm383, %v3184
        %3217 = vst.msk [vmem:[#allocation2 + $0x70] sm:$0xff] %vm383, %v3185
        %3218 = vst.msk [vmem:[#allocation2 + $0x98] sm:$0xff] %vm383, %v3186
        %3219 = vst.msk [vmem:[#allocation2 + $0xc0] sm:$0xff] %vm383, %v3187
        %3220 = vst.msk [vmem:[#allocation2 + $0xe8] sm:$0xff] %vm383, %v3188
        %3221 = vst.msk [vmem:[#allocation2 + $0x110] sm:$0xff] %vm383, %v3189
        %3222 = vst.msk [vmem:[#allocation2 + $0x138] sm:$0xff] %vm383, %v3190
        %3223 = vst.msk [vmem:[#allocation2 + $0x160] sm:$0xff] %vm383, %v3191
        %3224 = vst.msk [vmem:[#allocation2 + $0x188] sm:$0xff] %vm383, %v3192
        %3225 = vst.msk [vmem:[#allocation2 + $0x1b0] sm:$0xff] %vm383, %v3193
        %3226 = vst.msk [vmem:[#allocation2 + $0x1d8] sm:$0xff] %vm383, %v3194
        %3227 = vst.msk [vmem:[#allocation2 + $0x200] sm:$0xff] %vm383, %v3195
        %3228 = vst.msk [vmem:[#allocation2 + $0x228] sm:$0xff] %vm383, %v3196
        %3229 = vst.msk [vmem:[#allocation2 + $0x250] sm:$0xff] %vm383, %v3197
        %3230 = vst.msk [vmem:[#allocation2 + $0x278] sm:$0xff] %vm383, %v3198
        %v3231 = vld [vmem:[#allocation2] sm:$0xff]
        %v3232 = vld [vmem:[#allocation2 + $0x8] sm:$0xff]
        %v3233 = vld [vmem:[#allocation2 + $0x10] sm:$0xff]
        %v3234 = vld [vmem:[#allocation2 + $0x18] sm:$0xff]
        %v3235 = vld [vmem:[#allocation2 + $0x20] sm:$0xff]
        %v3236 = vld [vmem:[#allocation2 + $0x28] sm:$0xff]
        %v3237 = vld [vmem:[#allocation2 + $0x30] sm:$0xff]
        %v3238 = vld [vmem:[#allocation2 + $0x38] sm:$0xff]
        %v3239 = vld [vmem:[#allocation2 + $0x40] sm:$0xff]
        %v3240 = vld [vmem:[#allocation2 + $0x48] sm:$0xff]
        %v3241 = vld [vmem:[#allocation2 + $0x50] sm:$0xff]
        %v3242 = vld [vmem:[#allocation2 + $0x58] sm:$0xff]
        %v3243 = vld [vmem:[#allocation2 + $0x60] sm:$0xff]
        %v3244 = vld [vmem:[#allocation2 + $0x68] sm:$0xff]
        %v3245 = vld [vmem:[#allocation2 + $0x70] sm:$0xff]
        %v3246 = vld [vmem:[#allocation2 + $0x78] sm:$0xff]
        %v3247 = vld [vmem:[#allocation2 + $0x80] sm:$0xff]
        %v3248 = vld [vmem:[#allocation2 + $0x88] sm:$0xff]
        %v3249 = vld [vmem:[#allocation2 + $0x90] sm:$0xff]
        %v3250 = vld [vmem:[#allocation2 + $0x98] sm:$0xff]
        %v3251 = vld [vmem:[#allocation2 + $0xa0] sm:$0xff]
        %v3252 = vld [vmem:[#allocation2 + $0xa8] sm:$0xff]
        %v3253 = vld [vmem:[#allocation2 + $0xb0] sm:$0xff]
        %v3254 = vld [vmem:[#allocation2 + $0xb8] sm:$0xff]
        %v3255 = vld [vmem:[#allocation2 + $0xc0] sm:$0xff]
        %v3256 = vld [vmem:[#allocation2 + $0xc8] sm:$0xff]
        %v3257 = vld [vmem:[#allocation2 + $0xd0] sm:$0xff]
        %v3258 = vld [vmem:[#allocation2 + $0xd8] sm:$0xff]
        %v3259 = vld [vmem:[#allocation2 + $0xe0] sm:$0xff]
        %v3260 = vld [vmem:[#allocation2 + $0xe8] sm:$0xff]
        %v3261 = vld [vmem:[#allocation2 + $0xf0] sm:$0xff]
        %v3262 = vld [vmem:[#allocation2 + $0xf8] sm:$0xff]
        %v3263 = vld [vmem:[#allocation2 + $0x100] sm:$0xff]
        %v3264 = vld [vmem:[#allocation2 + $0x108] sm:$0xff]
        %v3265 = vld [vmem:[#allocation2 + $0x110] sm:$0xff]
        %v3266 = vld [vmem:[#allocation2 + $0x118] sm:$0xff]
        %v3267 = vld [vmem:[#allocation2 + $0x120] sm:$0xff]
        %v3268 = vld [vmem:[#allocation2 + $0x128] sm:$0xff]
        %v3269 = vld [vmem:[#allocation2 + $0x130] sm:$0xff]
        %v3270 = vld [vmem:[#allocation2 + $0x138] sm:$0xff]
        %v3271 = vld [vmem:[#allocation2 + $0x140] sm:$0xff]
        %v3272 = vld [vmem:[#allocation2 + $0x148] sm:$0xff]
        %v3273 = vld [vmem:[#allocation2 + $0x150] sm:$0xff]
        %v3274 = vld [vmem:[#allocation2 + $0x158] sm:$0xff]
        %v3275 = vld [vmem:[#allocation2 + $0x160] sm:$0xff]
        %v3276 = vld [vmem:[#allocation2 + $0x168] sm:$0xff]
        %v3277 = vld [vmem:[#allocation2 + $0x170] sm:$0xff]
        %v3278 = vld [vmem:[#allocation2 + $0x178] sm:$0xff]
        %v3279 = vld [vmem:[#allocation2 + $0x180] sm:$0xff]
        %v3280 = vld [vmem:[#allocation2 + $0x188] sm:$0xff]
        %v3281 = vld [vmem:[#allocation2 + $0x190] sm:$0xff]
        %v3282 = vld [vmem:[#allocation2 + $0x198] sm:$0xff]
        %v3283 = vld [vmem:[#allocation2 + $0x1a0] sm:$0xff]
        %v3284 = vld [vmem:[#allocation2 + $0x1a8] sm:$0xff]
        %v3285 = vld [vmem:[#allocation2 + $0x1b0] sm:$0xff]
        %v3286 = vld [vmem:[#allocation2 + $0x1b8] sm:$0xff]
        %v3287 = vld [vmem:[#allocation2 + $0x1c0] sm:$0xff]
        %v3288 = vld [vmem:[#allocation2 + $0x1c8] sm:$0xff]
        %v3289 = vld [vmem:[#allocation2 + $0x1d0] sm:$0xff]
        %v3290 = vld [vmem:[#allocation2 + $0x1d8] sm:$0xff]
        %v3291 = vld [vmem:[#allocation2 + $0x1e0] sm:$0xff]
        %v3292 = vld [vmem:[#allocation2 + $0x1e8] sm:$0xff]
        %v3293 = vld [vmem:[#allocation2 + $0x1f0] sm:$0xff]
        %v3294 = vld [vmem:[#allocation2 + $0x1f8] sm:$0xff]
        %v3295 = vld [vmem:[#allocation2 + $0x200] sm:$0xff]
        %v3296 = vld [vmem:[#allocation2 + $0x208] sm:$0xff]
        %v3297 = vld [vmem:[#allocation2 + $0x210] sm:$0xff]
        %v3298 = vld [vmem:[#allocation2 + $0x218] sm:$0xff]
        %v3299 = vld [vmem:[#allocation2 + $0x220] sm:$0xff]
        %v3300 = vld [vmem:[#allocation2 + $0x228] sm:$0xff]
        %v3301 = vld [vmem:[#allocation2 + $0x230] sm:$0xff]
        %v3302 = vld [vmem:[#allocation2 + $0x238] sm:$0xff]
        %v3303 = vld [vmem:[#allocation2 + $0x240] sm:$0xff]
        %v3304 = vld [vmem:[#allocation2 + $0x248] sm:$0xff]
        %v3305 = vld [vmem:[#allocation2 + $0x250] sm:$0xff]
        %v3306 = vld [vmem:[#allocation2 + $0x258] sm:$0xff]
        %v3307 = vld [vmem:[#allocation2 + $0x260] sm:$0xff]
        %v3308 = vld [vmem:[#allocation2 + $0x268] sm:$0xff]
        %v3309 = vld [vmem:[#allocation2 + $0x270] sm:$0xff]
        %v3310 = vld [vmem:[#allocation2 + $0x278] sm:$0xff]
        %v3311 = vld [vmem:[%s1] sm:$0xf]
        %v3312 = vld [vmem:[%s1 + $0x4] sm:$0xf]
        %v3313 = vld [vmem:[%s1 + $0x8] sm:$0xf]
        %v3314 = vld [vmem:[%s1 + $0xc] sm:$0xf]
        %v3315 = vld [vmem:[%s1 + $0x10] sm:$0xf]
        %v3316 = vld [vmem:[%s1 + $0x14] sm:$0xf]
        %v3317 = vld [vmem:[%s1 + $0x18] sm:$0xf]
        %v3318 = vld [vmem:[%s1 + $0x1c] sm:$0xf]
        %v3319 = vld [vmem:[%s1 + $0x20] sm:$0xf]
        %v3320 = vld [vmem:[%s1 + $0x24] sm:$0xf]
        %v3321 = vld [vmem:[%s1 + $0x28] sm:$0xf]
        %v3322 = vld [vmem:[%s1 + $0x2c] sm:$0xf]
        %v3323 = vld [vmem:[%s1 + $0x30] sm:$0xf]
        %v3324 = vld [vmem:[%s1 + $0x34] sm:$0xf]
        %v3325 = vld [vmem:[%s1 + $0x38] sm:$0xf]
        %v3326 = vld [vmem:[%s1 + $0x3c] sm:$0xf]
        %v3327 = vld [vmem:[%s1 + $0x40] sm:$0xf]
        %v3328 = vld [vmem:[%s1 + $0x44] sm:$0xf]
        %v3329 = vld [vmem:[%s1 + $0x48] sm:$0xf]
        %v3330 = vld [vmem:[%s1 + $0x4c] sm:$0xf]
        %v3331 = vld [vmem:[%s1 + $0x50] sm:$0xf]
        %v3332 = vld [vmem:[%s1 + $0x54] sm:$0xf]
        %v3333 = vld [vmem:[%s1 + $0x58] sm:$0xf]
        %v3334 = vld [vmem:[%s1 + $0x5c] sm:$0xf]
        %v3335 = vld [vmem:[%s1 + $0x60] sm:$0xf]
        %v3336 = vld [vmem:[%s1 + $0x64] sm:$0xf]
        %v3337 = vld [vmem:[%s1 + $0x68] sm:$0xf]
        %v3338 = vld [vmem:[%s1 + $0x6c] sm:$0xf]
        %v3339 = vld [vmem:[%s1 + $0x70] sm:$0xf]
        %v3340 = vld [vmem:[%s1 + $0x74] sm:$0xf]
        %v3341 = vld [vmem:[%s1 + $0x78] sm:$0xf]
        %v3342 = vld [vmem:[%s1 + $0x7c] sm:$0xf]
        %v3343 = vld [vmem:[%s1 + $0x80] sm:$0xf]
        %v3344 = vld [vmem:[%s1 + $0x84] sm:$0xf]
        %v3345 = vld [vmem:[%s1 + $0x88] sm:$0xf]
        %v3346 = vld [vmem:[%s1 + $0x8c] sm:$0xf]
        %v3347 = vld [vmem:[%s1 + $0x90] sm:$0xf]
        %v3348 = vld [vmem:[%s1 + $0x94] sm:$0xf]
        %v3349 = vld [vmem:[%s1 + $0x98] sm:$0xf]
        %v3350 = vld [vmem:[%s1 + $0x9c] sm:$0xf]
        %v3351 = vld [vmem:[%s1 + $0xa0] sm:$0xf]
        %v3352 = vld [vmem:[%s1 + $0xa4] sm:$0xf]
        %v3353 = vld [vmem:[%s1 + $0xa8] sm:$0xf]
        %v3354 = vld [vmem:[%s1 + $0xac] sm:$0xf]
        %v3355 = vld [vmem:[%s1 + $0xb0] sm:$0xf]
        %v3356 = vld [vmem:[%s1 + $0xb4] sm:$0xf]
        %v3357 = vld [vmem:[%s1 + $0xb8] sm:$0xf]
        %v3358 = vld [vmem:[%s1 + $0xbc] sm:$0xf]
        %v3359 = vld [vmem:[%s1 + $0xc0] sm:$0xf]
        %v3360 = vld [vmem:[%s1 + $0xc4] sm:$0xf]
        %v3361 = vld [vmem:[%s1 + $0xc8] sm:$0xf]
        %v3362 = vld [vmem:[%s1 + $0xcc] sm:$0xf]
        %v3363 = vld [vmem:[%s1 + $0xd0] sm:$0xf]
        %v3364 = vld [vmem:[%s1 + $0xd4] sm:$0xf]
        %v3365 = vld [vmem:[%s1 + $0xd8] sm:$0xf]
        %v3366 = vld [vmem:[%s1 + $0xdc] sm:$0xf]
        %v3367 = vld [vmem:[%s1 + $0xe0] sm:$0xf]
        %v3368 = vld [vmem:[%s1 + $0xe4] sm:$0xf]
        %v3369 = vld [vmem:[%s1 + $0xe8] sm:$0xf]
        %v3370 = vld [vmem:[%s1 + $0xec] sm:$0xf]
        %v3371 = vld [vmem:[%s1 + $0xf0] sm:$0xf]
        %v3372 = vld [vmem:[%s1 + $0xf4] sm:$0xf]
        %v3373 = vld [vmem:[%s1 + $0xf8] sm:$0xf]
        %v3374 = vld [vmem:[%s1 + $0xfc] sm:$0xf]
        %v3375 = vld [vmem:[%s1 + $0x100] sm:$0xf]
        %v3376 = vld [vmem:[%s1 + $0x104] sm:$0xf]
        %v3377 = vld [vmem:[%s1 + $0x108] sm:$0xf]
        %v3378 = vld [vmem:[%s1 + $0x10c] sm:$0xf]
        %v3379 = vld [vmem:[%s1 + $0x110] sm:$0xf]
        %v3380 = vld [vmem:[%s1 + $0x114] sm:$0xf]
        %v3381 = vld [vmem:[%s1 + $0x118] sm:$0xf]
        %v3382 = vld [vmem:[%s1 + $0x11c] sm:$0xf]
        %v3455 = vunpack.c.l.b16 %v3311
        %v3456 = vunpack.c.l.b16 %v3312
        %v3457 = vunpack.c.l.b16 %v3313
        %v3458 = vunpack.c.l.b16 %v3314
        %v3459 = vunpack.c.l.b16 %v3315
        %v3460 = vunpack.c.l.b16 %v3316
        %v3461 = vunpack.c.l.b16 %v3317
        %v3462 = vunpack.c.l.b16 %v3318
        %v3463 = vunpack.c.l.b16 %v3319
        %v3464 = vunpack.c.l.b16 %v3320
        %v3465 = vunpack.c.l.b16 %v3321
        %v3466 = vunpack.c.l.b16 %v3322
        %v3467 = vunpack.c.l.b16 %v3323
        %v3468 = vunpack.c.l.b16 %v3324
        %v3469 = vunpack.c.l.b16 %v3325
        %v3470 = vunpack.c.l.b16 %v3326
        %v3471 = vunpack.c.l.b16 %v3327
        %v3472 = vunpack.c.l.b16 %v3328
        %v3473 = vunpack.c.l.b16 %v3329
        %v3474 = vunpack.c.l.b16 %v3330
        %v3475 = vunpack.c.l.b16 %v3331
        %v3476 = vunpack.c.l.b16 %v3332
        %v3477 = vunpack.c.l.b16 %v3333
        %v3478 = vunpack.c.l.b16 %v3334
        %v3479 = vunpack.c.l.b16 %v3335
        %v3480 = vunpack.c.l.b16 %v3336
        %v3481 = vunpack.c.l.b16 %v3337
        %v3482 = vunpack.c.l.b16 %v3338
        %v3483 = vunpack.c.l.b16 %v3339
        %v3484 = vunpack.c.l.b16 %v3340
        %v3485 = vunpack.c.l.b16 %v3341
        %v3486 = vunpack.c.l.b16 %v3342
        %v3487 = vunpack.c.l.b16 %v3343
        %v3488 = vunpack.c.l.b16 %v3344
        %v3489 = vunpack.c.l.b16 %v3345
        %v3490 = vunpack.c.l.b16 %v3346
        %v3491 = vunpack.c.l.b16 %v3347
        %v3492 = vunpack.c.l.b16 %v3348
        %v3493 = vunpack.c.l.b16 %v3349
        %v3494 = vunpack.c.l.b16 %v3350
        %v3495 = vunpack.c.l.b16 %v3351
        %v3496 = vunpack.c.l.b16 %v3352
        %v3497 = vunpack.c.l.b16 %v3353
        %v3498 = vunpack.c.l.b16 %v3354
        %v3499 = vunpack.c.l.b16 %v3355
        %v3500 = vunpack.c.l.b16 %v3356
        %v3501 = vunpack.c.l.b16 %v3357
        %v3502 = vunpack.c.l.b16 %v3358
        %v3503 = vunpack.c.l.b16 %v3359
        %v3504 = vunpack.c.l.b16 %v3360
        %v3505 = vunpack.c.l.b16 %v3361
        %v3506 = vunpack.c.l.b16 %v3362
        %v3507 = vunpack.c.l.b16 %v3363
        %v3508 = vunpack.c.l.b16 %v3364
        %v3509 = vunpack.c.l.b16 %v3365
        %v3510 = vunpack.c.l.b16 %v3366
        %v3511 = vunpack.c.l.b16 %v3367
        %v3512 = vunpack.c.l.b16 %v3368
        %v3513 = vunpack.c.l.b16 %v3369
        %v3514 = vunpack.c.l.b16 %v3370
        %v3515 = vunpack.c.l.b16 %v3371
        %v3516 = vunpack.c.l.b16 %v3372
        %v3517 = vunpack.c.l.b16 %v3373
        %v3518 = vunpack.c.l.b16 %v3374
        %v3519 = vunpack.c.l.b16 %v3375
        %v3520 = vunpack.c.l.b16 %v3376
        %v3521 = vunpack.c.l.b16 %v3377
        %v3522 = vunpack.c.l.b16 %v3378
        %v3523 = vunpack.c.l.b16 %v3379
        %v3524 = vunpack.c.l.b16 %v3380
        %v3525 = vunpack.c.l.b16 %v3381
        %v3526 = vunpack.c.l.b16 %v3382
        %v3527 = vpack.c.b16 %v3456, %v3455
        %v3528 = vpack.c.b16 %v3458, %v3457
        %v3529 = vpack.c.b16 %v3460, %v3459
        %v3530 = vpack.c.b16 %v3462, %v3461
        %v3531 = vpack.c.b16 %v3464, %v3463
        %v3532 = vpack.c.b16 %v3466, %v3465
        %v3533 = vpack.c.b16 %v3468, %v3467
        %v3534 = vpack.c.b16 %v3470, %v3469
        %v3535 = vpack.c.b16 %v3472, %v3471
        %v3536 = vpack.c.b16 %v3474, %v3473
        %v3537 = vpack.c.b16 %v3476, %v3475
        %v3538 = vpack.c.b16 %v3478, %v3477
        %v3539 = vpack.c.b16 %v3480, %v3479
        %v3540 = vpack.c.b16 %v3482, %v3481
        %v3541 = vpack.c.b16 %v3484, %v3483
        %v3542 = vpack.c.b16 %v3486, %v3485
        %v3543 = vpack.c.b16 %v3488, %v3487
        %v3544 = vpack.c.b16 %v3490, %v3489
        %v3545 = vpack.c.b16 %v3492, %v3491
        %v3546 = vpack.c.b16 %v3494, %v3493
        %v3547 = vpack.c.b16 %v3496, %v3495
        %v3548 = vpack.c.b16 %v3498, %v3497
        %v3549 = vpack.c.b16 %v3500, %v3499
        %v3550 = vpack.c.b16 %v3502, %v3501
        %v3551 = vpack.c.b16 %v3504, %v3503
        %v3552 = vpack.c.b16 %v3506, %v3505
        %v3553 = vpack.c.b16 %v3508, %v3507
        %v3554 = vpack.c.b16 %v3510, %v3509
        %v3555 = vpack.c.b16 %v3512, %v3511
        %v3556 = vpack.c.b16 %v3514, %v3513
        %v3557 = vpack.c.b16 %v3516, %v3515
        %v3558 = vpack.c.b16 %v3518, %v3517
        %v3559 = vpack.c.b16 %v3520, %v3519
        %v3560 = vpack.c.b16 %v3522, %v3521
        %v3561 = vpack.c.b16 %v3524, %v3523
        %v3562 = vpack.c.b16 %v3526, %v3525
        %v3600 = vsel %vm383, %v3235, 0
        %v3603 = vsel %vm383, %v3240, 0
        %v3606 = vsel %vm383, %v3245, 0
        %v3609 = vsel %vm383, %v3250, 0
        %v3612 = vsel %vm383, %v3255, 0
        %v3615 = vsel %vm383, %v3260, 0
        %v3618 = vsel %vm383, %v3265, 0
        %v3621 = vsel %vm383, %v3270, 0
        %v3624 = vsel %vm383, %v3275, 0
        %v3627 = vsel %vm383, %v3280, 0
        %v3630 = vsel %vm383, %v3285, 0
        %v3633 = vsel %vm383, %v3290, 0
        %v3636 = vsel %vm383, %v3295, 0
        %v3639 = vsel %vm383, %v3300, 0
        %v3642 = vsel %vm383, %v3305, 0
        %v3645 = vsel %vm383, %v3310, 0
        %3647 = vmatprep.subr.bf16.mxu0 0
        %3648 = vmatpush1.bf16.msra.mxu0 %v3527
        %3649 = vmatprep.subr.bf16.mxu0 0
        %3650 = vmatpush1.bf16.msra.mxu0 %v3528
        %3651 = vmatprep.subr.bf16.mxu0 0
        %3652 = vmatpush1.bf16.msra.mxu0 %v3529
        %3653 = vmatprep.subr.bf16.mxu0 0
        %3654 = vmatpush1.bf16.msra.mxu0 %v3530
        %3655 = vmatprep.subr.bf16.mxu0 0
        %3656 = vmatpush1.bf16.msra.mxu0 %v3531
        %3657 = vmatprep.subr.bf16.mxu0 0
        %3658 = vmatpush1.bf16.msra.mxu0 %v3532
        %3659 = vmatprep.subr.bf16.mxu0 0
        %3660 = vmatpush1.bf16.msra.mxu0 %v3533
        %3661 = vmatprep.subr.bf16.mxu0 0
        %3662 = vmatpush1.bf16.msra.mxu0 %v3534
        %3663 = vmatprep.subr.bf16.mxu0 0
        %3664 = vmatpush1.bf16.msra.mxu0 %v3535
        %3665 = vmatprep.subr.bf16.mxu0 0
        %3666 = vmatpush1.bf16.msra.mxu0 %v3536
        %3667 = vmatprep.subr.bf16.mxu0 0
        %3668 = vmatpush1.bf16.msra.mxu0 %v3537
        %3669 = vmatprep.subr.bf16.mxu0 0
        %3670 = vmatpush1.bf16.msra.mxu0 %v3538
        %3671 = vmatprep.subr.bf16.mxu0 0
        %3672 = vmatpush1.bf16.msra.mxu0 %v3539
        %3673 = vmatprep.subr.bf16.mxu0 0
        %3674 = vmatpush1.bf16.msra.mxu0 %v3540
        %3675 = vmatprep.subr.bf16.mxu0 0
        %3676 = vmatpush1.bf16.msra.mxu0 %v3541
        %3677 = vmatprep.subr.bf16.mxu0 0
        %3678 = vmatpush1.bf16.msra.mxu0 %v3542
        %3679 = vmatprep.mubr.bf16.mxu0 %v3232
        %3680 = vmatmul.mubr.bf16.gmra.mrb[0].mxu0 %v3231
        %v3681 = vpop.f32.mrb[0].mxu0
        %v3682 = vadd.f32 0.0, %v3681
        %v3683 = vpop.f32.mrb[0].mxu0
        %v3684 = vpop.f32.mrb[0].mxu0
        %v3685 = vadd.f32 0.0, %v3684
        %v3686 = vpop.f32.mrb[0].mxu0
        %3687 = vmatprep.mubr.bf16.mxu0 %v3237
        %3688 = vmatmul.mubr.bf16.gmra.mrb[0].mxu0 %v3236
        %v3689 = vpop.f32.mrb[0].mxu0
        %v3690 = vadd.f32 0.0, %v3689
        %v3691 = vpop.f32.mrb[0].mxu0
        %v3692 = vpop.f32.mrb[0].mxu0
        %v3693 = vadd.f32 0.0, %v3692
        %v3694 = vpop.f32.mrb[0].mxu0
        %3695 = vmatprep.mubr.bf16.mxu0 %v3242
        %3696 = vmatmul.mubr.bf16.gmra.mrb[0].mxu0 %v3241
        %v3697 = vpop.f32.mrb[0].mxu0
        %v3698 = vadd.f32 0.0, %v3697
        %v3699 = vpop.f32.mrb[0].mxu0
        %v3700 = vpop.f32.mrb[0].mxu0
        %v3701 = vadd.f32 0.0, %v3700
        %v3702 = vpop.f32.mrb[0].mxu0
        %3703 = vmatprep.mubr.bf16.mxu0 %v3247
        %3704 = vmatmul.mubr.bf16.gmra.mrb[0].mxu0 %v3246
        %v3705 = vpop.f32.mrb[0].mxu0
        %v3706 = vadd.f32 0.0, %v3705
        %v3707 = vpop.f32.mrb[0].mxu0
        %v3708 = vpop.f32.mrb[0].mxu0
        %v3709 = vadd.f32 0.0, %v3708
        %v3710 = vpop.f32.mrb[0].mxu0
        %3711 = vmatprep.mubr.bf16.mxu0 %v3252
        %3712 = vmatmul.mubr.bf16.gmra.mrb[0].mxu0 %v3251
        %v3713 = vpop.f32.mrb[0].mxu0
        %v3714 = vadd.f32 0.0, %v3713
        %v3715 = vpop.f32.mrb[0].mxu0
        %v3716 = vpop.f32.mrb[0].mxu0
        %v3717 = vadd.f32 0.0, %v3716
        %v3718 = vpop.f32.mrb[0].mxu0
        %3719 = vmatprep.mubr.bf16.mxu0 %v3257
        %3720 = vmatmul.mubr.bf16.gmra.mrb[0].mxu0 %v3256
        %v3721 = vpop.f32.mrb[0].mxu0
        %v3722 = vadd.f32 0.0, %v3721
        %v3723 = vpop.f32.mrb[0].mxu0
        %v3724 = vpop.f32.mrb[0].mxu0
        %v3725 = vadd.f32 0.0, %v3724
        %v3726 = vpop.f32.mrb[0].mxu0
        %3727 = vmatprep.mubr.bf16.mxu0 %v3262
        %3728 = vmatmul.mubr.bf16.gmra.mrb[0].mxu0 %v3261
        %v3729 = vpop.f32.mrb[0].mxu0
        %v3730 = vadd.f32 0.0, %v3729
        %v3731 = vpop.f32.mrb[0].mxu0
        %v3732 = vpop.f32.mrb[0].mxu0
        %v3733 = vadd.f32 0.0, %v3732
        %v3734 = vpop.f32.mrb[0].mxu0
        %3735 = vmatprep.mubr.bf16.mxu0 %v3267
        %3736 = vmatmul.mubr.bf16.gmra.mrb[0].mxu0 %v3266
        %v3737 = vpop.f32.mrb[0].mxu0
        %v3738 = vadd.f32 0.0, %v3737
        %v3739 = vpop.f32.mrb[0].mxu0
        %v3740 = vpop.f32.mrb[0].mxu0
        %v3741 = vadd.f32 0.0, %v3740
        %v3742 = vpop.f32.mrb[0].mxu0
        %3743 = vmatprep.mubr.bf16.mxu0 %v3272
        %3744 = vmatmul.mubr.bf16.gmra.mrb[0].mxu0 %v3271
        %v3745 = vpop.f32.mrb[0].mxu0
        %v3746 = vadd.f32 0.0, %v3745
        %v3747 = vpop.f32.mrb[0].mxu0
        %v3748 = vpop.f32.mrb[0].mxu0
        %v3749 = vadd.f32 0.0, %v3748
        %v3750 = vpop.f32.mrb[0].mxu0
        %3751 = vmatprep.mubr.bf16.mxu0 %v3277
        %3752 = vmatmul.mubr.bf16.gmra.mrb[0].mxu0 %v3276
        %v3753 = vpop.f32.mrb[0].mxu0
        %v3754 = vadd.f32 0.0, %v3753
        %v3755 = vpop.f32.mrb[0].mxu0
        %v3756 = vpop.f32.mrb[0].mxu0
        %v3757 = vadd.f32 0.0, %v3756
        %v3758 = vpop.f32.mrb[0].mxu0
        %3759 = vmatprep.mubr.bf16.mxu0 %v3282
        %3760 = vmatmul.mubr.bf16.gmra.mrb[0].mxu0 %v3281
        %v3761 = vpop.f32.mrb[0].mxu0
        %v3762 = vadd.f32 0.0, %v3761
        %v3763 = vpop.f32.mrb[0].mxu0
        %v3764 = vpop.f32.mrb[0].mxu0
        %v3765 = vadd.f32 0.0, %v3764
        %v3766 = vpop.f32.mrb[0].mxu0
        %3767 = vmatprep.mubr.bf16.mxu0 %v3287
        %3768 = vmatmul.mubr.bf16.gmra.mrb[0].mxu0 %v3286
        %v3769 = vpop.f32.mrb[0].mxu0
        %v3770 = vadd.f32 0.0, %v3769
        %v3771 = vpop.f32.mrb[0].mxu0
        %v3772 = vpop.f32.mrb[0].mxu0
        %v3773 = vadd.f32 0.0, %v3772
        %v3774 = vpop.f32.mrb[0].mxu0
        %3775 = vmatprep.mubr.bf16.mxu0 %v3292
        %3776 = vmatmul.mubr.bf16.gmra.mrb[0].mxu0 %v3291
        %v3777 = vpop.f32.mrb[0].mxu0
        %v3778 = vadd.f32 0.0, %v3777
        %v3779 = vpop.f32.mrb[0].mxu0
        %v3780 = vpop.f32.mrb[0].mxu0
        %v3781 = vadd.f32 0.0, %v3780
        %v3782 = vpop.f32.mrb[0].mxu0
        %3783 = vmatprep.mubr.bf16.mxu0 %v3297
        %3784 = vmatmul.mubr.bf16.gmra.mrb[0].mxu0 %v3296
        %v3785 = vpop.f32.mrb[0].mxu0
        %v3786 = vadd.f32 0.0, %v3785
        %v3787 = vpop.f32.mrb[0].mxu0
        %v3788 = vpop.f32.mrb[0].mxu0
        %v3789 = vadd.f32 0.0, %v3788
        %v3790 = vpop.f32.mrb[0].mxu0
        %3791 = vmatprep.mubr.bf16.mxu0 %v3302
        %3792 = vmatmul.mubr.bf16.gmra.mrb[0].mxu0 %v3301
        %v3793 = vpop.f32.mrb[0].mxu0
        %v3794 = vadd.f32 0.0, %v3793
        %v3795 = vpop.f32.mrb[0].mxu0
        %v3796 = vpop.f32.mrb[0].mxu0
        %v3797 = vadd.f32 0.0, %v3796
        %v3798 = vpop.f32.mrb[0].mxu0
        %3799 = vmatprep.mubr.bf16.mxu0 %v3307
        %3800 = vmatmul.mubr.bf16.gmra.mrb[0].mxu0 %v3306
        %v3801 = vpop.f32.mrb[0].mxu0
        %v3802 = vadd.f32 0.0, %v3801
        %v3803 = vpop.f32.mrb[0].mxu0
        %v3804 = vpop.f32.mrb[0].mxu0
        %v3805 = vadd.f32 0.0, %v3804
        %v3806 = vpop.f32.mrb[0].mxu0
        %3807 = vdwg.mxu0
        %3808 = vmatprep.subr.bf16.mxu0 0
        %3809 = vmatpush1.bf16.msra.mxu0 %v3543
        %3810 = vmatprep.subr.bf16.mxu0 0
        %3811 = vmatpush1.bf16.msra.mxu0 %v3544
        %3812 = vmatprep.subr.bf16.mxu0 0
        %3813 = vmatpush1.bf16.msra.mxu0 %v3545
        %3814 = vmatprep.subr.bf16.mxu0 0
        %3815 = vmatpush1.bf16.msra.mxu0 %v3546
        %3816 = vmatprep.subr.bf16.mxu0 0
        %3817 = vmatpush1.bf16.msra.mxu0 %v3547
        %3818 = vmatprep.subr.bf16.mxu0 0
        %3819 = vmatpush1.bf16.msra.mxu0 %v3548
        %3820 = vmatprep.subr.bf16.mxu0 0
        %3821 = vmatpush1.bf16.msra.mxu0 %v3549
        %3822 = vmatprep.subr.bf16.mxu0 0
        %3823 = vmatpush1.bf16.msra.mxu0 %v3550
        %3824 = vmatprep.subr.bf16.mxu0 0
        %3825 = vmatpush1.bf16.msra.mxu0 %v3551
        %3826 = vmatprep.subr.bf16.mxu0 0
        %3827 = vmatpush1.bf16.msra.mxu0 %v3552
        %3828 = vmatprep.subr.bf16.mxu0 0
        %3829 = vmatpush1.bf16.msra.mxu0 %v3553
        %3830 = vmatprep.subr.bf16.mxu0 0
        %3831 = vmatpush1.bf16.msra.mxu0 %v3554
        %3832 = vmatprep.subr.bf16.mxu0 0
        %3833 = vmatpush1.bf16.msra.mxu0 %v3555
        %3834 = vmatprep.subr.bf16.mxu0 0
        %3835 = vmatpush1.bf16.msra.mxu0 %v3556
        %3836 = vmatprep.subr.bf16.mxu0 0
        %3837 = vmatpush1.bf16.msra.mxu0 %v3557
        %3838 = vmatprep.subr.bf16.mxu0 0
        %3839 = vmatpush1.bf16.msra.mxu0 %v3558
        %3840 = vmatprep.mubr.bf16.mxu0 %v3234
        %3841 = vmatmul.mubr.bf16.gmra.mrb[0].mxu0 %v3233
        %v3842 = vpop.f32.mrb[0].mxu0
        %v3843 = vadd.f32 %v3682, %v3842
        %v3844 = vpop.f32.mrb[0].mxu0
        %v3845 = vpop.f32.mrb[0].mxu0
        %v3846 = vadd.f32 %v3685, %v3845
        %v3847 = vpop.f32.mrb[0].mxu0
        %3848 = vmatprep.mubr.bf16.mxu0 %v3239
        %3849 = vmatmul.mubr.bf16.gmra.mrb[0].mxu0 %v3238
        %v3850 = vpop.f32.mrb[0].mxu0
        %v3851 = vadd.f32 %v3690, %v3850
        %v3852 = vpop.f32.mrb[0].mxu0
        %v3853 = vpop.f32.mrb[0].mxu0
        %v3854 = vadd.f32 %v3693, %v3853
        %v3855 = vpop.f32.mrb[0].mxu0
        %3856 = vmatprep.mubr.bf16.mxu0 %v3244
        %3857 = vmatmul.mubr.bf16.gmra.mrb[0].mxu0 %v3243
        %v3858 = vpop.f32.mrb[0].mxu0
        %v3859 = vadd.f32 %v3698, %v3858
        %v3860 = vpop.f32.mrb[0].mxu0
        %v3861 = vpop.f32.mrb[0].mxu0
        %v3862 = vadd.f32 %v3701, %v3861
        %v3863 = vpop.f32.mrb[0].mxu0
        %3864 = vmatprep.mubr.bf16.mxu0 %v3249
        %3865 = vmatmul.mubr.bf16.gmra.mrb[0].mxu0 %v3248
        %v3866 = vpop.f32.mrb[0].mxu0
        %v3867 = vadd.f32 %v3706, %v3866
        %v3868 = vpop.f32.mrb[0].mxu0
        %v3869 = vpop.f32.mrb[0].mxu0
        %v3870 = vadd.f32 %v3709, %v3869
        %v3871 = vpop.f32.mrb[0].mxu0
        %3872 = vmatprep.mubr.bf16.mxu0 %v3254
        %3873 = vmatmul.mubr.bf16.gmra.mrb[0].mxu0 %v3253
        %v3874 = vpop.f32.mrb[0].mxu0
        %v3875 = vadd.f32 %v3714, %v3874
        %v3876 = vpop.f32.mrb[0].mxu0
        %v3877 = vpop.f32.mrb[0].mxu0
        %v3878 = vadd.f32 %v3717, %v3877
        %v3879 = vpop.f32.mrb[0].mxu0
        %3880 = vmatprep.mubr.bf16.mxu0 %v3259
        %3881 = vmatmul.mubr.bf16.gmra.mrb[0].mxu0 %v3258
        %v3882 = vpop.f32.mrb[0].mxu0
        %v3883 = vadd.f32 %v3722, %v3882
        %v3884 = vpop.f32.mrb[0].mxu0
        %v3885 = vpop.f32.mrb[0].mxu0
        %v3886 = vadd.f32 %v3725, %v3885
        %v3887 = vpop.f32.mrb[0].mxu0
        %3888 = vmatprep.mubr.bf16.mxu0 %v3264
        %3889 = vmatmul.mubr.bf16.gmra.mrb[0].mxu0 %v3263
        %v3890 = vpop.f32.mrb[0].mxu0
        %v3891 = vadd.f32 %v3730, %v3890
        %v3892 = vpop.f32.mrb[0].mxu0
        %v3893 = vpop.f32.mrb[0].mxu0
        %v3894 = vadd.f32 %v3733, %v3893
        %v3895 = vpop.f32.mrb[0].mxu0
        %3896 = vmatprep.mubr.bf16.mxu0 %v3269
        %3897 = vmatmul.mubr.bf16.gmra.mrb[0].mxu0 %v3268
        %v3898 = vpop.f32.mrb[0].mxu0
        %v3899 = vadd.f32 %v3738, %v3898
        %v3900 = vpop.f32.mrb[0].mxu0
        %v3901 = vpop.f32.mrb[0].mxu0
        %v3902 = vadd.f32 %v3741, %v3901
        %v3903 = vpop.f32.mrb[0].mxu0
        %3904 = vmatprep.mubr.bf16.mxu0 %v3274
        %3905 = vmatmul.mubr.bf16.gmra.mrb[0].mxu0 %v3273
        %v3906 = vpop.f32.mrb[0].mxu0
        %v3907 = vadd.f32 %v3746, %v3906
        %v3908 = vpop.f32.mrb[0].mxu0
        %v3909 = vpop.f32.mrb[0].mxu0
        %v3910 = vadd.f32 %v3749, %v3909
        %v3911 = vpop.f32.mrb[0].mxu0
        %3912 = vmatprep.mubr.bf16.mxu0 %v3279
        %3913 = vmatmul.mubr.bf16.gmra.mrb[0].mxu0 %v3278
        %v3914 = vpop.f32.mrb[0].mxu0
        %v3915 = vadd.f32 %v3754, %v3914
        %v3916 = vpop.f32.mrb[0].mxu0
        %v3917 = vpop.f32.mrb[0].mxu0
        %v3918 = vadd.f32 %v3757, %v3917
        %v3919 = vpop.f32.mrb[0].mxu0
        %3920 = vmatprep.mubr.bf16.mxu0 %v3284
        %3921 = vmatmul.mubr.bf16.gmra.mrb[0].mxu0 %v3283
        %v3922 = vpop.f32.mrb[0].mxu0
        %v3923 = vadd.f32 %v3762, %v3922
        %v3924 = vpop.f32.mrb[0].mxu0
        %v3925 = vpop.f32.mrb[0].mxu0
        %v3926 = vadd.f32 %v3765, %v3925
        %v3927 = vpop.f32.mrb[0].mxu0
        %3928 = vmatprep.mubr.bf16.mxu0 %v3289
        %3929 = vmatmul.mubr.bf16.gmra.mrb[0].mxu0 %v3288
        %v3930 = vpop.f32.mrb[0].mxu0
        %v3931 = vadd.f32 %v3770, %v3930
        %v3932 = vpop.f32.mrb[0].mxu0
        %v3933 = vpop.f32.mrb[0].mxu0
        %v3934 = vadd.f32 %v3773, %v3933
        %v3935 = vpop.f32.mrb[0].mxu0
        %3936 = vmatprep.mubr.bf16.mxu0 %v3294
        %3937 = vmatmul.mubr.bf16.gmra.mrb[0].mxu0 %v3293
        %v3938 = vpop.f32.mrb[0].mxu0
        %v3939 = vadd.f32 %v3778, %v3938
        %v3940 = vpop.f32.mrb[0].mxu0
        %v3941 = vpop.f32.mrb[0].mxu0
        %v3942 = vadd.f32 %v3781, %v3941
        %v3943 = vpop.f32.mrb[0].mxu0
        %3944 = vmatprep.mubr.bf16.mxu0 %v3299
        %3945 = vmatmul.mubr.bf16.gmra.mrb[0].mxu0 %v3298
        %v3946 = vpop.f32.mrb[0].mxu0
        %v3947 = vadd.f32 %v3786, %v3946
        %v3948 = vpop.f32.mrb[0].mxu0
        %v3949 = vpop.f32.mrb[0].mxu0
        %v3950 = vadd.f32 %v3789, %v3949
        %v3951 = vpop.f32.mrb[0].mxu0
        %3952 = vmatprep.mubr.bf16.mxu0 %v3304
        %3953 = vmatmul.mubr.bf16.gmra.mrb[0].mxu0 %v3303
        %v3954 = vpop.f32.mrb[0].mxu0
        %v3955 = vadd.f32 %v3794, %v3954
        %v3956 = vpop.f32.mrb[0].mxu0
        %v3957 = vpop.f32.mrb[0].mxu0
        %v3958 = vadd.f32 %v3797, %v3957
        %v3959 = vpop.f32.mrb[0].mxu0
        %3960 = vmatprep.mubr.bf16.mxu0 %v3309
        %3961 = vmatmul.mubr.bf16.gmra.mrb[0].mxu0 %v3308
        %v3962 = vpop.f32.mrb[0].mxu0
        %v3963 = vadd.f32 %v3802, %v3962
        %v3964 = vpop.f32.mrb[0].mxu0
        %v3965 = vpop.f32.mrb[0].mxu0
        %v3966 = vadd.f32 %v3805, %v3965
        %v3967 = vpop.f32.mrb[0].mxu0
        %3968 = vdwg.mxu0
        %3969 = vmatprep.subr.bf16.mxu0 0
        %3970 = vmatpush1.bf16.msra.mxu0 %v3559
        %3971 = vmatprep.subr.bf16.mxu0 0
        %3972 = vmatpush1.bf16.msra.mxu0 %v3560
        %3973 = vmatprep.subr.bf16.mxu0 0
        %3974 = vmatpush1.bf16.msra.mxu0 %v3561
        %3975 = vmatprep.subr.bf16.mxu0 0
        %3976 = vmatpush1.bf16.msra.mxu0 %v3562
        %3977 = vmatprep.subr.bf16.mxu0 0
        %3978 = vmatpush1.bf16.msra.mxu0 0
        %3979 = vmatprep.subr.bf16.mxu0 0
        %3980 = vmatpush1.bf16.msra.mxu0 0
        %3981 = vmatprep.subr.bf16.mxu0 0
        %3982 = vmatpush1.bf16.msra.mxu0 0
        %3983 = vmatprep.subr.bf16.mxu0 0
        %3984 = vmatpush1.bf16.msra.mxu0 0
        %3985 = vmatprep.subr.bf16.mxu0 0
        %3986 = vmatpush1.bf16.msra.mxu0 0
        %3987 = vmatprep.subr.bf16.mxu0 0
        %3988 = vmatpush1.bf16.msra.mxu0 0
        %3989 = vmatprep.subr.bf16.mxu0 0
        %3990 = vmatpush1.bf16.msra.mxu0 0
        %3991 = vmatprep.subr.bf16.mxu0 0
        %3992 = vmatpush1.bf16.msra.mxu0 0
        %3993 = vmatprep.subr.bf16.mxu0 0
        %3994 = vmatpush1.bf16.msra.mxu0 0
        %3995 = vmatprep.subr.bf16.mxu0 0
        %3996 = vmatpush1.bf16.msra.mxu0 0
        %3997 = vmatprep.subr.bf16.mxu0 0
        %3998 = vmatpush1.bf16.msra.mxu0 0
        %3999 = vmatprep.subr.bf16.mxu0 0
        %4000 = vmatpush1.bf16.msra.mxu0 0
        %4001 = vmatprep.mubr.bf16.mxu0 0
        %4002 = vmatmul.mubr.bf16.gmra.mrb[0].mxu0 %v3600
        %v4003 = vpop.f32.mrb[0].mxu0
        %v4004 = vadd.f32 %v3843, %v4003
        %v4005 = vpop.f32.mrb[0].mxu0
        %v4006 = vpop.f32.mrb[0].mxu0
        %v4007 = vadd.f32 %v3846, %v4006
        %v4008 = vpop.f32.mrb[0].mxu0
        %4009 = vmatprep.mubr.bf16.mxu0 0
        %4010 = vmatmul.mubr.bf16.gmra.mrb[0].mxu0 %v3603
        %v4011 = vpop.f32.mrb[0].mxu0
        %v4012 = vadd.f32 %v3851, %v4011
        %v4013 = vpop.f32.mrb[0].mxu0
        %v4014 = vpop.f32.mrb[0].mxu0
        %v4015 = vadd.f32 %v3854, %v4014
        %v4016 = vpop.f32.mrb[0].mxu0
        %4017 = vmatprep.mubr.bf16.mxu0 0
        %4018 = vmatmul.mubr.bf16.gmra.mrb[0].mxu0 %v3606
        %v4019 = vpop.f32.mrb[0].mxu0
        %v4020 = vadd.f32 %v3859, %v4019
        %v4021 = vpop.f32.mrb[0].mxu0
        %v4022 = vpop.f32.mrb[0].mxu0
        %v4023 = vadd.f32 %v3862, %v4022
        %v4024 = vpop.f32.mrb[0].mxu0
        %4025 = vmatprep.mubr.bf16.mxu0 0
        %4026 = vmatmul.mubr.bf16.gmra.mrb[0].mxu0 %v3609
        %v4027 = vpop.f32.mrb[0].mxu0
        %v4028 = vadd.f32 %v3867, %v4027
        %v4029 = vpop.f32.mrb[0].mxu0
        %v4030 = vpop.f32.mrb[0].mxu0
        %v4031 = vadd.f32 %v3870, %v4030
        %v4032 = vpop.f32.mrb[0].mxu0
        %4033 = vmatprep.mubr.bf16.mxu0 0
        %4034 = vmatmul.mubr.bf16.gmra.mrb[0].mxu0 %v3612
        %v4035 = vpop.f32.mrb[0].mxu0
        %v4036 = vadd.f32 %v3875, %v4035
        %v4037 = vpop.f32.mrb[0].mxu0
        %v4038 = vpop.f32.mrb[0].mxu0
        %v4039 = vadd.f32 %v3878, %v4038
        %v4040 = vpop.f32.mrb[0].mxu0
        %4041 = vmatprep.mubr.bf16.mxu0 0
        %4042 = vmatmul.mubr.bf16.gmra.mrb[0].mxu0 %v3615
        %v4043 = vpop.f32.mrb[0].mxu0
        %v4044 = vadd.f32 %v3883, %v4043
        %v4045 = vpop.f32.mrb[0].mxu0
        %v4046 = vpop.f32.mrb[0].mxu0
        %v4047 = vadd.f32 %v3886, %v4046
        %v4048 = vpop.f32.mrb[0].mxu0
        %4049 = vmatprep.mubr.bf16.mxu0 0
        %4050 = vmatmul.mubr.bf16.gmra.mrb[0].mxu0 %v3618
        %v4051 = vpop.f32.mrb[0].mxu0
        %v4052 = vadd.f32 %v3891, %v4051
        %v4053 = vpop.f32.mrb[0].mxu0
        %v4054 = vpop.f32.mrb[0].mxu0
        %v4055 = vadd.f32 %v3894, %v4054
        %v4056 = vpop.f32.mrb[0].mxu0
        %4057 = vmatprep.mubr.bf16.mxu0 0
        %4058 = vmatmul.mubr.bf16.gmra.mrb[0].mxu0 %v3621
        %v4059 = vpop.f32.mrb[0].mxu0
        %v4060 = vadd.f32 %v3899, %v4059
        %v4061 = vpop.f32.mrb[0].mxu0
        %v4062 = vpop.f32.mrb[0].mxu0
        %v4063 = vadd.f32 %v3902, %v4062
        %v4064 = vpop.f32.mrb[0].mxu0
        %4065 = vmatprep.mubr.bf16.mxu0 0
        %4066 = vmatmul.mubr.bf16.gmra.mrb[0].mxu0 %v3624
        %v4067 = vpop.f32.mrb[0].mxu0
        %v4068 = vadd.f32 %v3907, %v4067
        %v4069 = vpop.f32.mrb[0].mxu0
        %v4070 = vpop.f32.mrb[0].mxu0
        %v4071 = vadd.f32 %v3910, %v4070
        %v4072 = vpop.f32.mrb[0].mxu0
        %4073 = vmatprep.mubr.bf16.mxu0 0
        %4074 = vmatmul.mubr.bf16.gmra.mrb[0].mxu0 %v3627
        %v4075 = vpop.f32.mrb[0].mxu0
        %v4076 = vadd.f32 %v3915, %v4075
        %v4077 = vpop.f32.mrb[0].mxu0
        %v4078 = vpop.f32.mrb[0].mxu0
        %v4079 = vadd.f32 %v3918, %v4078
        %v4080 = vpop.f32.mrb[0].mxu0
        %4081 = vmatprep.mubr.bf16.mxu0 0
        %4082 = vmatmul.mubr.bf16.gmra.mrb[0].mxu0 %v3630
        %v4083 = vpop.f32.mrb[0].mxu0
        %v4084 = vadd.f32 %v3923, %v4083
        %v4085 = vpop.f32.mrb[0].mxu0
        %v4086 = vpop.f32.mrb[0].mxu0
        %v4087 = vadd.f32 %v3926, %v4086
        %v4088 = vpop.f32.mrb[0].mxu0
        %4089 = vmatprep.mubr.bf16.mxu0 0
        %4090 = vmatmul.mubr.bf16.gmra.mrb[0].mxu0 %v3633
        %v4091 = vpop.f32.mrb[0].mxu0
        %v4092 = vadd.f32 %v3931, %v4091
        %v4093 = vpop.f32.mrb[0].mxu0
        %v4094 = vpop.f32.mrb[0].mxu0
        %v4095 = vadd.f32 %v3934, %v4094
        %v4096 = vpop.f32.mrb[0].mxu0
        %4097 = vmatprep.mubr.bf16.mxu0 0
        %4098 = vmatmul.mubr.bf16.gmra.mrb[0].mxu0 %v3636
        %v4099 = vpop.f32.mrb[0].mxu0
        %v4100 = vadd.f32 %v3939, %v4099
        %v4101 = vpop.f32.mrb[0].mxu0
        %v4102 = vpop.f32.mrb[0].mxu0
        %v4103 = vadd.f32 %v3942, %v4102
        %v4104 = vpop.f32.mrb[0].mxu0
        %4105 = vmatprep.mubr.bf16.mxu0 0
        %4106 = vmatmul.mubr.bf16.gmra.mrb[0].mxu0 %v3639
        %v4107 = vpop.f32.mrb[0].mxu0
        %v4108 = vadd.f32 %v3947, %v4107
        %v4109 = vpop.f32.mrb[0].mxu0
        %v4110 = vpop.f32.mrb[0].mxu0
        %v4111 = vadd.f32 %v3950, %v4110
        %v4112 = vpop.f32.mrb[0].mxu0
        %4113 = vmatprep.mubr.bf16.mxu0 0
        %4114 = vmatmul.mubr.bf16.gmra.mrb[0].mxu0 %v3642
        %v4115 = vpop.f32.mrb[0].mxu0
        %v4116 = vadd.f32 %v3955, %v4115
        %v4117 = vpop.f32.mrb[0].mxu0
        %v4118 = vpop.f32.mrb[0].mxu0
        %v4119 = vadd.f32 %v3958, %v4118
        %v4120 = vpop.f32.mrb[0].mxu0
        %4121 = vmatprep.mubr.bf16.mxu0 0
        %4122 = vmatmul.mubr.bf16.gmra.mrb[0].mxu0 %v3645
        %v4123 = vpop.f32.mrb[0].mxu0
        %v4124 = vadd.f32 %v3963, %v4123
        %v4125 = vpop.f32.mrb[0].mxu0
        %v4126 = vpop.f32.mrb[0].mxu0
        %v4127 = vadd.f32 %v3966, %v4126
        %v4128 = vpop.f32.mrb[0].mxu0
        %4129 = vdwg.mxu0
        %v4130 = vld [vmem:[%s2] sm:$0x1]
        %v4132 = vlaneseq
        %v4133 = vshrl.u32 %v4132, 7
        %v4134 = vsub.s32 0, %v4133
        %v4135 = vrot.slane %v4130, %v4134
        %v4137 = vmul.f32 %v4004, %v4135
        %v4138 = vmul.f32 %v4007, %v4135
        %v4139 = vmul.f32 %v4012, %v4135
        %v4140 = vmul.f32 %v4015, %v4135
        %v4141 = vmul.f32 %v4020, %v4135
        %v4142 = vmul.f32 %v4023, %v4135
        %v4143 = vmul.f32 %v4028, %v4135
        %v4144 = vmul.f32 %v4031, %v4135
        %v4145 = vmul.f32 %v4036, %v4135
        %v4146 = vmul.f32 %v4039, %v4135
        %v4147 = vmul.f32 %v4044, %v4135
        %v4148 = vmul.f32 %v4047, %v4135
        %v4149 = vmul.f32 %v4052, %v4135
        %v4150 = vmul.f32 %v4055, %v4135
        %v4151 = vmul.f32 %v4060, %v4135
        %v4152 = vmul.f32 %v4063, %v4135
        %v4153 = vmul.f32 %v4068, %v4135
        %v4154 = vmul.f32 %v4071, %v4135
        %v4155 = vmul.f32 %v4076, %v4135
        %v4156 = vmul.f32 %v4079, %v4135
        %v4157 = vmul.f32 %v4084, %v4135
        %v4158 = vmul.f32 %v4087, %v4135
        %v4159 = vmul.f32 %v4092, %v4135
        %v4160 = vmul.f32 %v4095, %v4135
        %v4161 = vmul.f32 %v4100, %v4135
        %v4162 = vmul.f32 %v4103, %v4135
        %v4163 = vmul.f32 %v4108, %v4135
        %v4164 = vmul.f32 %v4111, %v4135
        %v4165 = vmul.f32 %v4116, %v4135
        %v4166 = vmul.f32 %v4119, %v4135
        %v4167 = vmul.f32 %v4124, %v4135
        %v4168 = vmul.f32 %v4127, %v4135
        %v4169 = vld [vmem:[%s3] sm:$0x1]
        %v4171 = vlaneseq
        %v4172 = vshrl.u32 %v4171, 7
        %v4173 = vsub.s32 0, %v4172
        %v4174 = vrot.slane %v4169, %v4173
        %v4176 = vadd.f32 %v4137, %v4174
        %v4177 = vadd.f32 %v4138, %v4174
        %v4178 = vadd.f32 %v4139, %v4174
        %v4179 = vadd.f32 %v4140, %v4174
        %v4180 = vadd.f32 %v4141, %v4174
        %v4181 = vadd.f32 %v4142, %v4174
        %v4182 = vadd.f32 %v4143, %v4174
        %v4183 = vadd.f32 %v4144, %v4174
        %v4184 = vadd.f32 %v4145, %v4174
        %v4185 = vadd.f32 %v4146, %v4174
        %v4186 = vadd.f32 %v4147, %v4174
        %v4187 = vadd.f32 %v4148, %v4174
        %v4188 = vadd.f32 %v4149, %v4174
        %v4189 = vadd.f32 %v4150, %v4174
        %v4190 = vadd.f32 %v4151, %v4174
        %v4191 = vadd.f32 %v4152, %v4174
        %v4192 = vadd.f32 %v4153, %v4174
        %v4193 = vadd.f32 %v4154, %v4174
        %v4194 = vadd.f32 %v4155, %v4174
        %v4195 = vadd.f32 %v4156, %v4174
        %v4196 = vadd.f32 %v4157, %v4174
        %v4197 = vadd.f32 %v4158, %v4174
        %v4198 = vadd.f32 %v4159, %v4174
        %v4199 = vadd.f32 %v4160, %v4174
        %v4200 = vadd.f32 %v4161, %v4174
        %v4201 = vadd.f32 %v4162, %v4174
        %v4202 = vadd.f32 %v4163, %v4174
        %v4203 = vadd.f32 %v4164, %v4174
        %v4204 = vadd.f32 %v4165, %v4174
        %v4205 = vadd.f32 %v4166, %v4174
        %v4206 = vadd.f32 %v4167, %v4174
        %v4207 = vadd.f32 %v4168, %v4174
        %v4208 = vsel %vm383, %v4176, 0.0
        %v4209 = vsel %vm383, %v4177, 0.0
        %v4210 = vadd.f32 %v4208, %v4209
        %v4211 = vsel %vm383, %v4178, 0.0
        %v4212 = vadd.f32 %v4210, %v4211
        %v4213 = vsel %vm383, %v4179, 0.0
        %v4214 = vadd.f32 %v4212, %v4213
        %v4215 = vsel %vm383, %v4180, 0.0
        %v4216 = vadd.f32 %v4214, %v4215
        %v4217 = vsel %vm383, %v4181, 0.0
        %v4218 = vadd.f32 %v4216, %v4217
        %v4219 = vsel %vm383, %v4182, 0.0
        %v4220 = vadd.f32 %v4218, %v4219
        %v4221 = vsel %vm383, %v4183, 0.0
        %v4222 = vadd.f32 %v4220, %v4221
        %v4223 = vsel %vm383, %v4184, 0.0
        %v4224 = vadd.f32 %v4222, %v4223
        %v4225 = vsel %vm383, %v4185, 0.0
        %v4226 = vadd.f32 %v4224, %v4225
        %v4227 = vsel %vm383, %v4186, 0.0
        %v4228 = vadd.f32 %v4226, %v4227
        %v4229 = vsel %vm383, %v4187, 0.0
        %v4230 = vadd.f32 %v4228, %v4229
        %v4231 = vsel %vm383, %v4188, 0.0
        %v4232 = vadd.f32 %v4230, %v4231
        %v4233 = vsel %vm383, %v4189, 0.0
        %v4234 = vadd.f32 %v4232, %v4233
        %v4235 = vsel %vm383, %v4190, 0.0
        %v4236 = vadd.f32 %v4234, %v4235
        %v4237 = vsel %vm383, %v4191, 0.0
        %v4238 = vadd.f32 %v4236, %v4237
        %v4239 = vsel %vm383, %v4192, 0.0
        %v4240 = vadd.f32 %v4238, %v4239
        %v4241 = vsel %vm383, %v4193, 0.0
        %v4242 = vadd.f32 %v4240, %v4241
        %v4243 = vsel %vm383, %v4194, 0.0
        %v4244 = vadd.f32 %v4242, %v4243
        %v4245 = vsel %vm383, %v4195, 0.0
        %v4246 = vadd.f32 %v4244, %v4245
        %v4247 = vsel %vm383, %v4196, 0.0
        %v4248 = vadd.f32 %v4246, %v4247
        %v4249 = vsel %vm383, %v4197, 0.0
        %v4250 = vadd.f32 %v4248, %v4249
        %v4251 = vsel %vm383, %v4198, 0.0
        %v4252 = vadd.f32 %v4250, %v4251
        %v4253 = vsel %vm383, %v4199, 0.0
        %v4254 = vadd.f32 %v4252, %v4253
        %v4255 = vsel %vm383, %v4200, 0.0
        %v4256 = vadd.f32 %v4254, %v4255
        %v4257 = vsel %vm383, %v4201, 0.0
        %v4258 = vadd.f32 %v4256, %v4257
        %v4259 = vsel %vm383, %v4202, 0.0
        %v4260 = vadd.f32 %v4258, %v4259
        %v4261 = vsel %vm383, %v4203, 0.0
        %v4262 = vadd.f32 %v4260, %v4261
        %v4263 = vsel %vm383, %v4204, 0.0
        %v4264 = vadd.f32 %v4262, %v4263
        %v4265 = vsel %vm383, %v4205, 0.0
        %v4266 = vadd.f32 %v4264, %v4265
        %v4267 = vsel %vm383, %v4206, 0.0
        %v4268 = vadd.f32 %v4266, %v4267
        %v4269 = vsel %vm383, %v4207, 0.0
        %v4270 = vadd.f32 %v4268, %v4269
        %v4271 = vrot.slane %v4270, 4
        %v4272 = vadd.f32 %v4270, %v4271
        %v4273 = vrot.slane %v4272, 2
        %v4274 = vadd.f32 %v4272, %v4273
        %v4275 = vrot.slane %v4274, 1
        %v4276 = vadd.f32 %v4274, %v4275
        %vm4277 = vcmask 516096
        %4278 = vst.msk [vmem:[%s243] sm:$0x1] %vm4277, %v4276
        %v4279 = vmax.f32 %v4176, 0.0
        %v4280 = vmax.f32 %v4177, 0.0
        %v4281 = vmax.f32 %v4178, 0.0
        %v4282 = vmax.f32 %v4179, 0.0
        %v4283 = vmax.f32 %v4180, 0.0
        %v4284 = vmax.f32 %v4181, 0.0
        %v4285 = vmax.f32 %v4182, 0.0
        %v4286 = vmax.f32 %v4183, 0.0
        %v4287 = vmax.f32 %v4184, 0.0
        %v4288 = vmax.f32 %v4185, 0.0
        %v4289 = vmax.f32 %v4186, 0.0
        %v4290 = vmax.f32 %v4187, 0.0
        %v4291 = vmax.f32 %v4188, 0.0
        %v4292 = vmax.f32 %v4189, 0.0
        %v4293 = vmax.f32 %v4190, 0.0
        %v4294 = vmax.f32 %v4191, 0.0
        %v4295 = vmax.f32 %v4192, 0.0
        %v4296 = vmax.f32 %v4193, 0.0
        %v4297 = vmax.f32 %v4194, 0.0
        %v4298 = vmax.f32 %v4195, 0.0
        %v4299 = vmax.f32 %v4196, 0.0
        %v4300 = vmax.f32 %v4197, 0.0
        %v4301 = vmax.f32 %v4198, 0.0
        %v4302 = vmax.f32 %v4199, 0.0
        %v4303 = vmax.f32 %v4200, 0.0
        %v4304 = vmax.f32 %v4201, 0.0
        %v4305 = vmax.f32 %v4202, 0.0
        %v4306 = vmax.f32 %v4203, 0.0
        %v4307 = vmax.f32 %v4204, 0.0
        %v4308 = vmax.f32 %v4205, 0.0
        %v4309 = vmax.f32 %v4206, 0.0
        %v4310 = vmax.f32 %v4207, 0.0
        %v4311 = vpack.c.bf16 %v4280, %v4279
        %v4312 = vpack.c.bf16 %v4282, %v4281
        %v4313 = vpack.c.bf16 %v4284, %v4283
        %v4314 = vpack.c.bf16 %v4286, %v4285
        %v4315 = vpack.c.bf16 %v4288, %v4287
        %v4316 = vpack.c.bf16 %v4290, %v4289
        %v4317 = vpack.c.bf16 %v4292, %v4291
        %v4318 = vpack.c.bf16 %v4294, %v4293
        %v4319 = vpack.c.bf16 %v4296, %v4295
        %v4320 = vpack.c.bf16 %v4298, %v4297
        %v4321 = vpack.c.bf16 %v4300, %v4299
        %v4322 = vpack.c.bf16 %v4302, %v4301
        %v4323 = vpack.c.bf16 %v4304, %v4303
        %v4324 = vpack.c.bf16 %v4306, %v4305
        %v4325 = vpack.c.bf16 %v4308, %v4307
        %v4326 = vpack.c.bf16 %v4310, %v4309
        %v4343 = vunpack.c.l.b16 %v4311
        %v4344 = vunpack.c.h.b16 %v4311
        %v4345 = vunpack.c.l.b16 %v4312
        %v4346 = vunpack.c.h.b16 %v4312
        %v4347 = vunpack.c.l.b16 %v4313
        %v4348 = vunpack.c.h.b16 %v4313
        %v4349 = vunpack.c.l.b16 %v4314
        %v4350 = vunpack.c.h.b16 %v4314
        %v4351 = vunpack.c.l.b16 %v4315
        %v4352 = vunpack.c.h.b16 %v4315
        %v4353 = vunpack.c.l.b16 %v4316
        %v4354 = vunpack.c.h.b16 %v4316
        %v4355 = vunpack.c.l.b16 %v4317
        %v4356 = vunpack.c.h.b16 %v4317
        %v4357 = vunpack.c.l.b16 %v4318
        %v4358 = vunpack.c.h.b16 %v4318
        %v4359 = vunpack.c.l.b16 %v4319
        %v4360 = vunpack.c.h.b16 %v4319
        %v4361 = vunpack.c.l.b16 %v4320
        %v4362 = vunpack.c.h.b16 %v4320
        %v4363 = vunpack.c.l.b16 %v4321
        %v4364 = vunpack.c.h.b16 %v4321
        %v4365 = vunpack.c.l.b16 %v4322
        %v4366 = vunpack.c.h.b16 %v4322
        %v4367 = vunpack.c.l.b16 %v4323
        %v4368 = vunpack.c.h.b16 %v4323
        %v4369 = vunpack.c.l.b16 %v4324
        %v4370 = vunpack.c.h.b16 %v4324
        %v4371 = vunpack.c.l.b16 %v4325
        %v4372 = vunpack.c.h.b16 %v4325
        %v4373 = vunpack.c.l.b16 %v4326
        %v4374 = vunpack.c.h.b16 %v4326
        %v4375 = vpack.c.b16 %v4343, %v4343
        %v4376 = vpack.c.b16 %v4344, %v4344
        %v4377 = vpack.c.b16 %v4345, %v4345
        %v4378 = vpack.c.b16 %v4346, %v4346
        %v4379 = vpack.c.b16 %v4347, %v4347
        %v4380 = vpack.c.b16 %v4348, %v4348
        %v4381 = vpack.c.b16 %v4349, %v4349
        %v4382 = vpack.c.b16 %v4350, %v4350
        %v4383 = vpack.c.b16 %v4351, %v4351
        %v4384 = vpack.c.b16 %v4352, %v4352
        %v4385 = vpack.c.b16 %v4353, %v4353
        %v4386 = vpack.c.b16 %v4354, %v4354
        %v4387 = vpack.c.b16 %v4355, %v4355
        %v4388 = vpack.c.b16 %v4356, %v4356
        %v4389 = vpack.c.b16 %v4357, %v4357
        %v4390 = vpack.c.b16 %v4358, %v4358
        %v4391 = vpack.c.b16 %v4359, %v4359
        %v4392 = vpack.c.b16 %v4360, %v4360
        %v4393 = vpack.c.b16 %v4361, %v4361
        %v4394 = vpack.c.b16 %v4362, %v4362
        %v4395 = vpack.c.b16 %v4363, %v4363
        %v4396 = vpack.c.b16 %v4364, %v4364
        %v4397 = vpack.c.b16 %v4365, %v4365
        %v4398 = vpack.c.b16 %v4366, %v4366
        %v4399 = vpack.c.b16 %v4367, %v4367
        %v4400 = vpack.c.b16 %v4368, %v4368
        %v4401 = vpack.c.b16 %v4369, %v4369
        %v4402 = vpack.c.b16 %v4370, %v4370
        %v4403 = vpack.c.b16 %v4371, %v4371
        %v4404 = vpack.c.b16 %v4372, %v4372
        %v4405 = vpack.c.b16 %v4373, %v4373
        %v4406 = vpack.c.b16 %v4374, %v4374
        %vm4439 = vcmask 519168
        %4440 = vst.msk [vmem:[%s237] sm:$0xf] %vm4439, %v4375
        %4441 = vst.msk [vmem:[%s237 + $0x4] sm:$0xf] %vm4439, %v4376
        %4442 = vst.msk [vmem:[%s237 + $0x8] sm:$0xf] %vm4439, %v4377
        %4443 = vst.msk [vmem:[%s237 + $0xc] sm:$0xf] %vm4439, %v4378
        %4444 = vst.msk [vmem:[%s237 + $0x10] sm:$0xf] %vm4439, %v4379
        %4445 = vst.msk [vmem:[%s237 + $0x14] sm:$0xf] %vm4439, %v4380
        %4446 = vst.msk [vmem:[%s237 + $0x18] sm:$0xf] %vm4439, %v4381
        %4447 = vst.msk [vmem:[%s237 + $0x1c] sm:$0xf] %vm4439, %v4382
        %4448 = vst.msk [vmem:[%s237 + $0x20] sm:$0xf] %vm4439, %v4383
        %4449 = vst.msk [vmem:[%s237 + $0x24] sm:$0xf] %vm4439, %v4384
        %4450 = vst.msk [vmem:[%s237 + $0x28] sm:$0xf] %vm4439, %v4385
        %4451 = vst.msk [vmem:[%s237 + $0x2c] sm:$0xf] %vm4439, %v4386
        %4452 = vst.msk [vmem:[%s237 + $0x30] sm:$0xf] %vm4439, %v4387
        %4453 = vst.msk [vmem:[%s237 + $0x34] sm:$0xf] %vm4439, %v4388
        %4454 = vst.msk [vmem:[%s237 + $0x38] sm:$0xf] %vm4439, %v4389
        %4455 = vst.msk [vmem:[%s237 + $0x3c] sm:$0xf] %vm4439, %v4390
        %4456 = vst.msk [vmem:[%s237 + $0x40] sm:$0xf] %vm4439, %v4391
        %4457 = vst.msk [vmem:[%s237 + $0x44] sm:$0xf] %vm4439, %v4392
        %4458 = vst.msk [vmem:[%s237 + $0x48] sm:$0xf] %vm4439, %v4393
        %4459 = vst.msk [vmem:[%s237 + $0x4c] sm:$0xf] %vm4439, %v4394
        %4460 = vst.msk [vmem:[%s237 + $0x50] sm:$0xf] %vm4439, %v4395
        %4461 = vst.msk [vmem:[%s237 + $0x54] sm:$0xf] %vm4439, %v4396
        %4462 = vst.msk [vmem:[%s237 + $0x58] sm:$0xf] %vm4439, %v4397
        %4463 = vst.msk [vmem:[%s237 + $0x5c] sm:$0xf] %vm4439, %v4398
        %4464 = vst.msk [vmem:[%s237 + $0x60] sm:$0xf] %vm4439, %v4399
        %4465 = vst.msk [vmem:[%s237 + $0x64] sm:$0xf] %vm4439, %v4400
        %4466 = vst.msk [vmem:[%s237 + $0x68] sm:$0xf] %vm4439, %v4401
        %4467 = vst.msk [vmem:[%s237 + $0x6c] sm:$0xf] %vm4439, %v4402
        %4468 = vst.msk [vmem:[%s237 + $0x70] sm:$0xf] %vm4439, %v4403
        %4469 = vst.msk [vmem:[%s237 + $0x74] sm:$0xf] %vm4439, %v4404
        %4470 = vst.msk [vmem:[%s237 + $0x78] sm:$0xf] %vm4439, %v4405
        %4471 = vst.msk [vmem:[%s237 + $0x7c] sm:$0xf] %vm4439, %v4406
        %s4472 = sand.u32 %s134, 1
        %s4473 = scalar_lea.sflag [#allocation4], %s4472
        %s4474 = sand.u32 %s134, 1
        %s4475 = smul.addr %s4474, 128
        %s4476 = scalar_lea.vmem [#allocation3], %s4475
        %s4477 = sand.u32 %s162, 1
        %s4478 = scalar_lea.sflag [#allocation6], %s4477
        %s4479 = sand.u32 %s162, 1
        %s4480 = scalar_lea.vmem [#allocation5], %s4479
        // Predicated region
        $region37: #{conv3x3_s1_bn.1} parent=35 // pred_check
          %p4481 = pneg %p144
        $region38: #{conv3x3_s1_bn.1} parent=35 // pred_check_branch
          %4483 = sbr.rel (%p4481) target = $region40
        $region39: #{conv3x3_s1_bn.1} parent=35 // pred_region
          %s4484 = smul.u32 32, %s28
          %s4486 = ssub.s32 2048, 2048
          %4487 = vsyncadd %s4473, %s4486
          %s4488 = smul.addr %s27, 32
          %s4489 = sadd.s32 %s4484, %s4488
          %s4490 = smul.addr %s4489, 64
          %s4491 = scalar_lea.hbm %s4, %s4490
          %s4492 = sshll.u32 %s4476, 4
          %s4493 = int_to_ptr.vmem [resolvable:$true] %s4492
          %4498 = dma.vmem_to_hbm [thread:$0]  %s4493, 2048, %s4491, %s4473, 64, 64, 4
        $region40: #{conv3x3_s1_bn.1} parent=35 // pred_fallthru
          _
        // Predicated region
        $region41: #{conv3x3_s1_bn.1} parent=35 // pred_check
          %p4499 = pneg %p172
        $region42: #{conv3x3_s1_bn.1} parent=35 // pred_check_branch
          %4501 = sbr.rel (%p4499) target = $region44
        $region43: #{conv3x3_s1_bn.1} parent=35 // pred_region
          %s4503 = ssub.s32 16, 16
          %4504 = vsyncadd %s4478, %s4503
          %s4505 = sadd.s32 %s28, %s27
          %s4506 = smul.addr %s4505, 16
          %s4507 = scalar_lea.hbm %s5, %s4506
          %s4509 = sshll.u32 %s4480, 4
          %s4510 = int_to_ptr.vmem [resolvable:$true] %s4509
          %4512 = dma.vmem_to_hbm [thread:$0]  %s4510, 16, %s4507, %s4478
        $region44: #{conv3x3_s1_bn.1} parent=35 // pred_fallthru
          _
      $region36: #{conv3x3_s1_bn.1} parent=5 // pred_fallthru
        _
      %p4513 = scmp.le.s32.totalorder 2, %s18
      // Predicated region
      $region45: #{conv3x3_s1_bn.1} parent=5 // pred_check
        %p4514 = pneg %p4513
      $region46: #{conv3x3_s1_bn.1} parent=5 // pred_check_branch
        %4516 = sbr.rel (%p4514) target = $region48
      $region47: #{conv3x3_s1_bn.1} parent=5 // pred_region
        %s4517 = ssub.s32 %s18, 2
        // Predicated region
        $region49: #{conv3x3_s1_bn.1} parent=47 // pred_check
          %p4518 = pneg %p150
        $region50: #{conv3x3_s1_bn.1} parent=47 // pred_check_branch
          %4520 = sbr.rel (%p4518) target = $region52
        $region51: #{conv3x3_s1_bn.1} parent=47 // pred_region
          %s4521 = sand.u32 %s135, 1
          %s4522 = scalar_lea.sflag [#allocation4], %s4521
          %s4523 = sand.u32 %s135, 1
          %s4524 = smul.addr %s4523, 128
          %s4525 = scalar_lea.vmem [#allocation3], %s4524
          %4526 = dma.done %s4522, 2048
        $region52: #{conv3x3_s1_bn.1} parent=47 // pred_fallthru
          _
        // Predicated region
        $region53: #{conv3x3_s1_bn.1} parent=47 // pred_check
          %p4527 = pneg %p178
        $region54: #{conv3x3_s1_bn.1} parent=47 // pred_check_branch
          %4529 = sbr.rel (%p4527) target = $region56
        $region55: #{conv3x3_s1_bn.1} parent=47 // pred_region
          %s4530 = sand.u32 %s163, 1
          %s4531 = scalar_lea.sflag [#allocation6], %s4530
          %s4532 = sand.u32 %s163, 1
          %s4533 = scalar_lea.vmem [#allocation5], %s4532
          %4534 = dma.done %s4531, 16
        $region56: #{conv3x3_s1_bn.1} parent=47 // pred_fallthru
          _
      $region48: #{conv3x3_s1_bn.1} parent=5 // pred_fallthru
        _
    $region6: #{conv3x3_s1_bn.1} parent=1 // loop_footer
      %s22 = sadd.s32 1, %s18
    $region7: #{conv3x3_s1_bn.1} parent=1 // loop_footer_branch
      %17 = sbr.rel target = $region3
    $region8: #{conv3x3_s1_bn.1} parent=1 // loop_exit
      _
    %4535 = vsyncpa [#allocation4], 1
    %s4536 = scalar_lea.sflag [#allocation4], 1
    %4537 = vsyncpa %s4536, 1
    %4538 = vsyncpa [#allocation6], 1
    %s4539 = scalar_lea.sflag [#allocation6], 1
    %4540 = vsyncpa %s4539, 1

</llo_original>
